<compile_context>
chip_gen: v5e
topology: v5e:2x2
jax: 0.10.0
libtpu: 0.0.40
codegen_flags: <defaults>
</compile_context>

<pallas_src>
import numpy as np
import jax
import jax.numpy as jnp
from jax import lax
from jax.experimental import pallas as pl
from jax.experimental.pallas import tpu as pltpu


def _c2f_kernel(x_ref,
                wfc1_ref, bfc1_ref, wfc2_ref, bfc2_ref,
                w1_ref, b1_ref, w2_ref, b2_ref, w3_ref, b3_ref,
                ml_ref, mr_ref,
                out_ref):
    """One batch element, NHWC (channels lane-dense).

    x_ref   : (H, W, C)                input image (C == in_channels == out_channels)
    wfc1    : (Cr, C)   f32            SE fc1 weight (PyTorch layout)     bfc1: (Cr, 1)
    wfc2    : (Cr, C)   f32            SE fc2 weight, transposed          bfc2: (1, C)
    w1      : (C, C)    bf16           conv1 (1x1)                        b1:   (1, C)  f32
    w2      : (3, 3C, 2C) bf16         conv2 (3x3), [kw, kh*C + cin, cout] b2:  (1, 2C) f32
    w3      : (2C, C)   bf16           conv3 (1x1)                        b3:   (1, C)  f32
    ml, mr  : ((H+2)*W, 1) bf16        left / right image-border masks (flat padded rows)
    out_ref : (H, W, C)
    """
    H, W, C = x_ref.shape
    Cm = w1_ref.shape[1]
    HW = H * W
    P = (H + 2) * W                       # rows of the H-zero-padded flat image

    xf = x_ref[...].astype(jnp.float32).reshape(HW, C)        # lane-dense (M, C)

    # ---- SE channel attention (VPU/XLU + EUP only; M=1 MXU passes avoided) -------------
    avg = jnp.sum(xf, axis=0, keepdims=True) * (1.0 / float(HW))          # (1, C)
    h = jnp.sum(avg * wfc1_ref[...], axis=1, keepdims=True) + bfc1_ref[...]   # (Cr, 1)
    h = jnp.maximum(h, 0.0)
    z = jnp.sum(h * wfc2_ref[...], axis=0, keepdims=True) + bfc2_ref[...]     # (1, C)
    scale = 1.0 / (1.0 + jnp.exp(-z))                                          # sigmoid (EUP)
    xatt = (xf * scale).astype(jnp.bfloat16)                   # bf16 feed for the MXU

    # ---- conv1 (1x1): one lane-dense bf16 matmul, f32 accumulation ----------------------
    y1 = jnp.dot(xatt, w1_ref[...], preferred_element_type=jnp.float32) + b1_ref[...]
    y1 = y1.astype(jnp.bfloat16)                               # (HW, C)

    # ---- conv2 (3x3, pad=1): H-padded flat image + row shifts + 3 fat-K matmuls ---------
    # Zero-pad only along H, as a value (aligned leading-dim concat; no scratch, no
    # per-step zero sweep, no misaligned interior store).
    zrow = jnp.zeros((W, Cm), jnp.bfloat16)
    F = jnp.concatenate([zrow, y1, zrow], axis=0)              # (P, C)
    # Horizontal taps = +/-1 row shifts of the flat image; the precomputed masks zero the
    # wrap contamination at image columns 0 / W-1 (left/right borders).
    zero1 = jnp.zeros((1, Cm), jnp.bfloat16)
    g_left = jnp.concatenate([zero1, F[:P - 1]], axis=0) * ml_ref[...]   # kw=0 (reads w-1)
    g_right = jnp.concatenate([F[1:], zero1], axis=0) * mr_ref[...]      # kw=2 (reads w+1)

    def tap_stack(g):
        # vertical im2col: padded rows [i, i+H) for kh = 0,1,2, concatenated on K
        return jnp.concatenate(
            [g[0:HW], g[W:W + HW], g[2 * W:2 * W + HW]], axis=-1)        # (HW, 3C)

    acc = jnp.dot(tap_stack(g_left), w2_ref[0], preferred_element_type=jnp.float32)
    acc = acc + jnp.dot(tap_stack(F), w2_ref[1], preferred_element_type=jnp.float32)
    acc = acc + jnp.dot(tap_stack(g_right), w2_ref[2], preferred_element_type=jnp.float32)
    y2 = (acc + b2_ref[...]).astype(jnp.bfloat16)              # (HW, 2C)

    # ---- conv3 (1x1) ---------------------------------------------------------------------
    y3 = jnp.dot(y2, w3_ref[...], preferred_element_type=jnp.float32) + b3_ref[...]
    out_ref[...] = y3.reshape(H, W, Cm).astype(out_ref.dtype)


def c2f_module_pallas(x_nhwc, params):
    """C2F_Module forward. x_nhwc: (N, H, W, Cin) NHWC. Returns (N, H, W, Cout) NHWC.

    Keeping the surrounding model in NHWC avoids standalone HBM-round-trip transposes.
    """
    N, H, W, Cin = x_nhwc.shape
    Cm = params['conv1_w'].shape[0]        # out_channels
    C2 = params['conv2_w'].shape[0]        # 2 * out_channels
    Cr = params['fc1_w'].shape[0]          # out_channels // 16
    if Cin != Cm:
        raise ValueError("SE_Block(out_channels) is applied to the module input; "
                         "this module only runs when in_channels == out_channels.")

    f32, bf16 = jnp.float32, jnp.bfloat16

    # Weight repacking (pure layout plumbing; weights stored bf16 for the MXU path).
    wfc1 = params['fc1_w'].astype(f32)                              # (Cr, Cin)
    bfc1 = params['fc1_b'].reshape(Cr, 1).astype(f32)
    wfc2 = params['fc2_w'].T.astype(f32)                            # (Cr, Cin)
    bfc2 = params['fc2_b'].reshape(1, Cin).astype(f32)
    w1 = params['conv1_w'].reshape(Cm, Cin).T.astype(bf16)          # (Cin, Cm)
    b1 = params['conv1_b'].reshape(1, Cm).astype(f32)
    # (C2, Cm, kh, kw) -> (kw, kh, Cm, C2) -> (3, 3*Cm, C2): K packs the 3 vertical taps.
    w2 = jnp.transpose(params['conv2_w'], (3, 2, 1, 0)).reshape(3, 3 * Cm, C2).astype(bf16)
    b2 = params['conv2_b'].reshape(1, C2).astype(f32)
    w3 = params['conv3_w'].reshape(Cm, C2).T.astype(bf16)           # (C2, Cm)
    b3 = params['conv3_b'].reshape(1, Cm).astype(f32)

    # Left / right image-border masks for the flattened H-padded image (invariant inputs).
    P = (H + 2) * W
    col = jnp.tile(jnp.arange(W, dtype=jnp.int32), H + 2).reshape(P, 1)
    mask_l = (col != 0).astype(bf16)
    mask_r = (col != W - 1).astype(bf16)

    def const_spec(shape):
        r = len(shape)
        return pl.BlockSpec(shape, lambda n, _r=r: (0,) * _r)

    in_specs = [
        pl.BlockSpec((None, H, W, Cin), lambda n: (n, 0, 0, 0)),
        const_spec(wfc1.shape), const_spec(bfc1.shape),
        const_spec(wfc2.shape), const_spec(bfc2.shape),
        const_spec(w1.shape), const_spec(b1.shape),
        const_spec(w2.shape), const_spec(b2.shape),
        const_spec(w3.shape), const_spec(b3.shape),
        const_spec(mask_l.shape), const_spec(mask_r.shape),
    ]

    return pl.pallas_call(
        _c2f_kernel,
        out_shape=jax.ShapeDtypeStruct((N, H, W, Cm), x_nhwc.dtype),
        grid=(N,),
        in_specs=in_specs,
        out_specs=pl.BlockSpec((None, H, W, Cm), lambda n: (n, 0, 0, 0)),
        compiler_params=pltpu.CompilerParams(
            dimension_semantics=("parallel",)),
    )(x_nhwc, wfc1, bfc1, wfc2, bfc2, w1, b1, w2, b2, w3, b3, mask_l, mask_r)


def c2f_module_pallas_nchw(x_nchw, params):
    """Convenience adapter for PyTorch-layout callers (adds two layout transposes)."""
    y = c2f_module_pallas(jnp.transpose(x_nchw, (0, 2, 3, 1)), params)
    return jnp.transpose(y, (0, 3, 1, 2))


def _ref_forward_nhwc(x_nhwc, p):
    """Pure-JAX f32 HIGHEST-precision reference matching the PyTorch forward."""
    x = jnp.transpose(x_nhwc, (0, 3, 1, 2))                         # NCHW
    s = jnp.mean(x, axis=(2, 3))
    h = jnp.maximum(jnp.dot(s, p['fc1_w'].T, precision=lax.Precision.HIGHEST)
                    + p['fc1_b'], 0.0)
    scale = jax.nn.sigmoid(jnp.dot(h, p['fc2_w'].T, precision=lax.Precision.HIGHEST)
                           + p['fc2_b'])
    y = x * scale[:, :, None, None]
    dn = ('NCHW', 'OIHW', 'NCHW')
    y = lax.conv_general_dilated(y, p['conv1_w'], (1, 1), 'SAME', dimension_numbers=dn,
                                 precision=lax.Precision.HIGHEST) + p['conv1_b'][None, :, None, None]
    y = lax.conv_general_dilated(y, p['conv2_w'], (1, 1), 'SAME', dimension_numbers=dn,
                                 precision=lax.Precision.HIGHEST) + p['conv2_b'][None, :, None, None]
    y = lax.conv_general_dilated(y, p['conv3_w'], (1, 1), 'SAME', dimension_numbers=dn,
                                 precision=lax.Precision.HIGHEST) + p['conv3_b'][None, :, None, None]
    return jnp.transpose(y, (0, 2, 3, 1))                           # back to NHWC


if __name__ == "__main__":
    key = jax.random.PRNGKey(0)
    N, H, W = 2, 16, 16
    Cin = Cout = 32            # SE_Block(out_channels) applied to x => in == out channels
    Cr = Cout // 16            # 2
    C2 = 2 * Cout              # 64

    ks = jax.random.split(key, 12)
    x = jax.random.normal(ks[0], (N, H, W, Cin), jnp.float32)       # NHWC
    params = {
        'fc1_w':   jax.random.normal(ks[1], (Cr, Cout), jnp.float32) * 0.1,
        'fc1_b':   jax.random.normal(ks[2], (Cr,), jnp.float32) * 0.1,
        'fc2_w':   jax.random.normal(ks[3], (Cout, Cr), jnp.float32) * 0.1,
        'fc2_b':   jax.random.normal(ks[4], (Cout,), jnp.float32) * 0.1,
        'conv1_w': jax.random.normal(ks[5], (Cout, Cin, 1, 1), jnp.float32) * 0.1,
        'conv1_b': jax.random.normal(ks[6], (Cout,), jnp.float32) * 0.1,
        'conv2_w': jax.random.normal(ks[7], (C2, Cout, 3, 3), jnp.float32) * 0.05,
        'conv2_b': jax.random.normal(ks[8], (C2,), jnp.float32) * 0.1,
        'conv3_w': jax.random.normal(ks[9], (Cout, C2, 1, 1), jnp.float32) * 0.1,
        'conv3_b': jax.random.normal(ks[10], (Cout,), jnp.float32) * 0.1,
    }

    out = c2f_module_pallas(x, params)
    out = jax.block_until_ready(out)

    ref = _ref_forward_nhwc(x, params)
    # bf16 MXU inputs vs. f32 HIGHEST reference -> loosened tolerance.
    np.testing.assert_allclose(np.asarray(out), np.asarray(ref), atol=2e-2, rtol=2e-2)

    print("KERNEL_OK")
</pallas_src>

<mosaic_0001>
module attributes {stable_mosaic.version = 11 : i64} {
  func.func @_c2f_kernel(%arg0: i32, %arg1: memref<1x16x16x32xf32, #tpu.memory_space<vmem>>, %arg2: memref<2x32xf32, #tpu.memory_space<vmem>>, %arg3: memref<2x1xf32, #tpu.memory_space<vmem>>, %arg4: memref<2x32xf32, #tpu.memory_space<vmem>>, %arg5: memref<1x32xf32, #tpu.memory_space<vmem>>, %arg6: memref<32x32xbf16, #tpu.memory_space<vmem>>, %arg7: memref<1x32xf32, #tpu.memory_space<vmem>>, %arg8: memref<3x96x64xbf16, #tpu.memory_space<vmem>>, %arg9: memref<1x64xf32, #tpu.memory_space<vmem>>, %arg10: memref<64x32xbf16, #tpu.memory_space<vmem>>, %arg11: memref<1x32xf32, #tpu.memory_space<vmem>>, %arg12: memref<288x1xbf16, #tpu.memory_space<vmem>>, %arg13: memref<288x1xbf16, #tpu.memory_space<vmem>>, %arg14: memref<1x16x16x32xf32, #tpu.memory_space<vmem>>) attributes {dimension_semantics = [#tpu.dimension_semantics<parallel>], iteration_bounds = array<i64: 2>, scalar_prefetch = 0 : i64, scratch_operands = 0 : i64, tpu.core_type = #tpu.core_type<tc>, window_params = [{transform_indices = @transform_0, window_bounds = array<i64: 1, 16, 16, 32>}, {pipeline_mode = #tpu.pipeline_mode<synchronous>, transform_indices = @transform_1, window_bounds = array<i64: 2, 32>}, {pipeline_mode = #tpu.pipeline_mode<synchronous>, transform_indices = @transform_2, window_bounds = array<i64: 2, 1>}, {pipeline_mode = #tpu.pipeline_mode<synchronous>, transform_indices = @transform_3, window_bounds = array<i64: 2, 32>}, {pipeline_mode = #tpu.pipeline_mode<synchronous>, transform_indices = @transform_4, window_bounds = array<i64: 1, 32>}, {pipeline_mode = #tpu.pipeline_mode<synchronous>, transform_indices = @transform_5, window_bounds = array<i64: 32, 32>}, {pipeline_mode = #tpu.pipeline_mode<synchronous>, transform_indices = @transform_6, window_bounds = array<i64: 1, 32>}, {pipeline_mode = #tpu.pipeline_mode<synchronous>, transform_indices = @transform_7, window_bounds = array<i64: 3, 96, 64>}, {pipeline_mode = #tpu.pipeline_mode<synchronous>, transform_indices = @transform_8, window_bounds = array<i64: 1, 64>}, {pipeline_mode = #tpu.pipeline_mode<synchronous>, transform_indices = @transform_9, window_bounds = array<i64: 64, 32>}, {pipeline_mode = #tpu.pipeline_mode<synchronous>, transform_indices = @transform_10, window_bounds = array<i64: 1, 32>}, {pipeline_mode = #tpu.pipeline_mode<synchronous>, transform_indices = @transform_11, window_bounds = array<i64: 288, 1>}, {pipeline_mode = #tpu.pipeline_mode<synchronous>, transform_indices = @transform_12, window_bounds = array<i64: 288, 1>}, {transform_indices = @transform_13, window_bounds = array<i64: 1, 16, 16, 32>}]} {
    %c0 = arith.constant 0 : index
    %c0_0 = arith.constant 0 : index
    %c0_1 = arith.constant 0 : index
    %c0_2 = arith.constant 0 : index
    %0 = vector.load %arg1[%c0, %c0_0, %c0_1, %c0_2] : memref<1x16x16x32xf32, #tpu.memory_space<vmem>>, vector<1x16x16x32xf32>
    %1 = vector.shape_cast %0 : vector<1x16x16x32xf32> to vector<16x16x32xf32>
    %2 = vector.shape_cast %1 : vector<16x16x32xf32> to vector<256x32xf32>
    %cst = arith.constant dense<0.000000e+00> : vector<32xf32>
    %3 = vector.multi_reduction <add>, %2, %cst [0] : vector<256x32xf32> to vector<32xf32>
    %4 = vector.shape_cast %3 : vector<32xf32> to vector<1x32xf32>
    %cst_3 = arith.constant 3.906250e-03 : f32
    %5 = vector.broadcast %cst_3 : f32 to vector<1x32xf32>
    %6 = arith.mulf %4, %5 : vector<1x32xf32>
    %c0_4 = arith.constant 0 : index
    %c0_5 = arith.constant 0 : index
    %7 = vector.load %arg2[%c0_4, %c0_5] : memref<2x32xf32, #tpu.memory_space<vmem>>, vector<2x32xf32>
    %8 = vector.broadcast %6 : vector<1x32xf32> to vector<2x32xf32>
    %9 = arith.mulf %8, %7 : vector<2x32xf32>
    %cst_6 = arith.constant dense<0.000000e+00> : vector<2xf32>
    %10 = vector.multi_reduction <add>, %9, %cst_6 [1] : vector<2x32xf32> to vector<2xf32>
    %11 = vector.shape_cast %10 : vector<2xf32> to vector<2x1xf32>
    %c0_7 = arith.constant 0 : index
    %c0_8 = arith.constant 0 : index
    %12 = vector.load %arg3[%c0_7, %c0_8] : memref<2x1xf32, #tpu.memory_space<vmem>>, vector<2x1xf32>
    %13 = arith.addf %11, %12 : vector<2x1xf32>
    %cst_9 = arith.constant 0.000000e+00 : f32
    %14 = vector.broadcast %cst_9 : f32 to vector<2x1xf32>
    %15 = arith.maximumf %13, %14 : vector<2x1xf32>
    %c0_10 = arith.constant 0 : index
    %c0_11 = arith.constant 0 : index
    %16 = vector.load %arg4[%c0_10, %c0_11] : memref<2x32xf32, #tpu.memory_space<vmem>>, vector<2x32xf32>
    %17 = vector.broadcast %15 : vector<2x1xf32> to vector<2x32xf32>
    %18 = arith.mulf %17, %16 : vector<2x32xf32>
    %cst_12 = arith.constant dense<0.000000e+00> : vector<32xf32>
    %19 = vector.multi_reduction <add>, %18, %cst_12 [0] : vector<2x32xf32> to vector<32xf32>
    %20 = vector.shape_cast %19 : vector<32xf32> to vector<1x32xf32>
    %c0_13 = arith.constant 0 : index
    %c0_14 = arith.constant 0 : index
    %21 = vector.load %arg5[%c0_13, %c0_14] : memref<1x32xf32, #tpu.memory_space<vmem>>, vector<1x32xf32>
    %22 = arith.addf %20, %21 : vector<1x32xf32>
    %cst_15 = arith.constant 0.000000e+00 : f32
    %23 = vector.broadcast %cst_15 : f32 to vector<1x32xf32>
    %24 = arith.subf %23, %22 : vector<1x32xf32>
    %25 = math.exp %24 : vector<1x32xf32>
    %cst_16 = arith.constant 1.000000e+00 : f32
    %26 = vector.broadcast %cst_16 : f32 to vector<1x32xf32>
    %27 = arith.addf %26, %25 : vector<1x32xf32>
    %cst_17 = arith.constant 1.000000e+00 : f32
    %28 = vector.broadcast %cst_17 : f32 to vector<1x32xf32>
    %29 = arith.divf %28, %27 : vector<1x32xf32>
    %30 = vector.broadcast %29 : vector<1x32xf32> to vector<256x32xf32>
    %31 = arith.mulf %2, %30 : vector<256x32xf32>
    %32 = arith.truncf %31 : vector<256x32xf32> to vector<256x32xbf16>
    %c0_18 = arith.constant 0 : index
    %c0_19 = arith.constant 0 : index
    %33 = vector.load %arg6[%c0_18, %c0_19] : memref<32x32xbf16, #tpu.memory_space<vmem>>, vector<32x32xbf16>
    %cst_20 = arith.constant dense<0.000000e+00> : vector<256x32xf32>
    %34 = tpu.matmul %32, %33, %cst_20 {dimension_numbers = #tpu.dot_dimension_numbers<[1], [0], [0], [1], [0, 0, 1, 1], [], []>} : vector<256x32xbf16>, vector<32x32xbf16>, vector<256x32xf32> -> vector<256x32xf32>
    %c0_21 = arith.constant 0 : index
    %c0_22 = arith.constant 0 : index
    %35 = vector.load %arg7[%c0_21, %c0_22] : memref<1x32xf32, #tpu.memory_space<vmem>>, vector<1x32xf32>
    %36 = vector.broadcast %35 : vector<1x32xf32> to vector<256x32xf32>
    %37 = arith.addf %34, %36 : vector<256x32xf32>
    %38 = arith.truncf %37 : vector<256x32xf32> to vector<256x32xbf16>
    %cst_23 = arith.constant 0.000000e+00 : bf16
    %39 = vector.broadcast %cst_23 : bf16 to vector<16x32xbf16>
    %40 = tpu.concatenate %39, %38, %39 in 0 : vector<16x32xbf16>, vector<256x32xbf16>, vector<16x32xbf16> -> vector<288x32xbf16>
    %cst_24 = arith.constant 0.000000e+00 : bf16
    %41 = vector.broadcast %cst_24 : bf16 to vector<1x32xbf16>
    %42 = vector.extract_strided_slice %40 {offsets = [0, 0], sizes = [287, 32], strides = [1, 1]} : vector<288x32xbf16> to vector<287x32xbf16>
    %43 = tpu.concatenate %41, %42 in 0 : vector<1x32xbf16>, vector<287x32xbf16> -> vector<288x32xbf16>
    %c0_25 = arith.constant 0 : index
    %c0_26 = arith.constant 0 : index
    %44 = vector.load %arg12[%c0_25, %c0_26] : memref<288x1xbf16, #tpu.memory_space<vmem>>, vector<288x1xbf16>
    %45 = vector.broadcast %44 : vector<288x1xbf16> to vector<288x32xbf16>
    %46 = arith.mulf %43, %45 : vector<288x32xbf16>
    %47 = vector.extract_strided_slice %40 {offsets = [1, 0], sizes = [287, 32], strides = [1, 1]} : vector<288x32xbf16> to vector<287x32xbf16>
    %48 = tpu.concatenate %47, %41 in 0 : vector<287x32xbf16>, vector<1x32xbf16> -> vector<288x32xbf16>
    %c0_27 = arith.constant 0 : index
    %c0_28 = arith.constant 0 : index
    %49 = vector.load %arg13[%c0_27, %c0_28] : memref<288x1xbf16, #tpu.memory_space<vmem>>, vector<288x1xbf16>
    %50 = vector.broadcast %49 : vector<288x1xbf16> to vector<288x32xbf16>
    %51 = arith.mulf %48, %50 : vector<288x32xbf16>
    %52 = vector.extract_strided_slice %46 {offsets = [0, 0], sizes = [256, 32], strides = [1, 1]} : vector<288x32xbf16> to vector<256x32xbf16>
    %53 = vector.extract_strided_slice %46 {offsets = [16, 0], sizes = [256, 32], strides = [1, 1]} : vector<288x32xbf16> to vector<256x32xbf16>
    %54 = vector.extract_strided_slice %46 {offsets = [32, 0], sizes = [256, 32], strides = [1, 1]} : vector<288x32xbf16> to vector<256x32xbf16>
    %55 = tpu.concatenate %52, %53, %54 in 1 : vector<256x32xbf16>, vector<256x32xbf16>, vector<256x32xbf16> -> vector<256x96xbf16>
    %c0_29 = arith.constant 0 : index
    %c0_30 = arith.constant 0 : index
    %c0_31 = arith.constant 0 : index
    %56 = vector.load %arg8[%c0_29, %c0_30, %c0_31] : memref<3x96x64xbf16, #tpu.memory_space<vmem>>, vector<1x96x64xbf16>
    %57 = vector.shape_cast %56 : vector<1x96x64xbf16> to vector<96x64xbf16>
    %cst_32 = arith.constant dense<0.000000e+00> : vector<256x64xf32>
    %58 = tpu.matmul %55, %57, %cst_32 {dimension_numbers = #tpu.dot_dimension_numbers<[1], [0], [0], [1], [0, 0, 1, 1], [], []>} : vector<256x96xbf16>, vector<96x64xbf16>, vector<256x64xf32> -> vector<256x64xf32>
    %59 = vector.extract_strided_slice %40 {offsets = [0, 0], sizes = [256, 32], strides = [1, 1]} : vector<288x32xbf16> to vector<256x32xbf16>
    %60 = vector.extract_strided_slice %40 {offsets = [16, 0], sizes = [256, 32], strides = [1, 1]} : vector<288x32xbf16> to vector<256x32xbf16>
    %61 = vector.extract_strided_slice %40 {offsets = [32, 0], sizes = [256, 32], strides = [1, 1]} : vector<288x32xbf16> to vector<256x32xbf16>
    %62 = tpu.concatenate %59, %60, %61 in 1 : vector<256x32xbf16>, vector<256x32xbf16>, vector<256x32xbf16> -> vector<256x96xbf16>
    %c1 = arith.constant 1 : index
    %c0_33 = arith.constant 0 : index
    %c0_34 = arith.constant 0 : index
    %63 = vector.load %arg8[%c1, %c0_33, %c0_34] : memref<3x96x64xbf16, #tpu.memory_space<vmem>>, vector<1x96x64xbf16>
    %64 = vector.shape_cast %63 : vector<1x96x64xbf16> to vector<96x64xbf16>
    %cst_35 = arith.constant dense<0.000000e+00> : vector<256x64xf32>
    %65 = tpu.matmul %62, %64, %cst_35 {dimension_numbers = #tpu.dot_dimension_numbers<[1], [0], [0], [1], [0, 0, 1, 1], [], []>} : vector<256x96xbf16>, vector<96x64xbf16>, vector<256x64xf32> -> vector<256x64xf32>
    %66 = arith.addf %58, %65 : vector<256x64xf32>
    %67 = vector.extract_strided_slice %51 {offsets = [0, 0], sizes = [256, 32], strides = [1, 1]} : vector<288x32xbf16> to vector<256x32xbf16>
    %68 = vector.extract_strided_slice %51 {offsets = [16, 0], sizes = [256, 32], strides = [1, 1]} : vector<288x32xbf16> to vector<256x32xbf16>
    %69 = vector.extract_strided_slice %51 {offsets = [32, 0], sizes = [256, 32], strides = [1, 1]} : vector<288x32xbf16> to vector<256x32xbf16>
    %70 = tpu.concatenate %67, %68, %69 in 1 : vector<256x32xbf16>, vector<256x32xbf16>, vector<256x32xbf16> -> vector<256x96xbf16>
    %c2 = arith.constant 2 : index
    %c0_36 = arith.constant 0 : index
    %c0_37 = arith.constant 0 : index
    %71 = vector.load %arg8[%c2, %c0_36, %c0_37] : memref<3x96x64xbf16, #tpu.memory_space<vmem>>, vector<1x96x64xbf16>
    %72 = vector.shape_cast %71 : vector<1x96x64xbf16> to vector<96x64xbf16>
    %cst_38 = arith.constant dense<0.000000e+00> : vector<256x64xf32>
    %73 = tpu.matmul %70, %72, %cst_38 {dimension_numbers = #tpu.dot_dimension_numbers<[1], [0], [0], [1], [0, 0, 1, 1], [], []>} : vector<256x96xbf16>, vector<96x64xbf16>, vector<256x64xf32> -> vector<256x64xf32>
    %74 = arith.addf %66, %73 : vector<256x64xf32>
    %c0_39 = arith.constant 0 : index
    %c0_40 = arith.constant 0 : index
    %75 = vector.load %arg9[%c0_39, %c0_40] : memref<1x64xf32, #tpu.memory_space<vmem>>, vector<1x64xf32>
    %76 = vector.broadcast %75 : vector<1x64xf32> to vector<256x64xf32>
    %77 = arith.addf %74, %76 : vector<256x64xf32>
    %78 = arith.truncf %77 : vector<256x64xf32> to vector<256x64xbf16>
    %c0_41 = arith.constant 0 : index
    %c0_42 = arith.constant 0 : index
    %79 = vector.load %arg10[%c0_41, %c0_42] : memref<64x32xbf16, #tpu.memory_space<vmem>>, vector<64x32xbf16>
    %cst_43 = arith.constant dense<0.000000e+00> : vector<256x32xf32>
    %80 = tpu.matmul %78, %79, %cst_43 {dimension_numbers = #tpu.dot_dimension_numbers<[1], [0], [0], [1], [0, 0, 1, 1], [], []>} : vector<256x64xbf16>, vector<64x32xbf16>, vector<256x32xf32> -> vector<256x32xf32>
    %c0_44 = arith.constant 0 : index
    %c0_45 = arith.constant 0 : index
    %81 = vector.load %arg11[%c0_44, %c0_45] : memref<1x32xf32, #tpu.memory_space<vmem>>, vector<1x32xf32>
    %82 = vector.broadcast %81 : vector<1x32xf32> to vector<256x32xf32>
    %83 = arith.addf %80, %82 : vector<256x32xf32>
    %84 = vector.shape_cast %83 : vector<256x32xf32> to vector<16x16x32xf32>
    %c0_46 = arith.constant 0 : index
    %c0_47 = arith.constant 0 : index
    %c0_48 = arith.constant 0 : index
    %c0_49 = arith.constant 0 : index
    %85 = vector.load %arg14[%c0_46, %c0_47, %c0_48, %c0_49] : memref<1x16x16x32xf32, #tpu.memory_space<vmem>>, vector<1x16x16x32xf32>
    %86 = vector.shape_cast %85 : vector<1x16x16x32xf32> to vector<16x16x32xf32>
    %87 = vector.shape_cast %84 : vector<16x16x32xf32> to vector<1x16x16x32xf32>
    tpu.vector_store %arg14[%c0_46, %c0_47, %c0_48, %c0_49], %87 {strides = array<i32>} : memref<1x16x16x32xf32, #tpu.memory_space<vmem>>, vector<1x16x16x32xf32>,
    return
  }
  func.func @transform_0(%arg0: i32) -> (i32, i32, i32, i32) {
    %c0_i32 = arith.constant 0 : i32
    %c0_i32_0 = arith.constant 0 : i32
    %c0_i32_1 = arith.constant 0 : i32
    %c0_i32_2 = arith.constant 0 : i32
    return %arg0, %c0_i32, %c0_i32_0, %c0_i32_1 : i32, i32, i32, i32
  }
  func.func @transform_1(%arg0: i32) -> (i32, i32) {
    %c0_i32 = arith.constant 0 : i32
    %c0_i32_0 = arith.constant 0 : i32
    %c0_i32_1 = arith.constant 0 : i32
    return %c0_i32, %c0_i32_0 : i32, i32
  }
  func.func @transform_2(%arg0: i32) -> (i32, i32) {
    %c0_i32 = arith.constant 0 : i32
    %c0_i32_0 = arith.constant 0 : i32
    %c0_i32_1 = arith.constant 0 : i32
    return %c0_i32, %c0_i32_0 : i32, i32
  }
  func.func @transform_3(%arg0: i32) -> (i32, i32) {
    %c0_i32 = arith.constant 0 : i32
    %c0_i32_0 = arith.constant 0 : i32
    %c0_i32_1 = arith.constant 0 : i32
    return %c0_i32, %c0_i32_0 : i32, i32
  }
  func.func @transform_4(%arg0: i32) -> (i32, i32) {
    %c0_i32 = arith.constant 0 : i32
    %c0_i32_0 = arith.constant 0 : i32
    %c0_i32_1 = arith.constant 0 : i32
    return %c0_i32, %c0_i32_0 : i32, i32
  }
  func.func @transform_5(%arg0: i32) -> (i32, i32) {
    %c0_i32 = arith.constant 0 : i32
    %c0_i32_0 = arith.constant 0 : i32
    %c0_i32_1 = arith.constant 0 : i32
    return %c0_i32, %c0_i32_0 : i32, i32
  }
  func.func @transform_6(%arg0: i32) -> (i32, i32) {
    %c0_i32 = arith.constant 0 : i32
    %c0_i32_0 = arith.constant 0 : i32
    %c0_i32_1 = arith.constant 0 : i32
    return %c0_i32, %c0_i32_0 : i32, i32
  }
  func.func @transform_7(%arg0: i32) -> (i32, i32, i32) {
    %c0_i32 = arith.constant 0 : i32
    %c0_i32_0 = arith.constant 0 : i32
    %c0_i32_1 = arith.constant 0 : i32
    %c0_i32_2 = arith.constant 0 : i32
    return %c0_i32, %c0_i32_0, %c0_i32_1 : i32, i32, i32
  }
  func.func @transform_8(%arg0: i32) -> (i32, i32) {
    %c0_i32 = arith.constant 0 : i32
    %c0_i32_0 = arith.constant 0 : i32
    %c0_i32_1 = arith.constant 0 : i32
    return %c0_i32, %c0_i32_0 : i32, i32
  }
  func.func @transform_9(%arg0: i32) -> (i32, i32) {
    %c0_i32 = arith.constant 0 : i32
    %c0_i32_0 = arith.constant 0 : i32
    %c0_i32_1 = arith.constant 0 : i32
    return %c0_i32, %c0_i32_0 : i32, i32
  }
  func.func @transform_10(%arg0: i32) -> (i32, i32) {
    %c0_i32 = arith.constant 0 : i32
    %c0_i32_0 = arith.constant 0 : i32
    %c0_i32_1 = arith.constant 0 : i32
    return %c0_i32, %c0_i32_0 : i32, i32
  }
  func.func @transform_11(%arg0: i32) -> (i32, i32) {
    %c0_i32 = arith.constant 0 : i32
    %c0_i32_0 = arith.constant 0 : i32
    %c0_i32_1 = arith.constant 0 : i32
    return %c0_i32, %c0_i32_0 : i32, i32
  }
  func.func @transform_12(%arg0: i32) -> (i32, i32) {
    %c0_i32 = arith.constant 0 : i32
    %c0_i32_0 = arith.constant 0 : i32
    %c0_i32_1 = arith.constant 0 : i32
    return %c0_i32, %c0_i32_0 : i32, i32
  }
  func.func @transform_13(%arg0: i32) -> (i32, i32, i32, i32) {
    %c0_i32 = arith.constant 0 : i32
    %c0_i32_0 = arith.constant 0 : i32
    %c0_i32_1 = arith.constant 0 : i32
    %c0_i32_2 = arith.constant 0 : i32
    return %arg0, %c0_i32, %c0_i32_0, %c0_i32_1 : i32, i32, i32, i32
  }
}

</mosaic_0001>

<llo_original>
// kernel: tpu_custom_call.1
$region0: #{tpu_custom_call.1}
  #allocation0 [shape = 'u32[]', space=smem, size = 0x4, offset = 0x4, fixed_abs, tag = 'smem constant byte address 0x4 - core index']
  #allocation1 [shape = 'u32[72,128]{1,0:T(1,128)}', space=vmem, size = 0x9000, scoped, tag = 'internal scratch']
  %s0 = inlined_call_operand.hbm [shape: f32[2,16,16,32], index: 0, kind: input, shape index: {}]
  %s1 = inlined_call_operand.vmem [shape: f32[2,32], index: 1, kind: input, shape index: {}]
  %s2 = inlined_call_operand.vmem [shape: f32[2,1], index: 2, kind: input, shape index: {}]
  %s3 = inlined_call_operand.vmem [shape: f32[2,32], index: 3, kind: input, shape index: {}]
  %s4 = inlined_call_operand.vmem [shape: f32[1,32], index: 4, kind: input, shape index: {}]
  %s5 = inlined_call_operand.vmem [shape: bf16[32,32], index: 5, kind: input, shape index: {}]
  %s6 = inlined_call_operand.vmem [shape: f32[1,32], index: 6, kind: input, shape index: {}]
  %s7 = inlined_call_operand.vmem [shape: bf16[3,96,64], index: 7, kind: input, shape index: {}]
  %s8 = inlined_call_operand.vmem [shape: f32[1,64], index: 8, kind: input, shape index: {}]
  %s9 = inlined_call_operand.vmem [shape: bf16[64,32], index: 9, kind: input, shape index: {}]
  %s10 = inlined_call_operand.vmem [shape: f32[1,32], index: 10, kind: input, shape index: {}]
  %s11 = inlined_call_operand.vmem [shape: bf16[288,1], index: 11, kind: input, shape index: {}]
  %s12 = inlined_call_operand.vmem [shape: bf16[288,1], index: 12, kind: input, shape index: {}]
  %s13 = inlined_call_operand.hbm [shape: f32[2,16,16,32], index: 13, kind: output, shape index: {}]
  %s14 = sld [smem:[#allocation0]]
  $region89: #{tpu_custom_call.1} parent=0
    _
  %s16 = ssub.s32 1, %s14
  %s17 = scalar_select 0, %s16, %s14
  $region1: #{tpu_custom_call.1} parent=0
    #allocation2 [shape = 'u8[262144]{0}', space=vmem, size = 0x40000, scoped, tag = 'input window, operand 0']
    #allocation3 [shape = 's32[2]{0}', space=sflag, size = 0x8, scoped, tag = 'scoped memory for tpu_custom_call.1']
    #allocation4 [shape = 's32[2]{0}', space=sflag, size = 0x8, scoped, tag = 'scoped memory for tpu_custom_call.1']
    #allocation5 [shape = 'u8[262144]{0}', space=vmem, size = 0x40000, scoped, tag = 'output window, operand 0']
    %18 = vsyncpa [#allocation3], 0
    %s19 = scalar_lea.sflag [#allocation3], 1
    %20 = vsyncpa %s19, 0
    %21 = vsyncpa [#allocation4], 0
    %s22 = scalar_lea.sflag [#allocation4], 1
    %23 = vsyncpa %s22, 0
    loop: start=0, step=1, limit=4
    $region2: #{tpu_custom_call.1} parent=1 // loop_pre_header
      _
    $region3: #{tpu_custom_call.1} parent=1 // loop_header
      %s25 = sphi 0, %s29
      %p26 = scmp.ge.s32.totalorder %s25, 4
      %s35 = sphi 0, %s37
      %s38 = sphi 0, %s35
      %s39 = sphi 0, %s38
      %s55 = sphi 0, %s39
      %s59 = sphi 0, %s59
      %s61 = sphi 0, %s59
      %s62 = sphi 0, %s61
      %s76 = sphi 0, %s62
      %s80 = sphi 0, %s80
      %s82 = sphi 0, %s80
      %s83 = sphi 0, %s82
      %s97 = sphi 0, %s83
      %s101 = sphi 0, %s101
      %s103 = sphi 0, %s101
      %s104 = sphi 0, %s103
      %s118 = sphi 0, %s104
      %s122 = sphi 0, %s122
      %s124 = sphi 0, %s122
      %s125 = sphi 0, %s124
      %s139 = sphi 0, %s125
      %s143 = sphi 0, %s143
      %s145 = sphi 0, %s143
      %s146 = sphi 0, %s145
      %s160 = sphi 0, %s146
      %s164 = sphi 0, %s164
      %s166 = sphi 0, %s164
      %s167 = sphi 0, %s166
      %s181 = sphi 0, %s167
      %s185 = sphi 0, %s185
      %s187 = sphi 0, %s185
      %s188 = sphi 0, %s187
      %s202 = sphi 0, %s188
      %s206 = sphi 0, %s206
      %s208 = sphi 0, %s206
      %s209 = sphi 0, %s208
      %s223 = sphi 0, %s209
      %s227 = sphi 0, %s227
      %s229 = sphi 0, %s227
      %s230 = sphi 0, %s229
      %s244 = sphi 0, %s230
      %s248 = sphi 0, %s248
      %s250 = sphi 0, %s248
      %s251 = sphi 0, %s250
      %s265 = sphi 0, %s251
      %s269 = sphi 0, %s269
      %s271 = sphi 0, %s269
      %s272 = sphi 0, %s271
      %s286 = sphi 0, %s272
      %s290 = sphi 0, %s290
      %s292 = sphi 0, %s290
      %s293 = sphi 0, %s292
      %s307 = sphi 0, %s293
      %s313 = sphi 0, %s315
      %s316 = sphi 0, %s313
      %s317 = sphi 0, %s316
      %s333 = sphi 0, %s317
    $region4: #{tpu_custom_call.1} parent=1 // loop_header_branch
      %28 = sbr.rel (%p26) target = $region8
    $region5: #{tpu_custom_call.1} parent=1 // loop_body
      %s30 = ssub.s32 %s25, 1
      %s31 = ssub.s32 %s25, 2
      %s32 = sadd.s32 %s25, 1
      %s33 = ssub.s32 %s25, %s32
      %p34 = scmp.eq.s32.totalorder %s33, 0
      %s36 = sadd.s32 %s35, 1
      %s37 = scalar_select %p34, %s35, %s36
      %p40 = pneg %p34
      %p41 = scmp.eq.s32.totalorder %s25, 1
      %p42 = por %p40, %p41
      %p43 = scmp.ne.s32.totalorder %s35, %s38
      %p44 = scmp.eq.s32.totalorder %s25, 0
      %p45 = por %p43, %p44
      %p46 = scmp.ne.s32.totalorder %s35, %s38
      %p47 = scmp.eq.s32.totalorder %s30, 1
      %p48 = por %p46, %p47
      %p49 = scmp.ne.s32.totalorder %s38, %s39
      %p50 = scmp.eq.s32.totalorder %s30, 0
      %p51 = por %p49, %p50
      %p52 = scmp.ne.s32.totalorder %s38, %s39
      %p53 = scmp.eq.s32.totalorder %s31, 1
      %p54 = por %p52, %p53
      %p56 = scmp.ne.s32.totalorder %s39, %s55
      %p57 = scmp.eq.s32.totalorder %s31, 0
      %p58 = por %p56, %p57
      %s60 = sadd.s32 %s59, 1
      %p63 = scmp.eq.s32.totalorder %s25, 1
      %p64 = scmp.ne.s32.totalorder %s59, %s61
      %p65 = scmp.eq.s32.totalorder %s25, 0
      %p66 = por %p64, %p65
      %p67 = scmp.ne.s32.totalorder %s59, %s61
      %p68 = scmp.eq.s32.totalorder %s30, 1
      %p69 = por %p67, %p68
      %p70 = scmp.ne.s32.totalorder %s61, %s62
      %p71 = scmp.eq.s32.totalorder %s30, 0
      %p72 = por %p70, %p71
      %p73 = scmp.ne.s32.totalorder %s61, %s62
      %p74 = scmp.eq.s32.totalorder %s31, 1
      %p75 = por %p73, %p74
      %p77 = scmp.ne.s32.totalorder %s62, %s76
      %p78 = scmp.eq.s32.totalorder %s31, 0
      %p79 = por %p77, %p78
      %s81 = sadd.s32 %s80, 1
      %p84 = scmp.eq.s32.totalorder %s25, 1
      %p85 = scmp.ne.s32.totalorder %s80, %s82
      %p86 = scmp.eq.s32.totalorder %s25, 0
      %p87 = por %p85, %p86
      %p88 = scmp.ne.s32.totalorder %s80, %s82
      %p89 = scmp.eq.s32.totalorder %s30, 1
      %p90 = por %p88, %p89
      %p91 = scmp.ne.s32.totalorder %s82, %s83
      %p92 = scmp.eq.s32.totalorder %s30, 0
      %p93 = por %p91, %p92
      %p94 = scmp.ne.s32.totalorder %s82, %s83
      %p95 = scmp.eq.s32.totalorder %s31, 1
      %p96 = por %p94, %p95
      %p98 = scmp.ne.s32.totalorder %s83, %s97
      %p99 = scmp.eq.s32.totalorder %s31, 0
      %p100 = por %p98, %p99
      %s102 = sadd.s32 %s101, 1
      %p105 = scmp.eq.s32.totalorder %s25, 1
      %p106 = scmp.ne.s32.totalorder %s101, %s103
      %p107 = scmp.eq.s32.totalorder %s25, 0
      %p108 = por %p106, %p107
      %p109 = scmp.ne.s32.totalorder %s101, %s103
      %p110 = scmp.eq.s32.totalorder %s30, 1
      %p111 = por %p109, %p110
      %p112 = scmp.ne.s32.totalorder %s103, %s104
      %p113 = scmp.eq.s32.totalorder %s30, 0
      %p114 = por %p112, %p113
      %p115 = scmp.ne.s32.totalorder %s103, %s104
      %p116 = scmp.eq.s32.totalorder %s31, 1
      %p117 = por %p115, %p116
      %p119 = scmp.ne.s32.totalorder %s104, %s118
      %p120 = scmp.eq.s32.totalorder %s31, 0
      %p121 = por %p119, %p120
      %s123 = sadd.s32 %s122, 1
      %p126 = scmp.eq.s32.totalorder %s25, 1
      %p127 = scmp.ne.s32.totalorder %s122, %s124
      %p128 = scmp.eq.s32.totalorder %s25, 0
      %p129 = por %p127, %p128
      %p130 = scmp.ne.s32.totalorder %s122, %s124
      %p131 = scmp.eq.s32.totalorder %s30, 1
      %p132 = por %p130, %p131
      %p133 = scmp.ne.s32.totalorder %s124, %s125
      %p134 = scmp.eq.s32.totalorder %s30, 0
      %p135 = por %p133, %p134
      %p136 = scmp.ne.s32.totalorder %s124, %s125
      %p137 = scmp.eq.s32.totalorder %s31, 1
      %p138 = por %p136, %p137
      %p140 = scmp.ne.s32.totalorder %s125, %s139
      %p141 = scmp.eq.s32.totalorder %s31, 0
      %p142 = por %p140, %p141
      %s144 = sadd.s32 %s143, 1
      %p147 = scmp.eq.s32.totalorder %s25, 1
      %p148 = scmp.ne.s32.totalorder %s143, %s145
      %p149 = scmp.eq.s32.totalorder %s25, 0
      %p150 = por %p148, %p149
      %p151 = scmp.ne.s32.totalorder %s143, %s145
      %p152 = scmp.eq.s32.totalorder %s30, 1
      %p153 = por %p151, %p152
      %p154 = scmp.ne.s32.totalorder %s145, %s146
      %p155 = scmp.eq.s32.totalorder %s30, 0
      %p156 = por %p154, %p155
      %p157 = scmp.ne.s32.totalorder %s145, %s146
      %p158 = scmp.eq.s32.totalorder %s31, 1
      %p159 = por %p157, %p158
      %p161 = scmp.ne.s32.totalorder %s146, %s160
      %p162 = scmp.eq.s32.totalorder %s31, 0
      %p163 = por %p161, %p162
      %s165 = sadd.s32 %s164, 1
      %p168 = scmp.eq.s32.totalorder %s25, 1
      %p169 = scmp.ne.s32.totalorder %s164, %s166
      %p170 = scmp.eq.s32.totalorder %s25, 0
      %p171 = por %p169, %p170
      %p172 = scmp.ne.s32.totalorder %s164, %s166
      %p173 = scmp.eq.s32.totalorder %s30, 1
      %p174 = por %p172, %p173
      %p175 = scmp.ne.s32.totalorder %s166, %s167
      %p176 = scmp.eq.s32.totalorder %s30, 0
      %p177 = por %p175, %p176
      %p178 = scmp.ne.s32.totalorder %s166, %s167
      %p179 = scmp.eq.s32.totalorder %s31, 1
      %p180 = por %p178, %p179
      %p182 = scmp.ne.s32.totalorder %s167, %s181
      %p183 = scmp.eq.s32.totalorder %s31, 0
      %p184 = por %p182, %p183
      %s186 = sadd.s32 %s185, 1
      %p189 = scmp.eq.s32.totalorder %s25, 1
      %p190 = scmp.ne.s32.totalorder %s185, %s187
      %p191 = scmp.eq.s32.totalorder %s25, 0
      %p192 = por %p190, %p191
      %p193 = scmp.ne.s32.totalorder %s185, %s187
      %p194 = scmp.eq.s32.totalorder %s30, 1
      %p195 = por %p193, %p194
      %p196 = scmp.ne.s32.totalorder %s187, %s188
      %p197 = scmp.eq.s32.totalorder %s30, 0
      %p198 = por %p196, %p197
      %p199 = scmp.ne.s32.totalorder %s187, %s188
      %p200 = scmp.eq.s32.totalorder %s31, 1
      %p201 = por %p199, %p200
      %p203 = scmp.ne.s32.totalorder %s188, %s202
      %p204 = scmp.eq.s32.totalorder %s31, 0
      %p205 = por %p203, %p204
      %s207 = sadd.s32 %s206, 1
      %p210 = scmp.eq.s32.totalorder %s25, 1
      %p211 = scmp.ne.s32.totalorder %s206, %s208
      %p212 = scmp.eq.s32.totalorder %s25, 0
      %p213 = por %p211, %p212
      %p214 = scmp.ne.s32.totalorder %s206, %s208
      %p215 = scmp.eq.s32.totalorder %s30, 1
      %p216 = por %p214, %p215
      %p217 = scmp.ne.s32.totalorder %s208, %s209
      %p218 = scmp.eq.s32.totalorder %s30, 0
      %p219 = por %p217, %p218
      %p220 = scmp.ne.s32.totalorder %s208, %s209
      %p221 = scmp.eq.s32.totalorder %s31, 1
      %p222 = por %p220, %p221
      %p224 = scmp.ne.s32.totalorder %s209, %s223
      %p225 = scmp.eq.s32.totalorder %s31, 0
      %p226 = por %p224, %p225
      %s228 = sadd.s32 %s227, 1
      %p231 = scmp.eq.s32.totalorder %s25, 1
      %p232 = scmp.ne.s32.totalorder %s227, %s229
      %p233 = scmp.eq.s32.totalorder %s25, 0
      %p234 = por %p232, %p233
      %p235 = scmp.ne.s32.totalorder %s227, %s229
      %p236 = scmp.eq.s32.totalorder %s30, 1
      %p237 = por %p235, %p236
      %p238 = scmp.ne.s32.totalorder %s229, %s230
      %p239 = scmp.eq.s32.totalorder %s30, 0
      %p240 = por %p238, %p239
      %p241 = scmp.ne.s32.totalorder %s229, %s230
      %p242 = scmp.eq.s32.totalorder %s31, 1
      %p243 = por %p241, %p242
      %p245 = scmp.ne.s32.totalorder %s230, %s244
      %p246 = scmp.eq.s32.totalorder %s31, 0
      %p247 = por %p245, %p246
      %s249 = sadd.s32 %s248, 1
      %p252 = scmp.eq.s32.totalorder %s25, 1
      %p253 = scmp.ne.s32.totalorder %s248, %s250
      %p254 = scmp.eq.s32.totalorder %s25, 0
      %p255 = por %p253, %p254
      %p256 = scmp.ne.s32.totalorder %s248, %s250
      %p257 = scmp.eq.s32.totalorder %s30, 1
      %p258 = por %p256, %p257
      %p259 = scmp.ne.s32.totalorder %s250, %s251
      %p260 = scmp.eq.s32.totalorder %s30, 0
      %p261 = por %p259, %p260
      %p262 = scmp.ne.s32.totalorder %s250, %s251
      %p263 = scmp.eq.s32.totalorder %s31, 1
      %p264 = por %p262, %p263
      %p266 = scmp.ne.s32.totalorder %s251, %s265
      %p267 = scmp.eq.s32.totalorder %s31, 0
      %p268 = por %p266, %p267
      %s270 = sadd.s32 %s269, 1
      %p273 = scmp.eq.s32.totalorder %s25, 1
      %p274 = scmp.ne.s32.totalorder %s269, %s271
      %p275 = scmp.eq.s32.totalorder %s25, 0
      %p276 = por %p274, %p275
      %p277 = scmp.ne.s32.totalorder %s269, %s271
      %p278 = scmp.eq.s32.totalorder %s30, 1
      %p279 = por %p277, %p278
      %p280 = scmp.ne.s32.totalorder %s271, %s272
      %p281 = scmp.eq.s32.totalorder %s30, 0
      %p282 = por %p280, %p281
      %p283 = scmp.ne.s32.totalorder %s271, %s272
      %p284 = scmp.eq.s32.totalorder %s31, 1
      %p285 = por %p283, %p284
      %p287 = scmp.ne.s32.totalorder %s272, %s286
      %p288 = scmp.eq.s32.totalorder %s31, 0
      %p289 = por %p287, %p288
      %s291 = sadd.s32 %s290, 1
      %p294 = scmp.eq.s32.totalorder %s25, 1
      %p295 = scmp.ne.s32.totalorder %s290, %s292
      %p296 = scmp.eq.s32.totalorder %s25, 0
      %p297 = por %p295, %p296
      %p298 = scmp.ne.s32.totalorder %s290, %s292
      %p299 = scmp.eq.s32.totalorder %s30, 1
      %p300 = por %p298, %p299
      %p301 = scmp.ne.s32.totalorder %s292, %s293
      %p302 = scmp.eq.s32.totalorder %s30, 0
      %p303 = por %p301, %p302
      %p304 = scmp.ne.s32.totalorder %s292, %s293
      %p305 = scmp.eq.s32.totalorder %s31, 1
      %p306 = por %p304, %p305
      %p308 = scmp.ne.s32.totalorder %s293, %s307
      %p309 = scmp.eq.s32.totalorder %s31, 0
      %p310 = por %p308, %p309
      %s311 = ssub.s32 %s25, %s32
      %p312 = scmp.eq.s32.totalorder %s311, 0
      %s314 = sadd.s32 %s313, 1
      %s315 = scalar_select %p312, %s313, %s314
      %p318 = pneg %p312
      %p319 = scmp.eq.s32.totalorder %s25, 1
      %p320 = por %p318, %p319
      %p321 = scmp.ne.s32.totalorder %s313, %s316
      %p322 = scmp.eq.s32.totalorder %s25, 0
      %p323 = por %p321, %p322
      %p324 = scmp.ne.s32.totalorder %s313, %s316
      %p325 = scmp.eq.s32.totalorder %s30, 1
      %p326 = por %p324, %p325
      %p327 = scmp.ne.s32.totalorder %s316, %s317
      %p328 = scmp.eq.s32.totalorder %s30, 0
      %p329 = por %p327, %p328
      %p330 = scmp.ne.s32.totalorder %s316, %s317
      %p331 = scmp.eq.s32.totalorder %s31, 1
      %p332 = por %p330, %p331
      %p334 = scmp.ne.s32.totalorder %s317, %s333
      %p335 = scmp.eq.s32.totalorder %s31, 0
      %p336 = por %p334, %p335
      %p337 = scmp.le.s32.totalorder 1, %s25
      %p338 = scmp.lt.s32.totalorder %s25, 3
      %p339 = pnand %p337, %p338
      %p340 = pneg %p339
      // Predicated region
      $region9: #{tpu_custom_call.1} parent=5 // pred_check
        _
      $region10: #{tpu_custom_call.1} parent=5 // pred_check_branch
        %342 = sbr.rel (%p339) target = $region12
      $region11: #{tpu_custom_call.1} parent=5 // pred_region
        %s343 = ssub.s32 %s25, 1
        // Predicated region
        $region13: #{tpu_custom_call.1} parent=11 // pred_check
          %p344 = pneg %p72
        $region14: #{tpu_custom_call.1} parent=11 // pred_check_branch
          %346 = sbr.rel (%p344) target = $region16
        $region15: #{tpu_custom_call.1} parent=11 // pred_region
          _
        $region16: #{tpu_custom_call.1} parent=11 // pred_fallthru
          _
        // Predicated region
        $region17: #{tpu_custom_call.1} parent=11 // pred_check
          %p347 = pneg %p93
        $region18: #{tpu_custom_call.1} parent=11 // pred_check_branch
          %349 = sbr.rel (%p347) target = $region20
        $region19: #{tpu_custom_call.1} parent=11 // pred_region
          _
        $region20: #{tpu_custom_call.1} parent=11 // pred_fallthru
          _
        // Predicated region
        $region21: #{tpu_custom_call.1} parent=11 // pred_check
          %p350 = pneg %p114
        $region22: #{tpu_custom_call.1} parent=11 // pred_check_branch
          %352 = sbr.rel (%p350) target = $region24
        $region23: #{tpu_custom_call.1} parent=11 // pred_region
          _
        $region24: #{tpu_custom_call.1} parent=11 // pred_fallthru
          _
        // Predicated region
        $region25: #{tpu_custom_call.1} parent=11 // pred_check
          %p353 = pneg %p135
        $region26: #{tpu_custom_call.1} parent=11 // pred_check_branch
          %355 = sbr.rel (%p353) target = $region28
        $region27: #{tpu_custom_call.1} parent=11 // pred_region
          _
        $region28: #{tpu_custom_call.1} parent=11 // pred_fallthru
          _
        // Predicated region
        $region29: #{tpu_custom_call.1} parent=11 // pred_check
          %p356 = pneg %p156
        $region30: #{tpu_custom_call.1} parent=11 // pred_check_branch
          %358 = sbr.rel (%p356) target = $region32
        $region31: #{tpu_custom_call.1} parent=11 // pred_region
          _
        $region32: #{tpu_custom_call.1} parent=11 // pred_fallthru
          _
        // Predicated region
        $region33: #{tpu_custom_call.1} parent=11 // pred_check
          %p359 = pneg %p177
        $region34: #{tpu_custom_call.1} parent=11 // pred_check_branch
          %361 = sbr.rel (%p359) target = $region36
        $region35: #{tpu_custom_call.1} parent=11 // pred_region
          _
        $region36: #{tpu_custom_call.1} parent=11 // pred_fallthru
          _
        // Predicated region
        $region37: #{tpu_custom_call.1} parent=11 // pred_check
          %p362 = pneg %p198
        $region38: #{tpu_custom_call.1} parent=11 // pred_check_branch
          %364 = sbr.rel (%p362) target = $region40
        $region39: #{tpu_custom_call.1} parent=11 // pred_region
          _
        $region40: #{tpu_custom_call.1} parent=11 // pred_fallthru
          _
        // Predicated region
        $region41: #{tpu_custom_call.1} parent=11 // pred_check
          %p365 = pneg %p219
        $region42: #{tpu_custom_call.1} parent=11 // pred_check_branch
          %367 = sbr.rel (%p365) target = $region44
        $region43: #{tpu_custom_call.1} parent=11 // pred_region
          _
        $region44: #{tpu_custom_call.1} parent=11 // pred_fallthru
          _
        // Predicated region
        $region45: #{tpu_custom_call.1} parent=11 // pred_check
          %p368 = pneg %p240
        $region46: #{tpu_custom_call.1} parent=11 // pred_check_branch
          %370 = sbr.rel (%p368) target = $region48
        $region47: #{tpu_custom_call.1} parent=11 // pred_region
          _
        $region48: #{tpu_custom_call.1} parent=11 // pred_fallthru
          _
        // Predicated region
        $region49: #{tpu_custom_call.1} parent=11 // pred_check
          %p371 = pneg %p261
        $region50: #{tpu_custom_call.1} parent=11 // pred_check_branch
          %373 = sbr.rel (%p371) target = $region52
        $region51: #{tpu_custom_call.1} parent=11 // pred_region
          _
        $region52: #{tpu_custom_call.1} parent=11 // pred_fallthru
          _
        // Predicated region
        $region53: #{tpu_custom_call.1} parent=11 // pred_check
          %p374 = pneg %p282
        $region54: #{tpu_custom_call.1} parent=11 // pred_check_branch
          %376 = sbr.rel (%p374) target = $region56
        $region55: #{tpu_custom_call.1} parent=11 // pred_region
          _
        $region56: #{tpu_custom_call.1} parent=11 // pred_fallthru
          _
        // Predicated region
        $region57: #{tpu_custom_call.1} parent=11 // pred_check
          %p377 = pneg %p303
        $region58: #{tpu_custom_call.1} parent=11 // pred_check_branch
          %379 = sbr.rel (%p377) target = $region60
        $region59: #{tpu_custom_call.1} parent=11 // pred_region
          _
        $region60: #{tpu_custom_call.1} parent=11 // pred_fallthru
          _
      $region12: #{tpu_custom_call.1} parent=5 // pred_fallthru
        _
      %p380 = scmp.lt.s32.totalorder %s25, 2
      // Predicated region
      $region61: #{tpu_custom_call.1} parent=5 // pred_check
        %p381 = pneg %p380
      $region62: #{tpu_custom_call.1} parent=5 // pred_check_branch
        %383 = sbr.rel (%p381) target = $region64
      $region63: #{tpu_custom_call.1} parent=5 // pred_region
        // Predicated region
        $region65: #{tpu_custom_call.1} parent=63 // pred_check
          %p384 = pneg %p45
        $region66: #{tpu_custom_call.1} parent=63 // pred_check_branch
          %386 = sbr.rel (%p384) target = $region68
        $region67: #{tpu_custom_call.1} parent=63 // pred_region
          %s387 = sand.u32 %s35, 1
          %s388 = scalar_lea.sflag [#allocation3], %s387
          %s389 = sand.u32 %s35, 1
          %s390 = smul.addr %s389, 256
          %s391 = scalar_lea.vmem [#allocation2], %s390
          %393 = vsyncadd %s388, 0
          %s394 = smul.addr %s25, 32
          %s395 = smul.addr %s394, 8
          %s396 = scalar_lea.hbm %s0, %s395
          %s397 = sshll.u32 %s396, 4
          %s398 = int_to_ptr.hbm [resolvable:$true] %s397
          %s399 = sshll.u32 %s391, 4
          %s400 = int_to_ptr.vmem [resolvable:$true] %s399
          %405 = dma.hbm_to_vmem [thread:$0]  %s398, 4096, %s400, %s388, 128, 128, 8
        $region68: #{tpu_custom_call.1} parent=63 // pred_fallthru
          _
      $region64: #{tpu_custom_call.1} parent=5 // pred_fallthru
        _
      %p406 = scmp.le.s32.totalorder 1, %s25
      %p407 = scmp.lt.s32.totalorder %s25, 3
      %p408 = pnand %p406, %p407
      %p409 = pneg %p408
      // Predicated region
      $region69: #{tpu_custom_call.1} parent=5 // pred_check
        _
      $region70: #{tpu_custom_call.1} parent=5 // pred_check_branch
        %411 = sbr.rel (%p408) target = $region72
      $region71: #{tpu_custom_call.1} parent=5 // pred_region
        %s412 = ssub.s32 %s25, 1
        %s413 = sand.u32 %s38, 1
        %s414 = scalar_lea.sflag [#allocation3], %s413
        %s415 = sand.u32 %s38, 1
        %s416 = smul.addr %s415, 256
        %s417 = scalar_lea.vmem [#allocation2], %s416
        // Predicated region
        $region73: #{tpu_custom_call.1} parent=71 // pred_check
          %p418 = pneg %p51
        $region74: #{tpu_custom_call.1} parent=71 // pred_check_branch
          %420 = sbr.rel (%p418) target = $region76
        $region75: #{tpu_custom_call.1} parent=71 // pred_region
          %422 = dma.done %s414, 4096
        $region76: #{tpu_custom_call.1} parent=71 // pred_fallthru
          _
        %s423 = sand.u32 %s38, 1
        %s424 = scalar_lea.sflag [#allocation3], %s423
        %s425 = sand.u32 %s38, 1
        %s426 = smul.addr %s425, 256
        %s427 = scalar_lea.vmem [#allocation2], %s426
        %p428 = pneg %p51
        %p429 = pneg %p48
        %p430 = pneg %p72
        %p431 = pneg %p69
        %p432 = pneg %p93
        %p433 = pneg %p90
        %p434 = pneg %p114
        %p435 = pneg %p111
        %p436 = pneg %p135
        %p437 = pneg %p132
        %p438 = pneg %p156
        %p439 = pneg %p153
        %p440 = pneg %p177
        %p441 = pneg %p174
        %p442 = pneg %p198
        %p443 = pneg %p195
        %p444 = pneg %p219
        %p445 = pneg %p216
        %p446 = pneg %p240
        %p447 = pneg %p237
        %p448 = pneg %p261
        %p449 = pneg %p258
        %p450 = pneg %p282
        %p451 = pneg %p279
        %p452 = pneg %p303
        %p453 = pneg %p300
        %p454 = pneg %p329
        %p455 = pneg %p326
        %s456 = sand.u32 %s316, 1
        %s457 = scalar_lea.sflag [#allocation4], %s456
        %s458 = sand.u32 %s316, 1
        %s459 = smul.addr %s458, 256
        %s460 = scalar_lea.vmem [#allocation5], %s459
        %v462 = vld [vmem:[%s417] sm:$0xff]
        %v463 = vld [vmem:[%s417 + $0x8] sm:$0xff]
        %v464 = vld [vmem:[%s417 + $0x10] sm:$0xff]
        %v465 = vld [vmem:[%s417 + $0x18] sm:$0xff]
        %v466 = vld [vmem:[%s417 + $0x20] sm:$0xff]
        %v467 = vld [vmem:[%s417 + $0x28] sm:$0xff]
        %v468 = vld [vmem:[%s417 + $0x30] sm:$0xff]
        %v469 = vld [vmem:[%s417 + $0x38] sm:$0xff]
        %v470 = vld [vmem:[%s417 + $0x40] sm:$0xff]
        %v471 = vld [vmem:[%s417 + $0x48] sm:$0xff]
        %v472 = vld [vmem:[%s417 + $0x50] sm:$0xff]
        %v473 = vld [vmem:[%s417 + $0x58] sm:$0xff]
        %v474 = vld [vmem:[%s417 + $0x60] sm:$0xff]
        %v475 = vld [vmem:[%s417 + $0x68] sm:$0xff]
        %v476 = vld [vmem:[%s417 + $0x70] sm:$0xff]
        %v477 = vld [vmem:[%s417 + $0x78] sm:$0xff]
        %v478 = vld [vmem:[%s417 + $0x80] sm:$0xff]
        %v479 = vld [vmem:[%s417 + $0x88] sm:$0xff]
        %v480 = vld [vmem:[%s417 + $0x90] sm:$0xff]
        %v481 = vld [vmem:[%s417 + $0x98] sm:$0xff]
        %v482 = vld [vmem:[%s417 + $0xa0] sm:$0xff]
        %v483 = vld [vmem:[%s417 + $0xa8] sm:$0xff]
        %v484 = vld [vmem:[%s417 + $0xb0] sm:$0xff]
        %v485 = vld [vmem:[%s417 + $0xb8] sm:$0xff]
        %v486 = vld [vmem:[%s417 + $0xc0] sm:$0xff]
        %v487 = vld [vmem:[%s417 + $0xc8] sm:$0xff]
        %v488 = vld [vmem:[%s417 + $0xd0] sm:$0xff]
        %v489 = vld [vmem:[%s417 + $0xd8] sm:$0xff]
        %v490 = vld [vmem:[%s417 + $0xe0] sm:$0xff]
        %v491 = vld [vmem:[%s417 + $0xe8] sm:$0xff]
        %v492 = vld [vmem:[%s417 + $0xf0] sm:$0xff]
        %v493 = vld [vmem:[%s417 + $0xf8] sm:$0xff]
        %vm494 = vcmask 261120
        %v495 = vsel %vm494, %v462, 0.0
        %v496 = vsel %vm494, %v463, 0.0
        %v497 = vadd.f32 %v495, %v496
        %v498 = vsel %vm494, %v464, 0.0
        %v499 = vadd.f32 %v497, %v498
        %v500 = vsel %vm494, %v465, 0.0
        %v501 = vadd.f32 %v499, %v500
        %v502 = vsel %vm494, %v466, 0.0
        %v503 = vadd.f32 %v501, %v502
        %v504 = vsel %vm494, %v467, 0.0
        %v505 = vadd.f32 %v503, %v504
        %v506 = vsel %vm494, %v468, 0.0
        %v507 = vadd.f32 %v505, %v506
        %v508 = vsel %vm494, %v469, 0.0
        %v509 = vadd.f32 %v507, %v508
        %v510 = vsel %vm494, %v470, 0.0
        %v511 = vadd.f32 %v509, %v510
        %v512 = vsel %vm494, %v471, 0.0
        %v513 = vadd.f32 %v511, %v512
        %v514 = vsel %vm494, %v472, 0.0
        %v515 = vadd.f32 %v513, %v514
        %v516 = vsel %vm494, %v473, 0.0
        %v517 = vadd.f32 %v515, %v516
        %v518 = vsel %vm494, %v474, 0.0
        %v519 = vadd.f32 %v517, %v518
        %v520 = vsel %vm494, %v475, 0.0
        %v521 = vadd.f32 %v519, %v520
        %v522 = vsel %vm494, %v476, 0.0
        %v523 = vadd.f32 %v521, %v522
        %v524 = vsel %vm494, %v477, 0.0
        %v525 = vadd.f32 %v523, %v524
        %v526 = vsel %vm494, %v478, 0.0
        %v527 = vadd.f32 %v525, %v526
        %v528 = vsel %vm494, %v479, 0.0
        %v529 = vadd.f32 %v527, %v528
        %v530 = vsel %vm494, %v480, 0.0
        %v531 = vadd.f32 %v529, %v530
        %v532 = vsel %vm494, %v481, 0.0
        %v533 = vadd.f32 %v531, %v532
        %v534 = vsel %vm494, %v482, 0.0
        %v535 = vadd.f32 %v533, %v534
        %v536 = vsel %vm494, %v483, 0.0
        %v537 = vadd.f32 %v535, %v536
        %v538 = vsel %vm494, %v484, 0.0
        %v539 = vadd.f32 %v537, %v538
        %v540 = vsel %vm494, %v485, 0.0
        %v541 = vadd.f32 %v539, %v540
        %v542 = vsel %vm494, %v486, 0.0
        %v543 = vadd.f32 %v541, %v542
        %v544 = vsel %vm494, %v487, 0.0
        %v545 = vadd.f32 %v543, %v544
        %v546 = vsel %vm494, %v488, 0.0
        %v547 = vadd.f32 %v545, %v546
        %v548 = vsel %vm494, %v489, 0.0
        %v549 = vadd.f32 %v547, %v548
        %v550 = vsel %vm494, %v490, 0.0
        %v551 = vadd.f32 %v549, %v550
        %v552 = vsel %vm494, %v491, 0.0
        %v553 = vadd.f32 %v551, %v552
        %v554 = vsel %vm494, %v492, 0.0
        %v555 = vadd.f32 %v553, %v554
        %v556 = vsel %vm494, %v493, 0.0
        %v557 = vadd.f32 %v555, %v556
        %v558 = vrot.slane %v557, 4
        %v559 = vadd.f32 %v557, %v558
        %v560 = vrot.slane %v559, 2
        %v561 = vadd.f32 %v559, %v560
        %v562 = vrot.slane %v561, 1
        %v563 = vadd.f32 %v561, %v562
        %v564 = vmul.f32 %v563, 0.00390625
        %v565 = vld [vmem:[%s1] sm:$0x3]
        %v566 = vmul.f32 %v564, %v565
        %vm567 = vcmask 254976
        %v568 = vsel %vm567, %v566, 0.0
        %569 = vadd.xlane.f32.xlu0 %v568
        %v570 = vpop.xlane.xlu0 %569
        %v571 = vld [vmem:[%s2] sm:$0x3]
        %v572 = vadd.f32 %v570, %v571
        %v573 = vmax.f32 %v572, 0.0
        %v574 = vld [vmem:[%s3] sm:$0x3]
        %576 = vset.pattern.permute.xlu0 0
        %577 = vperm.xlu0 %576, %v573
        %v578 = vpop.permute.xlu0 %577
        %v580 = vmul.f32 %v578, %v574
        %v581 = vsel %vm567, %v580, 0.0
        %v582 = vrot.slane %v581, 4
        %v583 = vadd.f32 %v581, %v582
        %v584 = vrot.slane %v583, 2
        %v585 = vadd.f32 %v583, %v584
        %v586 = vrot.slane %v585, 1
        %v587 = vadd.f32 %v585, %v586
        %v588 = vld [vmem:[%s4] sm:$0x1]
        %v589 = vadd.f32 %v587, %v588
        %v590 = vsub.f32 0.0, %v589
        %v591 = vmul.f32 %v590, 1.442695
        %v592 = vpow.pop %v591
        %v593 = vadd.f32 %v592, 1.0
        %v594 = vrcp.pop %v593
        %v595 = vmul.f32 %v593, %v594
        %v596 = vsub.f32 1.0, %v595
        %v597 = vmul.f32 %v594, %v596
        %v598 = vadd.f32 %v594, %v597
        %vm599 = vweird.f32 %v593
        %vm600 = vweird.f32 %v594
        %vm601 = vmor %vm599, %vm600
        %v602 = vsel %vm601, %v594, %v598
        %v603 = vand.u32 2147483647, %v593
        %vm604 = vcmp.eq.f32.partialorder %v603, 8.507059e+37
        %v605 = vand.u32 %v593, 2147483648
        %v606 = vor.u32 1.1754944e-38, %v605
        %v607 = vsel %vm604, %v606, %v602
        %v608 = vmul.f32 1.0, %v607
        %v609 = vperm.slane %v608, 0
        %v610 = vmul.f32 %v462, %v609
        %v611 = vmul.f32 %v463, %v609
        %v612 = vmul.f32 %v464, %v609
        %v613 = vmul.f32 %v465, %v609
        %v614 = vmul.f32 %v466, %v609
        %v615 = vmul.f32 %v467, %v609
        %v616 = vmul.f32 %v468, %v609
        %v617 = vmul.f32 %v469, %v609
        %v618 = vmul.f32 %v470, %v609
        %v619 = vmul.f32 %v471, %v609
        %v620 = vmul.f32 %v472, %v609
        %v621 = vmul.f32 %v473, %v609
        %v622 = vmul.f32 %v474, %v609
        %v623 = vmul.f32 %v475, %v609
        %v624 = vmul.f32 %v476, %v609
        %v625 = vmul.f32 %v477, %v609
        %v626 = vmul.f32 %v478, %v609
        %v627 = vmul.f32 %v479, %v609
        %v628 = vmul.f32 %v480, %v609
        %v629 = vmul.f32 %v481, %v609
        %v630 = vmul.f32 %v482, %v609
        %v631 = vmul.f32 %v483, %v609
        %v632 = vmul.f32 %v484, %v609
        %v633 = vmul.f32 %v485, %v609
        %v634 = vmul.f32 %v486, %v609
        %v635 = vmul.f32 %v487, %v609
        %v636 = vmul.f32 %v488, %v609
        %v637 = vmul.f32 %v489, %v609
        %v638 = vmul.f32 %v490, %v609
        %v639 = vmul.f32 %v491, %v609
        %v640 = vmul.f32 %v492, %v609
        %v641 = vmul.f32 %v493, %v609
        %v642 = vpack.c.bf16 %v611, %v610
        %v643 = vpack.c.bf16 %v613, %v612
        %v644 = vpack.c.bf16 %v615, %v614
        %v645 = vpack.c.bf16 %v617, %v616
        %v646 = vpack.c.bf16 %v619, %v618
        %v647 = vpack.c.bf16 %v621, %v620
        %v648 = vpack.c.bf16 %v623, %v622
        %v649 = vpack.c.bf16 %v625, %v624
        %v650 = vpack.c.bf16 %v627, %v626
        %v651 = vpack.c.bf16 %v629, %v628
        %v652 = vpack.c.bf16 %v631, %v630
        %v653 = vpack.c.bf16 %v633, %v632
        %v654 = vpack.c.bf16 %v635, %v634
        %v655 = vpack.c.bf16 %v637, %v636
        %v656 = vpack.c.bf16 %v639, %v638
        %v657 = vpack.c.bf16 %v641, %v640
        %v658 = vld [vmem:[%s5] sm:$0xf]
        %v659 = vld [vmem:[%s5 + $0x4] sm:$0xf]
        %v660 = vld [vmem:[%s5 + $0x8] sm:$0xf]
        %v661 = vld [vmem:[%s5 + $0xc] sm:$0xf]
        %v662 = vld [vmem:[%s6] sm:$0x1]
        %v664 = vperm.slane %v662, 0
        %v670 = vunpack.c.l.b16 %v658
        %v671 = vunpack.c.l.b16 %v659
        %v672 = vunpack.c.l.b16 %v660
        %v673 = vunpack.c.l.b16 %v661
        %v674 = vpack.c.b16 %v671, %v670
        %v675 = vpack.c.b16 %v673, %v672
        %v679 = vsel %vm494, %v642, 0
        %v682 = vsel %vm494, %v643, 0
        %v685 = vsel %vm494, %v644, 0
        %v688 = vsel %vm494, %v645, 0
        %v691 = vsel %vm494, %v646, 0
        %v694 = vsel %vm494, %v647, 0
        %v697 = vsel %vm494, %v648, 0
        %v700 = vsel %vm494, %v649, 0
        %v703 = vsel %vm494, %v650, 0
        %v706 = vsel %vm494, %v651, 0
        %v709 = vsel %vm494, %v652, 0
        %v712 = vsel %vm494, %v653, 0
        %v715 = vsel %vm494, %v654, 0
        %v718 = vsel %vm494, %v655, 0
        %v721 = vsel %vm494, %v656, 0
        %v724 = vsel %vm494, %v657, 0
        %726 = vmatpush.bf16.msra.mxu0 0
        %727 = vmatpush.bf16.msra.mxu0 0
        %728 = vmatpush.bf16.msra.mxu0 0
        %729 = vmatpush.bf16.msra.mxu0 0
        %730 = vmatpush.bf16.msra.mxu0 0
        %731 = vmatpush.bf16.msra.mxu0 0
        %732 = vmatpush.bf16.msra.mxu0 %v675
        %733 = vmatpush.bf16.msra.mxu0 %v674
        %734 = vmatmul.bf16.gmra.mxu0 %v679
        %v735 = vpop.f32.mrf.mxu0
        %v736 = vadd.f32 %v664, %v735
        %v737 = vpop.f32.mrf.mxu0
        %v738 = vadd.f32 %v664, %v737
        %739 = vmatmul.bf16.gmra.mxu0 %v682
        %v740 = vpop.f32.mrf.mxu0
        %v741 = vadd.f32 %v664, %v740
        %v742 = vpop.f32.mrf.mxu0
        %v743 = vadd.f32 %v664, %v742
        %744 = vmatmul.bf16.gmra.mxu0 %v685
        %v745 = vpop.f32.mrf.mxu0
        %v746 = vadd.f32 %v664, %v745
        %v747 = vpop.f32.mrf.mxu0
        %v748 = vadd.f32 %v664, %v747
        %749 = vmatmul.bf16.gmra.mxu0 %v688
        %v750 = vpop.f32.mrf.mxu0
        %v751 = vadd.f32 %v664, %v750
        %v752 = vpop.f32.mrf.mxu0
        %v753 = vadd.f32 %v664, %v752
        %754 = vmatmul.bf16.gmra.mxu0 %v691
        %v755 = vpop.f32.mrf.mxu0
        %v756 = vadd.f32 %v664, %v755
        %v757 = vpop.f32.mrf.mxu0
        %v758 = vadd.f32 %v664, %v757
        %759 = vmatmul.bf16.gmra.mxu0 %v694
        %v760 = vpop.f32.mrf.mxu0
        %v761 = vadd.f32 %v664, %v760
        %v762 = vpop.f32.mrf.mxu0
        %v763 = vadd.f32 %v664, %v762
        %764 = vmatmul.bf16.gmra.mxu0 %v697
        %v765 = vpop.f32.mrf.mxu0
        %v766 = vadd.f32 %v664, %v765
        %v767 = vpop.f32.mrf.mxu0
        %v768 = vadd.f32 %v664, %v767
        %769 = vmatmul.bf16.gmra.mxu0 %v700
        %v770 = vpop.f32.mrf.mxu0
        %v771 = vadd.f32 %v664, %v770
        %v772 = vpop.f32.mrf.mxu0
        %v773 = vadd.f32 %v664, %v772
        %774 = vmatmul.bf16.gmra.mxu0 %v703
        %v775 = vpop.f32.mrf.mxu0
        %v776 = vadd.f32 %v664, %v775
        %v777 = vpop.f32.mrf.mxu0
        %v778 = vadd.f32 %v664, %v777
        %779 = vmatmul.bf16.gmra.mxu0 %v706
        %v780 = vpop.f32.mrf.mxu0
        %v781 = vadd.f32 %v664, %v780
        %v782 = vpop.f32.mrf.mxu0
        %v783 = vadd.f32 %v664, %v782
        %784 = vmatmul.bf16.gmra.mxu0 %v709
        %v785 = vpop.f32.mrf.mxu0
        %v786 = vadd.f32 %v664, %v785
        %v787 = vpop.f32.mrf.mxu0
        %v788 = vadd.f32 %v664, %v787
        %789 = vmatmul.bf16.gmra.mxu0 %v712
        %v790 = vpop.f32.mrf.mxu0
        %v791 = vadd.f32 %v664, %v790
        %v792 = vpop.f32.mrf.mxu0
        %v793 = vadd.f32 %v664, %v792
        %794 = vmatmul.bf16.gmra.mxu0 %v715
        %v795 = vpop.f32.mrf.mxu0
        %v796 = vadd.f32 %v664, %v795
        %v797 = vpop.f32.mrf.mxu0
        %v798 = vadd.f32 %v664, %v797
        %799 = vmatmul.bf16.gmra.mxu0 %v718
        %v800 = vpop.f32.mrf.mxu0
        %v801 = vadd.f32 %v664, %v800
        %v802 = vpop.f32.mrf.mxu0
        %v803 = vadd.f32 %v664, %v802
        %804 = vmatmul.bf16.gmra.mxu0 %v721
        %v805 = vpop.f32.mrf.mxu0
        %v806 = vadd.f32 %v664, %v805
        %v807 = vpop.f32.mrf.mxu0
        %v808 = vadd.f32 %v664, %v807
        %809 = vmatmul.bf16.gmra.mxu0 %v724
        %v810 = vpop.f32.mrf.mxu0
        %v811 = vadd.f32 %v664, %v810
        %v812 = vpop.f32.mrf.mxu0
        %v813 = vadd.f32 %v664, %v812
        %814 = vdwg.mxu0
        %v815 = vpack.c.bf16 %v736, %v736
        %v816 = vpack.c.bf16 %v738, %v738
        %v817 = vpack.c.bf16 %v741, %v741
        %v818 = vpack.c.bf16 %v743, %v743
        %v819 = vpack.c.bf16 %v746, %v746
        %v820 = vpack.c.bf16 %v748, %v748
        %v821 = vpack.c.bf16 %v751, %v751
        %v822 = vpack.c.bf16 %v753, %v753
        %v823 = vpack.c.bf16 %v756, %v756
        %v824 = vpack.c.bf16 %v758, %v758
        %v825 = vpack.c.bf16 %v761, %v761
        %v826 = vpack.c.bf16 %v763, %v763
        %v827 = vpack.c.bf16 %v766, %v766
        %v828 = vpack.c.bf16 %v768, %v768
        %v829 = vpack.c.bf16 %v771, %v771
        %v830 = vpack.c.bf16 %v773, %v773
        %v831 = vpack.c.bf16 %v776, %v776
        %v832 = vpack.c.bf16 %v778, %v778
        %v833 = vpack.c.bf16 %v781, %v781
        %v834 = vpack.c.bf16 %v783, %v783
        %v835 = vpack.c.bf16 %v786, %v786
        %v836 = vpack.c.bf16 %v788, %v788
        %v837 = vpack.c.bf16 %v791, %v791
        %v838 = vpack.c.bf16 %v793, %v793
        %v839 = vpack.c.bf16 %v796, %v796
        %v840 = vpack.c.bf16 %v798, %v798
        %v841 = vpack.c.bf16 %v801, %v801
        %v842 = vpack.c.bf16 %v803, %v803
        %v843 = vpack.c.bf16 %v806, %v806
        %v844 = vpack.c.bf16 %v808, %v808
        %v845 = vpack.c.bf16 %v811, %v811
        %v846 = vpack.c.bf16 %v813, %v813
        %v879 = vunpack.c.l.b16 %v815
        %v880 = vunpack.c.l.b16 %v816
        %v881 = vunpack.c.l.b16 %v817
        %v882 = vunpack.c.l.b16 %v818
        %v883 = vunpack.c.l.b16 %v819
        %v884 = vunpack.c.l.b16 %v820
        %v885 = vunpack.c.l.b16 %v821
        %v886 = vunpack.c.l.b16 %v822
        %v887 = vunpack.c.l.b16 %v823
        %v888 = vunpack.c.l.b16 %v824
        %v889 = vunpack.c.l.b16 %v825
        %v890 = vunpack.c.l.b16 %v826
        %v891 = vunpack.c.l.b16 %v827
        %v892 = vunpack.c.l.b16 %v828
        %v893 = vunpack.c.l.b16 %v829
        %v894 = vunpack.c.l.b16 %v830
        %v895 = vunpack.c.l.b16 %v831
        %v896 = vunpack.c.l.b16 %v832
        %v897 = vunpack.c.l.b16 %v833
        %v898 = vunpack.c.l.b16 %v834
        %v899 = vunpack.c.l.b16 %v835
        %v900 = vunpack.c.l.b16 %v836
        %v901 = vunpack.c.l.b16 %v837
        %v902 = vunpack.c.l.b16 %v838
        %v903 = vunpack.c.l.b16 %v839
        %v904 = vunpack.c.l.b16 %v840
        %v905 = vunpack.c.l.b16 %v841
        %v906 = vunpack.c.l.b16 %v842
        %v907 = vunpack.c.l.b16 %v843
        %v908 = vunpack.c.l.b16 %v844
        %v909 = vunpack.c.l.b16 %v845
        %v910 = vunpack.c.l.b16 %v846
        %v911 = vpack.c.b16 %v880, %v879
        %v912 = vpack.c.b16 %v882, %v881
        %v913 = vpack.c.b16 %v884, %v883
        %v914 = vpack.c.b16 %v886, %v885
        %v915 = vpack.c.b16 %v888, %v887
        %v916 = vpack.c.b16 %v890, %v889
        %v917 = vpack.c.b16 %v892, %v891
        %v918 = vpack.c.b16 %v894, %v893
        %v919 = vpack.c.b16 %v896, %v895
        %v920 = vpack.c.b16 %v898, %v897
        %v921 = vpack.c.b16 %v900, %v899
        %v922 = vpack.c.b16 %v902, %v901
        %v923 = vpack.c.b16 %v904, %v903
        %v924 = vpack.c.b16 %v906, %v905
        %v925 = vpack.c.b16 %v908, %v907
        %v926 = vpack.c.b16 %v910, %v909
        %vm927 = vsmask.f32 256
        %v929 = vshrl.u32 0, 16
        %v931 = vrot.slane %v929, 7
        %v932 = vshll.u32 0, 16
        %v934 = vor.u32 %v931, %v932
        %v936 = vshrl.u32 %v911, 16
        %v938 = vrot.slane %v936, 7
        %v939 = vshll.u32 %v911, 16
        %v941 = vor.u32 %v938, %v939
        %v942 = vsel %vm927, %v931, %v941
        %v944 = vshrl.u32 %v912, 16
        %v946 = vrot.slane %v944, 7
        %v947 = vshll.u32 %v912, 16
        %v949 = vor.u32 %v946, %v947
        %v950 = vsel %vm927, %v938, %v949
        %v952 = vshrl.u32 %v913, 16
        %v954 = vrot.slane %v952, 7
        %v955 = vshll.u32 %v913, 16
        %v957 = vor.u32 %v954, %v955
        %v958 = vsel %vm927, %v946, %v957
        %v960 = vshrl.u32 %v914, 16
        %v962 = vrot.slane %v960, 7
        %v963 = vshll.u32 %v914, 16
        %v965 = vor.u32 %v962, %v963
        %v966 = vsel %vm927, %v954, %v965
        %v968 = vshrl.u32 %v915, 16
        %v970 = vrot.slane %v968, 7
        %v971 = vshll.u32 %v915, 16
        %v973 = vor.u32 %v970, %v971
        %v974 = vsel %vm927, %v962, %v973
        %v976 = vshrl.u32 %v916, 16
        %v978 = vrot.slane %v976, 7
        %v979 = vshll.u32 %v916, 16
        %v981 = vor.u32 %v978, %v979
        %v982 = vsel %vm927, %v970, %v981
        %v984 = vshrl.u32 %v917, 16
        %v986 = vrot.slane %v984, 7
        %v987 = vshll.u32 %v917, 16
        %v989 = vor.u32 %v986, %v987
        %v990 = vsel %vm927, %v978, %v989
        %v992 = vshrl.u32 %v918, 16
        %v994 = vrot.slane %v992, 7
        %v995 = vshll.u32 %v918, 16
        %v997 = vor.u32 %v994, %v995
        %v998 = vsel %vm927, %v986, %v997
        %v1000 = vshrl.u32 %v919, 16
        %v1002 = vrot.slane %v1000, 7
        %v1003 = vshll.u32 %v919, 16
        %v1005 = vor.u32 %v1002, %v1003
        %v1006 = vsel %vm927, %v994, %v1005
        %v1008 = vshrl.u32 %v920, 16
        %v1010 = vrot.slane %v1008, 7
        %v1011 = vshll.u32 %v920, 16
        %v1013 = vor.u32 %v1010, %v1011
        %v1014 = vsel %vm927, %v1002, %v1013
        %v1016 = vshrl.u32 %v921, 16
        %v1018 = vrot.slane %v1016, 7
        %v1019 = vshll.u32 %v921, 16
        %v1021 = vor.u32 %v1018, %v1019
        %v1022 = vsel %vm927, %v1010, %v1021
        %v1024 = vshrl.u32 %v922, 16
        %v1026 = vrot.slane %v1024, 7
        %v1027 = vshll.u32 %v922, 16
        %v1029 = vor.u32 %v1026, %v1027
        %v1030 = vsel %vm927, %v1018, %v1029
        %v1032 = vshrl.u32 %v923, 16
        %v1034 = vrot.slane %v1032, 7
        %v1035 = vshll.u32 %v923, 16
        %v1037 = vor.u32 %v1034, %v1035
        %v1038 = vsel %vm927, %v1026, %v1037
        %v1040 = vshrl.u32 %v924, 16
        %v1042 = vrot.slane %v1040, 7
        %v1043 = vshll.u32 %v924, 16
        %v1045 = vor.u32 %v1042, %v1043
        %v1046 = vsel %vm927, %v1034, %v1045
        %v1048 = vshrl.u32 %v925, 16
        %v1050 = vrot.slane %v1048, 7
        %v1051 = vshll.u32 %v925, 16
        %v1053 = vor.u32 %v1050, %v1051
        %v1054 = vsel %vm927, %v1042, %v1053
        %v1056 = vshrl.u32 %v926, 16
        %v1058 = vrot.slane %v1056, 7
        %v1059 = vshll.u32 %v926, 16
        %v1061 = vor.u32 %v1058, %v1059
        %v1062 = vsel %vm927, %v1050, %v1061
        %v1063 = vsel %vm927, %v1058, %v934
        %vm1082 = vcmask 1040384
        %vm1083 = vmand %vm1082, %vm927
        %v1084 = vsel %vm1083, 0, %v934
        %v1085 = vld [vmem:[%s11] sm:$0xf]
        %v1086 = vld [vmem:[%s11 + $0x4] sm:$0xf]
        %v1087 = vld [vmem:[%s11 + $0x8] sm:$0xf]
        %v1088 = vld [vmem:[%s11 + $0xc] sm:$0xf]
        %v1089 = vld [vmem:[%s11 + $0x10] sm:$0xf]
        %v1090 = vld [vmem:[%s11 + $0x14] sm:$0xf]
        %v1091 = vld [vmem:[%s11 + $0x18] sm:$0xf]
        %v1092 = vld [vmem:[%s11 + $0x1c] sm:$0xf]
        %v1093 = vld [vmem:[%s11 + $0x20] sm:$0xf]
        %v1094 = vld [vmem:[%s11 + $0x24] sm:$0xf]
        %v1095 = vld [vmem:[%s11 + $0x28] sm:$0xf]
        %v1096 = vld [vmem:[%s11 + $0x2c] sm:$0xf]
        %v1097 = vld [vmem:[%s11 + $0x30] sm:$0xf]
        %v1098 = vld [vmem:[%s11 + $0x34] sm:$0xf]
        %v1099 = vld [vmem:[%s11 + $0x38] sm:$0xf]
        %v1100 = vld [vmem:[%s11 + $0x3c] sm:$0xf]
        %v1101 = vld [vmem:[%s11 + $0x40] sm:$0xf]
        %v1102 = vld [vmem:[%s11 + $0x44] sm:$0xf]
        %v1103 = vld [vmem:[%s11 + $0x48] sm:$0xf]
        %v1104 = vld [vmem:[%s11 + $0x4c] sm:$0xf]
        %v1105 = vld [vmem:[%s11 + $0x50] sm:$0xf]
        %v1106 = vld [vmem:[%s11 + $0x54] sm:$0xf]
        %v1107 = vld [vmem:[%s11 + $0x58] sm:$0xf]
        %v1108 = vld [vmem:[%s11 + $0x5c] sm:$0xf]
        %v1109 = vld [vmem:[%s11 + $0x60] sm:$0xf]
        %v1110 = vld [vmem:[%s11 + $0x64] sm:$0xf]
        %v1111 = vld [vmem:[%s11 + $0x68] sm:$0xf]
        %v1112 = vld [vmem:[%s11 + $0x6c] sm:$0xf]
        %v1113 = vld [vmem:[%s11 + $0x70] sm:$0xf]
        %v1114 = vld [vmem:[%s11 + $0x74] sm:$0xf]
        %v1115 = vld [vmem:[%s11 + $0x78] sm:$0xf]
        %v1116 = vld [vmem:[%s11 + $0x7c] sm:$0xf]
        %v1117 = vld [vmem:[%s11 + $0x80] sm:$0xf]
        %v1118 = vld [vmem:[%s11 + $0x84] sm:$0xf]
        %v1119 = vld [vmem:[%s11 + $0x88] sm:$0xf]
        %v1120 = vld [vmem:[%s11 + $0x8c] sm:$0xf]
        %1122 = vset.pattern.permute.xlu0 0
        %1123 = vperm.xlu0 %1122, %v1085
        %v1124 = vpop.permute.xlu0 %1123
        %v1127 = vunpack.c.l.s4 839922192
        %v1128 = vunpack.c.0.s8 %v1127
        %v1129 = vperm.slane %v1124, %v1128
        %1131 = vset.pattern.permute.xlu0 0
        %1132 = vperm.xlu0 %1131, %v1086
        %v1133 = vpop.permute.xlu0 %1132
        %v1136 = vunpack.c.l.s4 839922192
        %v1137 = vunpack.c.0.s8 %v1136
        %v1138 = vperm.slane %v1133, %v1137
        %1140 = vset.pattern.permute.xlu0 0
        %1141 = vperm.xlu0 %1140, %v1087
        %v1142 = vpop.permute.xlu0 %1141
        %v1145 = vunpack.c.l.s4 839922192
        %v1146 = vunpack.c.0.s8 %v1145
        %v1147 = vperm.slane %v1142, %v1146
        %1149 = vset.pattern.permute.xlu0 0
        %1150 = vperm.xlu0 %1149, %v1088
        %v1151 = vpop.permute.xlu0 %1150
        %v1154 = vunpack.c.l.s4 839922192
        %v1155 = vunpack.c.0.s8 %v1154
        %v1156 = vperm.slane %v1151, %v1155
        %1158 = vset.pattern.permute.xlu0 0
        %1159 = vperm.xlu0 %1158, %v1089
        %v1160 = vpop.permute.xlu0 %1159
        %v1163 = vunpack.c.l.s4 839922192
        %v1164 = vunpack.c.0.s8 %v1163
        %v1165 = vperm.slane %v1160, %v1164
        %1167 = vset.pattern.permute.xlu0 0
        %1168 = vperm.xlu0 %1167, %v1090
        %v1169 = vpop.permute.xlu0 %1168
        %v1172 = vunpack.c.l.s4 839922192
        %v1173 = vunpack.c.0.s8 %v1172
        %v1174 = vperm.slane %v1169, %v1173
        %1176 = vset.pattern.permute.xlu0 0
        %1177 = vperm.xlu0 %1176, %v1091
        %v1178 = vpop.permute.xlu0 %1177
        %v1181 = vunpack.c.l.s4 839922192
        %v1182 = vunpack.c.0.s8 %v1181
        %v1183 = vperm.slane %v1178, %v1182
        %1185 = vset.pattern.permute.xlu0 0
        %1186 = vperm.xlu0 %1185, %v1092
        %v1187 = vpop.permute.xlu0 %1186
        %v1190 = vunpack.c.l.s4 839922192
        %v1191 = vunpack.c.0.s8 %v1190
        %v1192 = vperm.slane %v1187, %v1191
        %1194 = vset.pattern.permute.xlu0 0
        %1195 = vperm.xlu0 %1194, %v1093
        %v1196 = vpop.permute.xlu0 %1195
        %v1199 = vunpack.c.l.s4 839922192
        %v1200 = vunpack.c.0.s8 %v1199
        %v1201 = vperm.slane %v1196, %v1200
        %1203 = vset.pattern.permute.xlu0 0
        %1204 = vperm.xlu0 %1203, %v1094
        %v1205 = vpop.permute.xlu0 %1204
        %v1208 = vunpack.c.l.s4 839922192
        %v1209 = vunpack.c.0.s8 %v1208
        %v1210 = vperm.slane %v1205, %v1209
        %1212 = vset.pattern.permute.xlu0 0
        %1213 = vperm.xlu0 %1212, %v1095
        %v1214 = vpop.permute.xlu0 %1213
        %v1217 = vunpack.c.l.s4 839922192
        %v1218 = vunpack.c.0.s8 %v1217
        %v1219 = vperm.slane %v1214, %v1218
        %1221 = vset.pattern.permute.xlu0 0
        %1222 = vperm.xlu0 %1221, %v1096
        %v1223 = vpop.permute.xlu0 %1222
        %v1226 = vunpack.c.l.s4 839922192
        %v1227 = vunpack.c.0.s8 %v1226
        %v1228 = vperm.slane %v1223, %v1227
        %1230 = vset.pattern.permute.xlu0 0
        %1231 = vperm.xlu0 %1230, %v1097
        %v1232 = vpop.permute.xlu0 %1231
        %v1235 = vunpack.c.l.s4 839922192
        %v1236 = vunpack.c.0.s8 %v1235
        %v1237 = vperm.slane %v1232, %v1236
        %1239 = vset.pattern.permute.xlu0 0
        %1240 = vperm.xlu0 %1239, %v1098
        %v1241 = vpop.permute.xlu0 %1240
        %v1244 = vunpack.c.l.s4 839922192
        %v1245 = vunpack.c.0.s8 %v1244
        %v1246 = vperm.slane %v1241, %v1245
        %1248 = vset.pattern.permute.xlu0 0
        %1249 = vperm.xlu0 %1248, %v1099
        %v1250 = vpop.permute.xlu0 %1249
        %v1253 = vunpack.c.l.s4 839922192
        %v1254 = vunpack.c.0.s8 %v1253
        %v1255 = vperm.slane %v1250, %v1254
        %1257 = vset.pattern.permute.xlu0 0
        %1258 = vperm.xlu0 %1257, %v1100
        %v1259 = vpop.permute.xlu0 %1258
        %v1262 = vunpack.c.l.s4 839922192
        %v1263 = vunpack.c.0.s8 %v1262
        %v1264 = vperm.slane %v1259, %v1263
        %1266 = vset.pattern.permute.xlu0 0
        %1267 = vperm.xlu0 %1266, %v1101
        %v1268 = vpop.permute.xlu0 %1267
        %v1271 = vunpack.c.l.s4 839922192
        %v1272 = vunpack.c.0.s8 %v1271
        %v1273 = vperm.slane %v1268, %v1272
        %1275 = vset.pattern.permute.xlu0 0
        %1276 = vperm.xlu0 %1275, %v1102
        %v1277 = vpop.permute.xlu0 %1276
        %v1280 = vunpack.c.l.s4 839922192
        %v1281 = vunpack.c.0.s8 %v1280
        %v1282 = vperm.slane %v1277, %v1281
        %1284 = vset.pattern.permute.xlu0 0
        %1285 = vperm.xlu0 %1284, %v1103
        %v1286 = vpop.permute.xlu0 %1285
        %v1289 = vunpack.c.l.s4 839922192
        %v1290 = vunpack.c.0.s8 %v1289
        %v1291 = vperm.slane %v1286, %v1290
        %1293 = vset.pattern.permute.xlu0 0
        %1294 = vperm.xlu0 %1293, %v1104
        %v1295 = vpop.permute.xlu0 %1294
        %v1298 = vunpack.c.l.s4 839922192
        %v1299 = vunpack.c.0.s8 %v1298
        %v1300 = vperm.slane %v1295, %v1299
        %1302 = vset.pattern.permute.xlu0 0
        %1303 = vperm.xlu0 %1302, %v1105
        %v1304 = vpop.permute.xlu0 %1303
        %v1307 = vunpack.c.l.s4 839922192
        %v1308 = vunpack.c.0.s8 %v1307
        %v1309 = vperm.slane %v1304, %v1308
        %1311 = vset.pattern.permute.xlu0 0
        %1312 = vperm.xlu0 %1311, %v1106
        %v1313 = vpop.permute.xlu0 %1312
        %v1316 = vunpack.c.l.s4 839922192
        %v1317 = vunpack.c.0.s8 %v1316
        %v1318 = vperm.slane %v1313, %v1317
        %1320 = vset.pattern.permute.xlu0 0
        %1321 = vperm.xlu0 %1320, %v1107
        %v1322 = vpop.permute.xlu0 %1321
        %v1325 = vunpack.c.l.s4 839922192
        %v1326 = vunpack.c.0.s8 %v1325
        %v1327 = vperm.slane %v1322, %v1326
        %1329 = vset.pattern.permute.xlu0 0
        %1330 = vperm.xlu0 %1329, %v1108
        %v1331 = vpop.permute.xlu0 %1330
        %v1334 = vunpack.c.l.s4 839922192
        %v1335 = vunpack.c.0.s8 %v1334
        %v1336 = vperm.slane %v1331, %v1335
        %1338 = vset.pattern.permute.xlu0 0
        %1339 = vperm.xlu0 %1338, %v1109
        %v1340 = vpop.permute.xlu0 %1339
        %v1343 = vunpack.c.l.s4 839922192
        %v1344 = vunpack.c.0.s8 %v1343
        %v1345 = vperm.slane %v1340, %v1344
        %1347 = vset.pattern.permute.xlu0 0
        %1348 = vperm.xlu0 %1347, %v1110
        %v1349 = vpop.permute.xlu0 %1348
        %v1352 = vunpack.c.l.s4 839922192
        %v1353 = vunpack.c.0.s8 %v1352
        %v1354 = vperm.slane %v1349, %v1353
        %1356 = vset.pattern.permute.xlu0 0
        %1357 = vperm.xlu0 %1356, %v1111
        %v1358 = vpop.permute.xlu0 %1357
        %v1361 = vunpack.c.l.s4 839922192
        %v1362 = vunpack.c.0.s8 %v1361
        %v1363 = vperm.slane %v1358, %v1362
        %1365 = vset.pattern.permute.xlu0 0
        %1366 = vperm.xlu0 %1365, %v1112
        %v1367 = vpop.permute.xlu0 %1366
        %v1370 = vunpack.c.l.s4 839922192
        %v1371 = vunpack.c.0.s8 %v1370
        %v1372 = vperm.slane %v1367, %v1371
        %1374 = vset.pattern.permute.xlu0 0
        %1375 = vperm.xlu0 %1374, %v1113
        %v1376 = vpop.permute.xlu0 %1375
        %v1379 = vunpack.c.l.s4 839922192
        %v1380 = vunpack.c.0.s8 %v1379
        %v1381 = vperm.slane %v1376, %v1380
        %1383 = vset.pattern.permute.xlu0 0
        %1384 = vperm.xlu0 %1383, %v1114
        %v1385 = vpop.permute.xlu0 %1384
        %v1388 = vunpack.c.l.s4 839922192
        %v1389 = vunpack.c.0.s8 %v1388
        %v1390 = vperm.slane %v1385, %v1389
        %1392 = vset.pattern.permute.xlu0 0
        %1393 = vperm.xlu0 %1392, %v1115
        %v1394 = vpop.permute.xlu0 %1393
        %v1397 = vunpack.c.l.s4 839922192
        %v1398 = vunpack.c.0.s8 %v1397
        %v1399 = vperm.slane %v1394, %v1398
        %1401 = vset.pattern.permute.xlu0 0
        %1402 = vperm.xlu0 %1401, %v1116
        %v1403 = vpop.permute.xlu0 %1402
        %v1406 = vunpack.c.l.s4 839922192
        %v1407 = vunpack.c.0.s8 %v1406
        %v1408 = vperm.slane %v1403, %v1407
        %1410 = vset.pattern.permute.xlu0 0
        %1411 = vperm.xlu0 %1410, %v1117
        %v1412 = vpop.permute.xlu0 %1411
        %v1415 = vunpack.c.l.s4 839922192
        %v1416 = vunpack.c.0.s8 %v1415
        %v1417 = vperm.slane %v1412, %v1416
        %1419 = vset.pattern.permute.xlu0 0
        %1420 = vperm.xlu0 %1419, %v1118
        %v1421 = vpop.permute.xlu0 %1420
        %v1424 = vunpack.c.l.s4 839922192
        %v1425 = vunpack.c.0.s8 %v1424
        %v1426 = vperm.slane %v1421, %v1425
        %1428 = vset.pattern.permute.xlu0 0
        %1429 = vperm.xlu0 %1428, %v1119
        %v1430 = vpop.permute.xlu0 %1429
        %v1433 = vunpack.c.l.s4 839922192
        %v1434 = vunpack.c.0.s8 %v1433
        %v1435 = vperm.slane %v1430, %v1434
        %1437 = vset.pattern.permute.xlu0 0
        %1438 = vperm.xlu0 %1437, %v1120
        %v1439 = vpop.permute.xlu0 %1438
        %v1442 = vunpack.c.l.s4 839922192
        %v1443 = vunpack.c.0.s8 %v1442
        %v1444 = vperm.slane %v1439, %v1443
        %v1445 = vunpack.c.l.bf16 %v1084
        %v1446 = vunpack.c.h.bf16 %v1084
        %v1447 = vunpack.c.l.bf16 %v942
        %v1448 = vunpack.c.h.bf16 %v942
        %v1449 = vunpack.c.l.bf16 %v950
        %v1450 = vunpack.c.h.bf16 %v950
        %v1451 = vunpack.c.l.bf16 %v958
        %v1452 = vunpack.c.h.bf16 %v958
        %v1453 = vunpack.c.l.bf16 %v966
        %v1454 = vunpack.c.h.bf16 %v966
        %v1455 = vunpack.c.l.bf16 %v974
        %v1456 = vunpack.c.h.bf16 %v974
        %v1457 = vunpack.c.l.bf16 %v982
        %v1458 = vunpack.c.h.bf16 %v982
        %v1459 = vunpack.c.l.bf16 %v990
        %v1460 = vunpack.c.h.bf16 %v990
        %v1461 = vunpack.c.l.bf16 %v998
        %v1462 = vunpack.c.h.bf16 %v998
        %v1463 = vunpack.c.l.bf16 %v1006
        %v1464 = vunpack.c.h.bf16 %v1006
        %v1465 = vunpack.c.l.bf16 %v1014
        %v1466 = vunpack.c.h.bf16 %v1014
        %v1467 = vunpack.c.l.bf16 %v1022
        %v1468 = vunpack.c.h.bf16 %v1022
        %v1469 = vunpack.c.l.bf16 %v1030
        %v1470 = vunpack.c.h.bf16 %v1030
        %v1471 = vunpack.c.l.bf16 %v1038
        %v1472 = vunpack.c.h.bf16 %v1038
        %v1473 = vunpack.c.l.bf16 %v1046
        %v1474 = vunpack.c.h.bf16 %v1046
        %v1475 = vunpack.c.l.bf16 %v1054
        %v1476 = vunpack.c.h.bf16 %v1054
        %v1477 = vunpack.c.l.bf16 %v1062
        %v1478 = vunpack.c.h.bf16 %v1062
        %v1479 = vunpack.c.l.bf16 %v1063
        %v1480 = vunpack.c.h.bf16 %v1063
        %v1481 = vunpack.c.l.bf16 %v1129
        %v1482 = vunpack.c.l.bf16 %v1138
        %v1483 = vunpack.c.l.bf16 %v1147
        %v1484 = vunpack.c.l.bf16 %v1156
        %v1485 = vunpack.c.l.bf16 %v1165
        %v1486 = vunpack.c.l.bf16 %v1174
        %v1487 = vunpack.c.l.bf16 %v1183
        %v1488 = vunpack.c.l.bf16 %v1192
        %v1489 = vunpack.c.l.bf16 %v1201
        %v1490 = vunpack.c.l.bf16 %v1210
        %v1491 = vunpack.c.l.bf16 %v1219
        %v1492 = vunpack.c.l.bf16 %v1228
        %v1493 = vunpack.c.l.bf16 %v1237
        %v1494 = vunpack.c.l.bf16 %v1246
        %v1495 = vunpack.c.l.bf16 %v1255
        %v1496 = vunpack.c.l.bf16 %v1264
        %v1497 = vunpack.c.l.bf16 %v1273
        %v1498 = vunpack.c.l.bf16 %v1282
        %v1499 = vunpack.c.l.bf16 %v1291
        %v1500 = vunpack.c.l.bf16 %v1300
        %v1501 = vunpack.c.l.bf16 %v1309
        %v1502 = vunpack.c.l.bf16 %v1318
        %v1503 = vunpack.c.l.bf16 %v1327
        %v1504 = vunpack.c.l.bf16 %v1336
        %v1505 = vunpack.c.l.bf16 %v1345
        %v1506 = vunpack.c.l.bf16 %v1354
        %v1507 = vunpack.c.l.bf16 %v1363
        %v1508 = vunpack.c.l.bf16 %v1372
        %v1509 = vunpack.c.l.bf16 %v1381
        %v1510 = vunpack.c.l.bf16 %v1390
        %v1511 = vunpack.c.l.bf16 %v1399
        %v1512 = vunpack.c.l.bf16 %v1408
        %v1513 = vunpack.c.l.bf16 %v1417
        %v1514 = vunpack.c.l.bf16 %v1426
        %v1515 = vunpack.c.l.bf16 %v1435
        %v1516 = vunpack.c.l.bf16 %v1444
        %v1517 = vmul.f32 %v1445, %v1481
        %v1518 = vmul.f32 %v1446, %v1482
        %v1519 = vmul.f32 %v1447, %v1483
        %v1520 = vmul.f32 %v1448, %v1484
        %v1521 = vmul.f32 %v1449, %v1485
        %v1522 = vmul.f32 %v1450, %v1486
        %v1523 = vmul.f32 %v1451, %v1487
        %v1524 = vmul.f32 %v1452, %v1488
        %v1525 = vmul.f32 %v1453, %v1489
        %v1526 = vmul.f32 %v1454, %v1490
        %v1527 = vmul.f32 %v1455, %v1491
        %v1528 = vmul.f32 %v1456, %v1492
        %v1529 = vmul.f32 %v1457, %v1493
        %v1530 = vmul.f32 %v1458, %v1494
        %v1531 = vmul.f32 %v1459, %v1495
        %v1532 = vmul.f32 %v1460, %v1496
        %v1533 = vmul.f32 %v1461, %v1497
        %v1534 = vmul.f32 %v1462, %v1498
        %v1535 = vmul.f32 %v1463, %v1499
        %v1536 = vmul.f32 %v1464, %v1500
        %v1537 = vmul.f32 %v1465, %v1501
        %v1538 = vmul.f32 %v1466, %v1502
        %v1539 = vmul.f32 %v1467, %v1503
        %v1540 = vmul.f32 %v1468, %v1504
        %v1541 = vmul.f32 %v1469, %v1505
        %v1542 = vmul.f32 %v1470, %v1506
        %v1543 = vmul.f32 %v1471, %v1507
        %v1544 = vmul.f32 %v1472, %v1508
        %v1545 = vmul.f32 %v1473, %v1509
        %v1546 = vmul.f32 %v1474, %v1510
        %v1547 = vmul.f32 %v1475, %v1511
        %v1548 = vmul.f32 %v1476, %v1512
        %v1549 = vmul.f32 %v1477, %v1513
        %v1550 = vmul.f32 %v1478, %v1514
        %v1551 = vmul.f32 %v1479, %v1515
        %v1552 = vmul.f32 %v1480, %v1516
        %v1553 = vpack.c.bf16 %v1517, %v1517
        %v1554 = vpack.c.bf16 %v1518, %v1518
        %v1555 = vpack.c.bf16 %v1519, %v1519
        %v1556 = vpack.c.bf16 %v1520, %v1520
        %v1557 = vpack.c.bf16 %v1521, %v1521
        %v1558 = vpack.c.bf16 %v1522, %v1522
        %v1559 = vpack.c.bf16 %v1523, %v1523
        %v1560 = vpack.c.bf16 %v1524, %v1524
        %v1561 = vpack.c.bf16 %v1525, %v1525
        %v1562 = vpack.c.bf16 %v1526, %v1526
        %v1563 = vpack.c.bf16 %v1527, %v1527
        %v1564 = vpack.c.bf16 %v1528, %v1528
        %v1565 = vpack.c.bf16 %v1529, %v1529
        %v1566 = vpack.c.bf16 %v1530, %v1530
        %v1567 = vpack.c.bf16 %v1531, %v1531
        %v1568 = vpack.c.bf16 %v1532, %v1532
        %v1569 = vpack.c.bf16 %v1533, %v1533
        %v1570 = vpack.c.bf16 %v1534, %v1534
        %v1571 = vpack.c.bf16 %v1535, %v1535
        %v1572 = vpack.c.bf16 %v1536, %v1536
        %v1573 = vpack.c.bf16 %v1537, %v1537
        %v1574 = vpack.c.bf16 %v1538, %v1538
        %v1575 = vpack.c.bf16 %v1539, %v1539
        %v1576 = vpack.c.bf16 %v1540, %v1540
        %v1577 = vpack.c.bf16 %v1541, %v1541
        %v1578 = vpack.c.bf16 %v1542, %v1542
        %v1579 = vpack.c.bf16 %v1543, %v1543
        %v1580 = vpack.c.bf16 %v1544, %v1544
        %v1581 = vpack.c.bf16 %v1545, %v1545
        %v1582 = vpack.c.bf16 %v1546, %v1546
        %v1583 = vpack.c.bf16 %v1547, %v1547
        %v1584 = vpack.c.bf16 %v1548, %v1548
        %v1585 = vpack.c.bf16 %v1549, %v1549
        %v1586 = vpack.c.bf16 %v1550, %v1550
        %v1587 = vpack.c.bf16 %v1551, %v1551
        %v1588 = vpack.c.bf16 %v1552, %v1552
        %vm1589 = vsmask.f32 7424
        %v1590 = vrot.slane %v932, 1
        %v1591 = vor.u32 %v929, %v1590
        %v1592 = vrot.slane %v939, 1
        %v1593 = vsel %vm1589, %v1591, %v1592
        %v1594 = vor.u32 %v936, %v1592
        %v1595 = vrot.slane %v947, 1
        %v1596 = vsel %vm1589, %v1594, %v1595
        %v1597 = vor.u32 %v944, %v1595
        %v1598 = vrot.slane %v955, 1
        %v1599 = vsel %vm1589, %v1597, %v1598
        %v1600 = vor.u32 %v952, %v1598
        %v1601 = vrot.slane %v963, 1
        %v1602 = vsel %vm1589, %v1600, %v1601
        %v1603 = vor.u32 %v960, %v1601
        %v1604 = vrot.slane %v971, 1
        %v1605 = vsel %vm1589, %v1603, %v1604
        %v1606 = vor.u32 %v968, %v1604
        %v1607 = vrot.slane %v979, 1
        %v1608 = vsel %vm1589, %v1606, %v1607
        %v1609 = vor.u32 %v976, %v1607
        %v1610 = vrot.slane %v987, 1
        %v1611 = vsel %vm1589, %v1609, %v1610
        %v1612 = vor.u32 %v984, %v1610
        %v1613 = vrot.slane %v995, 1
        %v1614 = vsel %vm1589, %v1612, %v1613
        %v1615 = vor.u32 %v992, %v1613
        %v1616 = vrot.slane %v1003, 1
        %v1617 = vsel %vm1589, %v1615, %v1616
        %v1618 = vor.u32 %v1000, %v1616
        %v1619 = vrot.slane %v1011, 1
        %v1620 = vsel %vm1589, %v1618, %v1619
        %v1621 = vor.u32 %v1008, %v1619
        %v1622 = vrot.slane %v1019, 1
        %v1623 = vsel %vm1589, %v1621, %v1622
        %v1624 = vor.u32 %v1016, %v1622
        %v1625 = vrot.slane %v1027, 1
        %v1626 = vsel %vm1589, %v1624, %v1625
        %v1627 = vor.u32 %v1024, %v1625
        %v1628 = vrot.slane %v1035, 1
        %v1629 = vsel %vm1589, %v1627, %v1628
        %v1630 = vor.u32 %v1032, %v1628
        %v1631 = vrot.slane %v1043, 1
        %v1632 = vsel %vm1589, %v1630, %v1631
        %v1633 = vor.u32 %v1040, %v1631
        %v1634 = vrot.slane %v1051, 1
        %v1635 = vsel %vm1589, %v1633, %v1634
        %v1636 = vor.u32 %v1048, %v1634
        %v1637 = vrot.slane %v1059, 1
        %v1638 = vsel %vm1589, %v1636, %v1637
        %v1639 = vor.u32 %v1056, %v1637
        %v1640 = vsel %vm1589, %v1639, %v1590
        %vm1659 = vcmask 1047552
        %vm1660 = vmand %vm1659, %vm1589
        %v1661 = vsel %vm1660, %v1591, 0
        %v1662 = vld [vmem:[%s12] sm:$0xf]
        %v1663 = vld [vmem:[%s12 + $0x4] sm:$0xf]
        %v1664 = vld [vmem:[%s12 + $0x8] sm:$0xf]
        %v1665 = vld [vmem:[%s12 + $0xc] sm:$0xf]
        %v1666 = vld [vmem:[%s12 + $0x10] sm:$0xf]
        %v1667 = vld [vmem:[%s12 + $0x14] sm:$0xf]
        %v1668 = vld [vmem:[%s12 + $0x18] sm:$0xf]
        %v1669 = vld [vmem:[%s12 + $0x1c] sm:$0xf]
        %v1670 = vld [vmem:[%s12 + $0x20] sm:$0xf]
        %v1671 = vld [vmem:[%s12 + $0x24] sm:$0xf]
        %v1672 = vld [vmem:[%s12 + $0x28] sm:$0xf]
        %v1673 = vld [vmem:[%s12 + $0x2c] sm:$0xf]
        %v1674 = vld [vmem:[%s12 + $0x30] sm:$0xf]
        %v1675 = vld [vmem:[%s12 + $0x34] sm:$0xf]
        %v1676 = vld [vmem:[%s12 + $0x38] sm:$0xf]
        %v1677 = vld [vmem:[%s12 + $0x3c] sm:$0xf]
        %v1678 = vld [vmem:[%s12 + $0x40] sm:$0xf]
        %v1679 = vld [vmem:[%s12 + $0x44] sm:$0xf]
        %v1680 = vld [vmem:[%s12 + $0x48] sm:$0xf]
        %v1681 = vld [vmem:[%s12 + $0x4c] sm:$0xf]
        %v1682 = vld [vmem:[%s12 + $0x50] sm:$0xf]
        %v1683 = vld [vmem:[%s12 + $0x54] sm:$0xf]
        %v1684 = vld [vmem:[%s12 + $0x58] sm:$0xf]
        %v1685 = vld [vmem:[%s12 + $0x5c] sm:$0xf]
        %v1686 = vld [vmem:[%s12 + $0x60] sm:$0xf]
        %v1687 = vld [vmem:[%s12 + $0x64] sm:$0xf]
        %v1688 = vld [vmem:[%s12 + $0x68] sm:$0xf]
        %v1689 = vld [vmem:[%s12 + $0x6c] sm:$0xf]
        %v1690 = vld [vmem:[%s12 + $0x70] sm:$0xf]
        %v1691 = vld [vmem:[%s12 + $0x74] sm:$0xf]
        %v1692 = vld [vmem:[%s12 + $0x78] sm:$0xf]
        %v1693 = vld [vmem:[%s12 + $0x7c] sm:$0xf]
        %v1694 = vld [vmem:[%s12 + $0x80] sm:$0xf]
        %v1695 = vld [vmem:[%s12 + $0x84] sm:$0xf]
        %v1696 = vld [vmem:[%s12 + $0x88] sm:$0xf]
        %v1697 = vld [vmem:[%s12 + $0x8c] sm:$0xf]
        %1699 = vset.pattern.permute.xlu0 0
        %1700 = vperm.xlu0 %1699, %v1662
        %v1701 = vpop.permute.xlu0 %1700
        %v1704 = vunpack.c.l.s4 839922192
        %v1705 = vunpack.c.0.s8 %v1704
        %v1706 = vperm.slane %v1701, %v1705
        %1708 = vset.pattern.permute.xlu0 0
        %1709 = vperm.xlu0 %1708, %v1663
        %v1710 = vpop.permute.xlu0 %1709
        %v1713 = vunpack.c.l.s4 839922192
        %v1714 = vunpack.c.0.s8 %v1713
        %v1715 = vperm.slane %v1710, %v1714
        %1717 = vset.pattern.permute.xlu0 0
        %1718 = vperm.xlu0 %1717, %v1664
        %v1719 = vpop.permute.xlu0 %1718
        %v1722 = vunpack.c.l.s4 839922192
        %v1723 = vunpack.c.0.s8 %v1722
        %v1724 = vperm.slane %v1719, %v1723
        %1726 = vset.pattern.permute.xlu0 0
        %1727 = vperm.xlu0 %1726, %v1665
        %v1728 = vpop.permute.xlu0 %1727
        %v1731 = vunpack.c.l.s4 839922192
        %v1732 = vunpack.c.0.s8 %v1731
        %v1733 = vperm.slane %v1728, %v1732
        %1735 = vset.pattern.permute.xlu0 0
        %1736 = vperm.xlu0 %1735, %v1666
        %v1737 = vpop.permute.xlu0 %1736
        %v1740 = vunpack.c.l.s4 839922192
        %v1741 = vunpack.c.0.s8 %v1740
        %v1742 = vperm.slane %v1737, %v1741
        %1744 = vset.pattern.permute.xlu0 0
        %1745 = vperm.xlu0 %1744, %v1667
        %v1746 = vpop.permute.xlu0 %1745
        %v1749 = vunpack.c.l.s4 839922192
        %v1750 = vunpack.c.0.s8 %v1749
        %v1751 = vperm.slane %v1746, %v1750
        %1753 = vset.pattern.permute.xlu0 0
        %1754 = vperm.xlu0 %1753, %v1668
        %v1755 = vpop.permute.xlu0 %1754
        %v1758 = vunpack.c.l.s4 839922192
        %v1759 = vunpack.c.0.s8 %v1758
        %v1760 = vperm.slane %v1755, %v1759
        %1762 = vset.pattern.permute.xlu0 0
        %1763 = vperm.xlu0 %1762, %v1669
        %v1764 = vpop.permute.xlu0 %1763
        %v1767 = vunpack.c.l.s4 839922192
        %v1768 = vunpack.c.0.s8 %v1767
        %v1769 = vperm.slane %v1764, %v1768
        %1771 = vset.pattern.permute.xlu0 0
        %1772 = vperm.xlu0 %1771, %v1670
        %v1773 = vpop.permute.xlu0 %1772
        %v1776 = vunpack.c.l.s4 839922192
        %v1777 = vunpack.c.0.s8 %v1776
        %v1778 = vperm.slane %v1773, %v1777
        %1780 = vset.pattern.permute.xlu0 0
        %1781 = vperm.xlu0 %1780, %v1671
        %v1782 = vpop.permute.xlu0 %1781
        %v1785 = vunpack.c.l.s4 839922192
        %v1786 = vunpack.c.0.s8 %v1785
        %v1787 = vperm.slane %v1782, %v1786
        %1789 = vset.pattern.permute.xlu0 0
        %1790 = vperm.xlu0 %1789, %v1672
        %v1791 = vpop.permute.xlu0 %1790
        %v1794 = vunpack.c.l.s4 839922192
        %v1795 = vunpack.c.0.s8 %v1794
        %v1796 = vperm.slane %v1791, %v1795
        %1798 = vset.pattern.permute.xlu0 0
        %1799 = vperm.xlu0 %1798, %v1673
        %v1800 = vpop.permute.xlu0 %1799
        %v1803 = vunpack.c.l.s4 839922192
        %v1804 = vunpack.c.0.s8 %v1803
        %v1805 = vperm.slane %v1800, %v1804
        %1807 = vset.pattern.permute.xlu0 0
        %1808 = vperm.xlu0 %1807, %v1674
        %v1809 = vpop.permute.xlu0 %1808
        %v1812 = vunpack.c.l.s4 839922192
        %v1813 = vunpack.c.0.s8 %v1812
        %v1814 = vperm.slane %v1809, %v1813
        %1816 = vset.pattern.permute.xlu0 0
        %1817 = vperm.xlu0 %1816, %v1675
        %v1818 = vpop.permute.xlu0 %1817
        %v1821 = vunpack.c.l.s4 839922192
        %v1822 = vunpack.c.0.s8 %v1821
        %v1823 = vperm.slane %v1818, %v1822
        %1825 = vset.pattern.permute.xlu0 0
        %1826 = vperm.xlu0 %1825, %v1676
        %v1827 = vpop.permute.xlu0 %1826
        %v1830 = vunpack.c.l.s4 839922192
        %v1831 = vunpack.c.0.s8 %v1830
        %v1832 = vperm.slane %v1827, %v1831
        %1834 = vset.pattern.permute.xlu0 0
        %1835 = vperm.xlu0 %1834, %v1677
        %v1836 = vpop.permute.xlu0 %1835
        %v1839 = vunpack.c.l.s4 839922192
        %v1840 = vunpack.c.0.s8 %v1839
        %v1841 = vperm.slane %v1836, %v1840
        %1843 = vset.pattern.permute.xlu0 0
        %1844 = vperm.xlu0 %1843, %v1678
        %v1845 = vpop.permute.xlu0 %1844
        %v1848 = vunpack.c.l.s4 839922192
        %v1849 = vunpack.c.0.s8 %v1848
        %v1850 = vperm.slane %v1845, %v1849
        %1852 = vset.pattern.permute.xlu0 0
        %1853 = vperm.xlu0 %1852, %v1679
        %v1854 = vpop.permute.xlu0 %1853
        %v1857 = vunpack.c.l.s4 839922192
        %v1858 = vunpack.c.0.s8 %v1857
        %v1859 = vperm.slane %v1854, %v1858
        %1861 = vset.pattern.permute.xlu0 0
        %1862 = vperm.xlu0 %1861, %v1680
        %v1863 = vpop.permute.xlu0 %1862
        %v1866 = vunpack.c.l.s4 839922192
        %v1867 = vunpack.c.0.s8 %v1866
        %v1868 = vperm.slane %v1863, %v1867
        %1870 = vset.pattern.permute.xlu0 0
        %1871 = vperm.xlu0 %1870, %v1681
        %v1872 = vpop.permute.xlu0 %1871
        %v1875 = vunpack.c.l.s4 839922192
        %v1876 = vunpack.c.0.s8 %v1875
        %v1877 = vperm.slane %v1872, %v1876
        %1879 = vset.pattern.permute.xlu0 0
        %1880 = vperm.xlu0 %1879, %v1682
        %v1881 = vpop.permute.xlu0 %1880
        %v1884 = vunpack.c.l.s4 839922192
        %v1885 = vunpack.c.0.s8 %v1884
        %v1886 = vperm.slane %v1881, %v1885
        %1888 = vset.pattern.permute.xlu0 0
        %1889 = vperm.xlu0 %1888, %v1683
        %v1890 = vpop.permute.xlu0 %1889
        %v1893 = vunpack.c.l.s4 839922192
        %v1894 = vunpack.c.0.s8 %v1893
        %v1895 = vperm.slane %v1890, %v1894
        %1897 = vset.pattern.permute.xlu0 0
        %1898 = vperm.xlu0 %1897, %v1684
        %v1899 = vpop.permute.xlu0 %1898
        %v1902 = vunpack.c.l.s4 839922192
        %v1903 = vunpack.c.0.s8 %v1902
        %v1904 = vperm.slane %v1899, %v1903
        %1906 = vset.pattern.permute.xlu0 0
        %1907 = vperm.xlu0 %1906, %v1685
        %v1908 = vpop.permute.xlu0 %1907
        %v1911 = vunpack.c.l.s4 839922192
        %v1912 = vunpack.c.0.s8 %v1911
        %v1913 = vperm.slane %v1908, %v1912
        %1915 = vset.pattern.permute.xlu0 0
        %1916 = vperm.xlu0 %1915, %v1686
        %v1917 = vpop.permute.xlu0 %1916
        %v1920 = vunpack.c.l.s4 839922192
        %v1921 = vunpack.c.0.s8 %v1920
        %v1922 = vperm.slane %v1917, %v1921
        %1924 = vset.pattern.permute.xlu0 0
        %1925 = vperm.xlu0 %1924, %v1687
        %v1926 = vpop.permute.xlu0 %1925
        %v1929 = vunpack.c.l.s4 839922192
        %v1930 = vunpack.c.0.s8 %v1929
        %v1931 = vperm.slane %v1926, %v1930
        %1933 = vset.pattern.permute.xlu0 0
        %1934 = vperm.xlu0 %1933, %v1688
        %v1935 = vpop.permute.xlu0 %1934
        %v1938 = vunpack.c.l.s4 839922192
        %v1939 = vunpack.c.0.s8 %v1938
        %v1940 = vperm.slane %v1935, %v1939
        %1942 = vset.pattern.permute.xlu0 0
        %1943 = vperm.xlu0 %1942, %v1689
        %v1944 = vpop.permute.xlu0 %1943
        %v1947 = vunpack.c.l.s4 839922192
        %v1948 = vunpack.c.0.s8 %v1947
        %v1949 = vperm.slane %v1944, %v1948
        %1951 = vset.pattern.permute.xlu0 0
        %1952 = vperm.xlu0 %1951, %v1690
        %v1953 = vpop.permute.xlu0 %1952
        %v1956 = vunpack.c.l.s4 839922192
        %v1957 = vunpack.c.0.s8 %v1956
        %v1958 = vperm.slane %v1953, %v1957
        %1960 = vset.pattern.permute.xlu0 0
        %1961 = vperm.xlu0 %1960, %v1691
        %v1962 = vpop.permute.xlu0 %1961
        %v1965 = vunpack.c.l.s4 839922192
        %v1966 = vunpack.c.0.s8 %v1965
        %v1967 = vperm.slane %v1962, %v1966
        %1969 = vset.pattern.permute.xlu0 0
        %1970 = vperm.xlu0 %1969, %v1692
        %v1971 = vpop.permute.xlu0 %1970
        %v1974 = vunpack.c.l.s4 839922192
        %v1975 = vunpack.c.0.s8 %v1974
        %v1976 = vperm.slane %v1971, %v1975
        %1978 = vset.pattern.permute.xlu0 0
        %1979 = vperm.xlu0 %1978, %v1693
        %v1980 = vpop.permute.xlu0 %1979
        %v1983 = vunpack.c.l.s4 839922192
        %v1984 = vunpack.c.0.s8 %v1983
        %v1985 = vperm.slane %v1980, %v1984
        %1987 = vset.pattern.permute.xlu0 0
        %1988 = vperm.xlu0 %1987, %v1694
        %v1989 = vpop.permute.xlu0 %1988
        %v1992 = vunpack.c.l.s4 839922192
        %v1993 = vunpack.c.0.s8 %v1992
        %v1994 = vperm.slane %v1989, %v1993
        %1996 = vset.pattern.permute.xlu0 0
        %1997 = vperm.xlu0 %1996, %v1695
        %v1998 = vpop.permute.xlu0 %1997
        %v2001 = vunpack.c.l.s4 839922192
        %v2002 = vunpack.c.0.s8 %v2001
        %v2003 = vperm.slane %v1998, %v2002
        %2005 = vset.pattern.permute.xlu0 0
        %2006 = vperm.xlu0 %2005, %v1696
        %v2007 = vpop.permute.xlu0 %2006
        %v2010 = vunpack.c.l.s4 839922192
        %v2011 = vunpack.c.0.s8 %v2010
        %v2012 = vperm.slane %v2007, %v2011
        %2014 = vset.pattern.permute.xlu0 0
        %2015 = vperm.xlu0 %2014, %v1697
        %v2016 = vpop.permute.xlu0 %2015
        %v2019 = vunpack.c.l.s4 839922192
        %v2020 = vunpack.c.0.s8 %v2019
        %v2021 = vperm.slane %v2016, %v2020
        %v2022 = vunpack.c.l.bf16 %v1593
        %v2023 = vunpack.c.h.bf16 %v1593
        %v2024 = vunpack.c.l.bf16 %v1596
        %v2025 = vunpack.c.h.bf16 %v1596
        %v2026 = vunpack.c.l.bf16 %v1599
        %v2027 = vunpack.c.h.bf16 %v1599
        %v2028 = vunpack.c.l.bf16 %v1602
        %v2029 = vunpack.c.h.bf16 %v1602
        %v2030 = vunpack.c.l.bf16 %v1605
        %v2031 = vunpack.c.h.bf16 %v1605
        %v2032 = vunpack.c.l.bf16 %v1608
        %v2033 = vunpack.c.h.bf16 %v1608
        %v2034 = vunpack.c.l.bf16 %v1611
        %v2035 = vunpack.c.h.bf16 %v1611
        %v2036 = vunpack.c.l.bf16 %v1614
        %v2037 = vunpack.c.h.bf16 %v1614
        %v2038 = vunpack.c.l.bf16 %v1617
        %v2039 = vunpack.c.h.bf16 %v1617
        %v2040 = vunpack.c.l.bf16 %v1620
        %v2041 = vunpack.c.h.bf16 %v1620
        %v2042 = vunpack.c.l.bf16 %v1623
        %v2043 = vunpack.c.h.bf16 %v1623
        %v2044 = vunpack.c.l.bf16 %v1626
        %v2045 = vunpack.c.h.bf16 %v1626
        %v2046 = vunpack.c.l.bf16 %v1629
        %v2047 = vunpack.c.h.bf16 %v1629
        %v2048 = vunpack.c.l.bf16 %v1632
        %v2049 = vunpack.c.h.bf16 %v1632
        %v2050 = vunpack.c.l.bf16 %v1635
        %v2051 = vunpack.c.h.bf16 %v1635
        %v2052 = vunpack.c.l.bf16 %v1638
        %v2053 = vunpack.c.h.bf16 %v1638
        %v2054 = vunpack.c.l.bf16 %v1640
        %v2055 = vunpack.c.h.bf16 %v1640
        %v2056 = vunpack.c.l.bf16 %v1661
        %v2057 = vunpack.c.h.bf16 %v1661
        %v2058 = vunpack.c.l.bf16 %v1706
        %v2059 = vunpack.c.l.bf16 %v1715
        %v2060 = vunpack.c.l.bf16 %v1724
        %v2061 = vunpack.c.l.bf16 %v1733
        %v2062 = vunpack.c.l.bf16 %v1742
        %v2063 = vunpack.c.l.bf16 %v1751
        %v2064 = vunpack.c.l.bf16 %v1760
        %v2065 = vunpack.c.l.bf16 %v1769
        %v2066 = vunpack.c.l.bf16 %v1778
        %v2067 = vunpack.c.l.bf16 %v1787
        %v2068 = vunpack.c.l.bf16 %v1796
        %v2069 = vunpack.c.l.bf16 %v1805
        %v2070 = vunpack.c.l.bf16 %v1814
        %v2071 = vunpack.c.l.bf16 %v1823
        %v2072 = vunpack.c.l.bf16 %v1832
        %v2073 = vunpack.c.l.bf16 %v1841
        %v2074 = vunpack.c.l.bf16 %v1850
        %v2075 = vunpack.c.l.bf16 %v1859
        %v2076 = vunpack.c.l.bf16 %v1868
        %v2077 = vunpack.c.l.bf16 %v1877
        %v2078 = vunpack.c.l.bf16 %v1886
        %v2079 = vunpack.c.l.bf16 %v1895
        %v2080 = vunpack.c.l.bf16 %v1904
        %v2081 = vunpack.c.l.bf16 %v1913
        %v2082 = vunpack.c.l.bf16 %v1922
        %v2083 = vunpack.c.l.bf16 %v1931
        %v2084 = vunpack.c.l.bf16 %v1940
        %v2085 = vunpack.c.l.bf16 %v1949
        %v2086 = vunpack.c.l.bf16 %v1958
        %v2087 = vunpack.c.l.bf16 %v1967
        %v2088 = vunpack.c.l.bf16 %v1976
        %v2089 = vunpack.c.l.bf16 %v1985
        %v2090 = vunpack.c.l.bf16 %v1994
        %v2091 = vunpack.c.l.bf16 %v2003
        %v2092 = vunpack.c.l.bf16 %v2012
        %v2093 = vunpack.c.l.bf16 %v2021
        %v2094 = vmul.f32 %v2022, %v2058
        %v2095 = vmul.f32 %v2023, %v2059
        %v2096 = vmul.f32 %v2024, %v2060
        %v2097 = vmul.f32 %v2025, %v2061
        %v2098 = vmul.f32 %v2026, %v2062
        %v2099 = vmul.f32 %v2027, %v2063
        %v2100 = vmul.f32 %v2028, %v2064
        %v2101 = vmul.f32 %v2029, %v2065
        %v2102 = vmul.f32 %v2030, %v2066
        %v2103 = vmul.f32 %v2031, %v2067
        %v2104 = vmul.f32 %v2032, %v2068
        %v2105 = vmul.f32 %v2033, %v2069
        %v2106 = vmul.f32 %v2034, %v2070
        %v2107 = vmul.f32 %v2035, %v2071
        %v2108 = vmul.f32 %v2036, %v2072
        %v2109 = vmul.f32 %v2037, %v2073
        %v2110 = vmul.f32 %v2038, %v2074
        %v2111 = vmul.f32 %v2039, %v2075
        %v2112 = vmul.f32 %v2040, %v2076
        %v2113 = vmul.f32 %v2041, %v2077
        %v2114 = vmul.f32 %v2042, %v2078
        %v2115 = vmul.f32 %v2043, %v2079
        %v2116 = vmul.f32 %v2044, %v2080
        %v2117 = vmul.f32 %v2045, %v2081
        %v2118 = vmul.f32 %v2046, %v2082
        %v2119 = vmul.f32 %v2047, %v2083
        %v2120 = vmul.f32 %v2048, %v2084
        %v2121 = vmul.f32 %v2049, %v2085
        %v2122 = vmul.f32 %v2050, %v2086
        %v2123 = vmul.f32 %v2051, %v2087
        %v2124 = vmul.f32 %v2052, %v2088
        %v2125 = vmul.f32 %v2053, %v2089
        %v2126 = vmul.f32 %v2054, %v2090
        %v2127 = vmul.f32 %v2055, %v2091
        %v2128 = vmul.f32 %v2056, %v2092
        %v2129 = vmul.f32 %v2057, %v2093
        %v2130 = vpack.c.bf16 %v2094, %v2094
        %v2131 = vpack.c.bf16 %v2095, %v2095
        %v2132 = vpack.c.bf16 %v2096, %v2096
        %v2133 = vpack.c.bf16 %v2097, %v2097
        %v2134 = vpack.c.bf16 %v2098, %v2098
        %v2135 = vpack.c.bf16 %v2099, %v2099
        %v2136 = vpack.c.bf16 %v2100, %v2100
        %v2137 = vpack.c.bf16 %v2101, %v2101
        %v2138 = vpack.c.bf16 %v2102, %v2102
        %v2139 = vpack.c.bf16 %v2103, %v2103
        %v2140 = vpack.c.bf16 %v2104, %v2104
        %v2141 = vpack.c.bf16 %v2105, %v2105
        %v2142 = vpack.c.bf16 %v2106, %v2106
        %v2143 = vpack.c.bf16 %v2107, %v2107
        %v2144 = vpack.c.bf16 %v2108, %v2108
        %v2145 = vpack.c.bf16 %v2109, %v2109
        %v2146 = vpack.c.bf16 %v2110, %v2110
        %v2147 = vpack.c.bf16 %v2111, %v2111
        %v2148 = vpack.c.bf16 %v2112, %v2112
        %v2149 = vpack.c.bf16 %v2113, %v2113
        %v2150 = vpack.c.bf16 %v2114, %v2114
        %v2151 = vpack.c.bf16 %v2115, %v2115
        %v2152 = vpack.c.bf16 %v2116, %v2116
        %v2153 = vpack.c.bf16 %v2117, %v2117
        %v2154 = vpack.c.bf16 %v2118, %v2118
        %v2155 = vpack.c.bf16 %v2119, %v2119
        %v2156 = vpack.c.bf16 %v2120, %v2120
        %v2157 = vpack.c.bf16 %v2121, %v2121
        %v2158 = vpack.c.bf16 %v2122, %v2122
        %v2159 = vpack.c.bf16 %v2123, %v2123
        %v2160 = vpack.c.bf16 %v2124, %v2124
        %v2161 = vpack.c.bf16 %v2125, %v2125
        %v2162 = vpack.c.bf16 %v2126, %v2126
        %v2163 = vpack.c.bf16 %v2127, %v2127
        %v2164 = vpack.c.bf16 %v2128, %v2128
        %v2165 = vpack.c.bf16 %v2129, %v2129
        %v2198 = vunpack.c.l.b16 %v1553
        %v2199 = vunpack.c.l.b16 %v1554
        %v2200 = vunpack.c.l.b16 %v1555
        %v2201 = vunpack.c.l.b16 %v1556
        %v2202 = vunpack.c.l.b16 %v1557
        %v2203 = vunpack.c.l.b16 %v1558
        %v2204 = vunpack.c.l.b16 %v1559
        %v2205 = vunpack.c.l.b16 %v1560
        %v2206 = vunpack.c.l.b16 %v1561
        %v2207 = vunpack.c.l.b16 %v1562
        %v2208 = vunpack.c.l.b16 %v1563
        %v2209 = vunpack.c.l.b16 %v1564
        %v2210 = vunpack.c.l.b16 %v1565
        %v2211 = vunpack.c.l.b16 %v1566
        %v2212 = vunpack.c.l.b16 %v1567
        %v2213 = vunpack.c.l.b16 %v1568
        %v2214 = vunpack.c.l.b16 %v1569
        %v2215 = vunpack.c.l.b16 %v1570
        %v2216 = vunpack.c.l.b16 %v1571
        %v2217 = vunpack.c.l.b16 %v1572
        %v2218 = vunpack.c.l.b16 %v1573
        %v2219 = vunpack.c.l.b16 %v1574
        %v2220 = vunpack.c.l.b16 %v1575
        %v2221 = vunpack.c.l.b16 %v1576
        %v2222 = vunpack.c.l.b16 %v1577
        %v2223 = vunpack.c.l.b16 %v1578
        %v2224 = vunpack.c.l.b16 %v1579
        %v2225 = vunpack.c.l.b16 %v1580
        %v2226 = vunpack.c.l.b16 %v1581
        %v2227 = vunpack.c.l.b16 %v1582
        %v2228 = vunpack.c.l.b16 %v1583
        %v2229 = vunpack.c.l.b16 %v1584
        %v2230 = vpack.c.b16 %v2199, %v2198
        %v2231 = vpack.c.b16 %v2201, %v2200
        %v2232 = vpack.c.b16 %v2203, %v2202
        %v2233 = vpack.c.b16 %v2205, %v2204
        %v2234 = vpack.c.b16 %v2207, %v2206
        %v2235 = vpack.c.b16 %v2209, %v2208
        %v2236 = vpack.c.b16 %v2211, %v2210
        %v2237 = vpack.c.b16 %v2213, %v2212
        %v2238 = vpack.c.b16 %v2215, %v2214
        %v2239 = vpack.c.b16 %v2217, %v2216
        %v2240 = vpack.c.b16 %v2219, %v2218
        %v2241 = vpack.c.b16 %v2221, %v2220
        %v2242 = vpack.c.b16 %v2223, %v2222
        %v2243 = vpack.c.b16 %v2225, %v2224
        %v2244 = vpack.c.b16 %v2227, %v2226
        %v2245 = vpack.c.b16 %v2229, %v2228
        %v2248 = vunpack.c.l.b16 %v1585
        %v2249 = vunpack.c.l.b16 %v1586
        %v2250 = vpack.c.b16 %v2249, %v2248
        %2251 = vrot.lane.b32.xlu0 %v2231, 32
        %v2252 = vpop.permute.xlu0 %2251
        %2253 = vrot.lane.b32.xlu0 %v2232, 32
        %v2254 = vpop.permute.xlu0 %2253
        %2255 = vrot.lane.b32.xlu0 %v2233, 32
        %v2256 = vpop.permute.xlu0 %2255
        %2257 = vrot.lane.b32.xlu0 %v2234, 32
        %v2258 = vpop.permute.xlu0 %2257
        %2259 = vrot.lane.b32.xlu0 %v2235, 32
        %v2260 = vpop.permute.xlu0 %2259
        %2261 = vrot.lane.b32.xlu0 %v2236, 32
        %v2262 = vpop.permute.xlu0 %2261
        %2263 = vrot.lane.b32.xlu0 %v2237, 32
        %v2264 = vpop.permute.xlu0 %2263
        %2265 = vrot.lane.b32.xlu0 %v2238, 32
        %v2266 = vpop.permute.xlu0 %2265
        %2267 = vrot.lane.b32.xlu0 %v2239, 32
        %v2268 = vpop.permute.xlu0 %2267
        %2269 = vrot.lane.b32.xlu0 %v2240, 32
        %v2270 = vpop.permute.xlu0 %2269
        %2271 = vrot.lane.b32.xlu0 %v2241, 32
        %v2272 = vpop.permute.xlu0 %2271
        %2273 = vrot.lane.b32.xlu0 %v2242, 32
        %v2274 = vpop.permute.xlu0 %2273
        %2275 = vrot.lane.b32.xlu0 %v2243, 32
        %v2276 = vpop.permute.xlu0 %2275
        %2277 = vrot.lane.b32.xlu0 %v2244, 32
        %v2278 = vpop.permute.xlu0 %2277
        %2279 = vrot.lane.b32.xlu0 %v2245, 32
        %v2280 = vpop.permute.xlu0 %2279
        %2281 = vrot.lane.b32.xlu0 %v2250, 32
        %v2282 = vpop.permute.xlu0 %2281
        %v2285 = vunpack.c.l.b16 %v1587
        %v2286 = vunpack.c.l.b16 %v1588
        %v2287 = vpack.c.b16 %v2286, %v2285
        %2288 = vrot.lane.b32.xlu0 %v2232, 64
        %v2289 = vpop.permute.xlu0 %2288
        %2290 = vrot.lane.b32.xlu0 %v2233, 64
        %v2291 = vpop.permute.xlu0 %2290
        %2292 = vrot.lane.b32.xlu0 %v2234, 64
        %v2293 = vpop.permute.xlu0 %2292
        %2294 = vrot.lane.b32.xlu0 %v2235, 64
        %v2295 = vpop.permute.xlu0 %2294
        %2296 = vrot.lane.b32.xlu0 %v2236, 64
        %v2297 = vpop.permute.xlu0 %2296
        %2298 = vrot.lane.b32.xlu0 %v2237, 64
        %v2299 = vpop.permute.xlu0 %2298
        %2300 = vrot.lane.b32.xlu0 %v2238, 64
        %v2301 = vpop.permute.xlu0 %2300
        %2302 = vrot.lane.b32.xlu0 %v2239, 64
        %v2303 = vpop.permute.xlu0 %2302
        %2304 = vrot.lane.b32.xlu0 %v2240, 64
        %v2305 = vpop.permute.xlu0 %2304
        %2306 = vrot.lane.b32.xlu0 %v2241, 64
        %v2307 = vpop.permute.xlu0 %2306
        %2308 = vrot.lane.b32.xlu0 %v2242, 64
        %v2309 = vpop.permute.xlu0 %2308
        %2310 = vrot.lane.b32.xlu0 %v2243, 64
        %v2311 = vpop.permute.xlu0 %2310
        %2312 = vrot.lane.b32.xlu0 %v2244, 64
        %v2313 = vpop.permute.xlu0 %2312
        %2314 = vrot.lane.b32.xlu0 %v2245, 64
        %v2315 = vpop.permute.xlu0 %2314
        %2316 = vrot.lane.b32.xlu0 %v2250, 64
        %v2317 = vpop.permute.xlu0 %2316
        %2318 = vrot.lane.b32.xlu0 %v2287, 64
        %v2319 = vpop.permute.xlu0 %2318
        %v2322 = vsel %vm494, %v2230, %v2252
        %v2325 = vsel %vm494, %v2231, %v2254
        %v2328 = vsel %vm494, %v2232, %v2256
        %v2331 = vsel %vm494, %v2233, %v2258
        %v2334 = vsel %vm494, %v2234, %v2260
        %v2337 = vsel %vm494, %v2235, %v2262
        %v2340 = vsel %vm494, %v2236, %v2264
        %v2343 = vsel %vm494, %v2237, %v2266
        %v2346 = vsel %vm494, %v2238, %v2268
        %v2349 = vsel %vm494, %v2239, %v2270
        %v2352 = vsel %vm494, %v2240, %v2272
        %v2355 = vsel %vm494, %v2241, %v2274
        %v2358 = vsel %vm494, %v2242, %v2276
        %v2361 = vsel %vm494, %v2243, %v2278
        %v2364 = vsel %vm494, %v2244, %v2280
        %v2367 = vsel %vm494, %v2245, %v2282
        %vm2368 = vcmask 523264
        %v2370 = vsel %vm2368, %v2322, %v2289
        %v2372 = vsel %vm2368, %v2325, %v2291
        %v2374 = vsel %vm2368, %v2328, %v2293
        %v2376 = vsel %vm2368, %v2331, %v2295
        %v2378 = vsel %vm2368, %v2334, %v2297
        %v2380 = vsel %vm2368, %v2337, %v2299
        %v2382 = vsel %vm2368, %v2340, %v2301
        %v2384 = vsel %vm2368, %v2343, %v2303
        %v2386 = vsel %vm2368, %v2346, %v2305
        %v2388 = vsel %vm2368, %v2349, %v2307
        %v2390 = vsel %vm2368, %v2352, %v2309
        %v2392 = vsel %vm2368, %v2355, %v2311
        %v2394 = vsel %vm2368, %v2358, %v2313
        %v2396 = vsel %vm2368, %v2361, %v2315
        %v2398 = vsel %vm2368, %v2364, %v2317
        %v2400 = vsel %vm2368, %v2367, %v2319
        %v2401 = vld [vmem:[%s7] sm:$0xf]
        %v2402 = vld [vmem:[%s7 + $0x4] sm:$0xf]
        %v2403 = vld [vmem:[%s7 + $0x8] sm:$0xf]
        %v2404 = vld [vmem:[%s7 + $0xc] sm:$0xf]
        %v2405 = vld [vmem:[%s7 + $0x10] sm:$0xf]
        %v2406 = vld [vmem:[%s7 + $0x14] sm:$0xf]
        %v2407 = vld [vmem:[%s7 + $0x18] sm:$0xf]
        %v2408 = vld [vmem:[%s7 + $0x1c] sm:$0xf]
        %v2409 = vld [vmem:[%s7 + $0x20] sm:$0xf]
        %v2410 = vld [vmem:[%s7 + $0x24] sm:$0xf]
        %v2411 = vld [vmem:[%s7 + $0x28] sm:$0xf]
        %v2412 = vld [vmem:[%s7 + $0x2c] sm:$0xf]
        %2413 = vrot.lane.b32.xlu0 %v911, 32
        %v2414 = vpop.permute.xlu0 %2413
        %2415 = vrot.lane.b32.xlu0 %v912, 32
        %v2416 = vpop.permute.xlu0 %2415
        %2417 = vrot.lane.b32.xlu0 %v913, 32
        %v2418 = vpop.permute.xlu0 %2417
        %2419 = vrot.lane.b32.xlu0 %v914, 32
        %v2420 = vpop.permute.xlu0 %2419
        %2421 = vrot.lane.b32.xlu0 %v915, 32
        %v2422 = vpop.permute.xlu0 %2421
        %2423 = vrot.lane.b32.xlu0 %v916, 32
        %v2424 = vpop.permute.xlu0 %2423
        %2425 = vrot.lane.b32.xlu0 %v917, 32
        %v2426 = vpop.permute.xlu0 %2425
        %2427 = vrot.lane.b32.xlu0 %v918, 32
        %v2428 = vpop.permute.xlu0 %2427
        %2429 = vrot.lane.b32.xlu0 %v919, 32
        %v2430 = vpop.permute.xlu0 %2429
        %2431 = vrot.lane.b32.xlu0 %v920, 32
        %v2432 = vpop.permute.xlu0 %2431
        %2433 = vrot.lane.b32.xlu0 %v921, 32
        %v2434 = vpop.permute.xlu0 %2433
        %2435 = vrot.lane.b32.xlu0 %v922, 32
        %v2436 = vpop.permute.xlu0 %2435
        %2437 = vrot.lane.b32.xlu0 %v923, 32
        %v2438 = vpop.permute.xlu0 %2437
        %2439 = vrot.lane.b32.xlu0 %v924, 32
        %v2440 = vpop.permute.xlu0 %2439
        %2441 = vrot.lane.b32.xlu0 %v925, 32
        %v2442 = vpop.permute.xlu0 %2441
        %2443 = vrot.lane.b32.xlu0 %v926, 32
        %v2444 = vpop.permute.xlu0 %2443
        %2446 = vrot.lane.b32.xlu0 %v912, 64
        %v2447 = vpop.permute.xlu0 %2446
        %2448 = vrot.lane.b32.xlu0 %v913, 64
        %v2449 = vpop.permute.xlu0 %2448
        %2450 = vrot.lane.b32.xlu0 %v914, 64
        %v2451 = vpop.permute.xlu0 %2450
        %2452 = vrot.lane.b32.xlu0 %v915, 64
        %v2453 = vpop.permute.xlu0 %2452
        %2454 = vrot.lane.b32.xlu0 %v916, 64
        %v2455 = vpop.permute.xlu0 %2454
        %2456 = vrot.lane.b32.xlu0 %v917, 64
        %v2457 = vpop.permute.xlu0 %2456
        %2458 = vrot.lane.b32.xlu0 %v918, 64
        %v2459 = vpop.permute.xlu0 %2458
        %2460 = vrot.lane.b32.xlu0 %v919, 64
        %v2461 = vpop.permute.xlu0 %2460
        %2462 = vrot.lane.b32.xlu0 %v920, 64
        %v2463 = vpop.permute.xlu0 %2462
        %2464 = vrot.lane.b32.xlu0 %v921, 64
        %v2465 = vpop.permute.xlu0 %2464
        %2466 = vrot.lane.b32.xlu0 %v922, 64
        %v2467 = vpop.permute.xlu0 %2466
        %2468 = vrot.lane.b32.xlu0 %v923, 64
        %v2469 = vpop.permute.xlu0 %2468
        %2470 = vrot.lane.b32.xlu0 %v924, 64
        %v2471 = vpop.permute.xlu0 %2470
        %2472 = vrot.lane.b32.xlu0 %v925, 64
        %v2473 = vpop.permute.xlu0 %2472
        %2474 = vrot.lane.b32.xlu0 %v926, 64
        %v2475 = vpop.permute.xlu0 %2474
        %2476 = vrot.lane.b32.xlu0 0, 64
        %v2477 = vpop.permute.xlu0 %2476
        %v2479 = vsel %vm494, 0, %v2414
        %v2481 = vsel %vm494, %v911, %v2416
        %v2483 = vsel %vm494, %v912, %v2418
        %v2485 = vsel %vm494, %v913, %v2420
        %v2487 = vsel %vm494, %v914, %v2422
        %v2489 = vsel %vm494, %v915, %v2424
        %v2491 = vsel %vm494, %v916, %v2426
        %v2493 = vsel %vm494, %v917, %v2428
        %v2495 = vsel %vm494, %v918, %v2430
        %v2497 = vsel %vm494, %v919, %v2432
        %v2499 = vsel %vm494, %v920, %v2434
        %v2501 = vsel %vm494, %v921, %v2436
        %v2503 = vsel %vm494, %v922, %v2438
        %v2505 = vsel %vm494, %v923, %v2440
        %v2507 = vsel %vm494, %v924, %v2442
        %v2509 = vsel %vm494, %v925, %v2444
        %v2511 = vsel %vm2368, %v2479, %v2447
        %v2513 = vsel %vm2368, %v2481, %v2449
        %v2515 = vsel %vm2368, %v2483, %v2451
        %v2517 = vsel %vm2368, %v2485, %v2453
        %v2519 = vsel %vm2368, %v2487, %v2455
        %v2521 = vsel %vm2368, %v2489, %v2457
        %v2523 = vsel %vm2368, %v2491, %v2459
        %v2525 = vsel %vm2368, %v2493, %v2461
        %v2527 = vsel %vm2368, %v2495, %v2463
        %v2529 = vsel %vm2368, %v2497, %v2465
        %v2531 = vsel %vm2368, %v2499, %v2467
        %v2533 = vsel %vm2368, %v2501, %v2469
        %v2535 = vsel %vm2368, %v2503, %v2471
        %v2537 = vsel %vm2368, %v2505, %v2473
        %v2539 = vsel %vm2368, %v2507, %v2475
        %v2541 = vsel %vm2368, %v2509, %v2477
        %s2542 = scalar_lea.vmem %s7, 48
        %v2543 = vld [vmem:[%s2542] sm:$0xf]
        %v2544 = vld [vmem:[%s2542 + $0x4] sm:$0xf]
        %v2545 = vld [vmem:[%s2542 + $0x8] sm:$0xf]
        %v2546 = vld [vmem:[%s2542 + $0xc] sm:$0xf]
        %v2547 = vld [vmem:[%s2542 + $0x10] sm:$0xf]
        %v2548 = vld [vmem:[%s2542 + $0x14] sm:$0xf]
        %v2549 = vld [vmem:[%s2542 + $0x18] sm:$0xf]
        %v2550 = vld [vmem:[%s2542 + $0x1c] sm:$0xf]
        %v2551 = vld [vmem:[%s2542 + $0x20] sm:$0xf]
        %v2552 = vld [vmem:[%s2542 + $0x24] sm:$0xf]
        %v2553 = vld [vmem:[%s2542 + $0x28] sm:$0xf]
        %v2554 = vld [vmem:[%s2542 + $0x2c] sm:$0xf]
        %v2567 = vunpack.c.l.b16 %v2543
        %v2568 = vunpack.c.l.b16 %v2544
        %v2569 = vunpack.c.l.b16 %v2545
        %v2570 = vunpack.c.l.b16 %v2546
        %v2571 = vunpack.c.l.b16 %v2547
        %v2572 = vunpack.c.l.b16 %v2548
        %v2573 = vunpack.c.l.b16 %v2549
        %v2574 = vunpack.c.l.b16 %v2550
        %v2575 = vunpack.c.l.b16 %v2551
        %v2576 = vunpack.c.l.b16 %v2552
        %v2577 = vunpack.c.l.b16 %v2553
        %v2578 = vunpack.c.l.b16 %v2554
        %v2579 = vpack.c.b16 %v2568, %v2567
        %v2580 = vpack.c.b16 %v2570, %v2569
        %v2581 = vpack.c.b16 %v2572, %v2571
        %v2582 = vpack.c.b16 %v2574, %v2573
        %v2583 = vpack.c.b16 %v2576, %v2575
        %v2584 = vpack.c.b16 %v2578, %v2577
        %vm2591 = vcmask 785408
        %v2592 = vsel %vm2591, %v2511, 0
        %v2594 = vsel %vm2591, %v2513, 0
        %v2596 = vsel %vm2591, %v2515, 0
        %v2598 = vsel %vm2591, %v2517, 0
        %v2600 = vsel %vm2591, %v2519, 0
        %v2602 = vsel %vm2591, %v2521, 0
        %v2604 = vsel %vm2591, %v2523, 0
        %v2606 = vsel %vm2591, %v2525, 0
        %v2608 = vsel %vm2591, %v2527, 0
        %v2610 = vsel %vm2591, %v2529, 0
        %v2612 = vsel %vm2591, %v2531, 0
        %v2614 = vsel %vm2591, %v2533, 0
        %v2616 = vsel %vm2591, %v2535, 0
        %v2618 = vsel %vm2591, %v2537, 0
        %v2620 = vsel %vm2591, %v2539, 0
        %v2622 = vsel %vm2591, %v2541, 0
        %2624 = vmatpush.bf16.msra.mxu0 0
        %2625 = vmatpush.bf16.msra.mxu0 0
        %2626 = vmatpush.bf16.msra.mxu0 %v2584
        %2627 = vmatpush.bf16.msra.mxu0 %v2583
        %2628 = vmatpush.bf16.msra.mxu0 %v2582
        %2629 = vmatpush.bf16.msra.mxu0 %v2581
        %2630 = vmatpush.bf16.msra.mxu0 %v2580
        %2631 = vmatpush.bf16.msra.mxu0 %v2579
        %2632 = vmatmul.bf16.gmra.mxu0 %v2592
        %v2633 = vpop.f32.mrf.mxu0
        %v2634 = vadd.f32 0.0, %v2633
        %v2635 = vpop.f32.mrf.mxu0
        %v2636 = vadd.f32 0.0, %v2635
        %2637 = vmatmul.bf16.gmra.mxu0 %v2594
        %v2638 = vpop.f32.mrf.mxu0
        %v2639 = vadd.f32 0.0, %v2638
        %v2640 = vpop.f32.mrf.mxu0
        %v2641 = vadd.f32 0.0, %v2640
        %2642 = vmatmul.bf16.gmra.mxu0 %v2596
        %v2643 = vpop.f32.mrf.mxu0
        %v2644 = vadd.f32 0.0, %v2643
        %v2645 = vpop.f32.mrf.mxu0
        %v2646 = vadd.f32 0.0, %v2645
        %2647 = vmatmul.bf16.gmra.mxu0 %v2598
        %v2648 = vpop.f32.mrf.mxu0
        %v2649 = vadd.f32 0.0, %v2648
        %v2650 = vpop.f32.mrf.mxu0
        %v2651 = vadd.f32 0.0, %v2650
        %2652 = vmatmul.bf16.gmra.mxu0 %v2600
        %v2653 = vpop.f32.mrf.mxu0
        %v2654 = vadd.f32 0.0, %v2653
        %v2655 = vpop.f32.mrf.mxu0
        %v2656 = vadd.f32 0.0, %v2655
        %2657 = vmatmul.bf16.gmra.mxu0 %v2602
        %v2658 = vpop.f32.mrf.mxu0
        %v2659 = vadd.f32 0.0, %v2658
        %v2660 = vpop.f32.mrf.mxu0
        %v2661 = vadd.f32 0.0, %v2660
        %2662 = vmatmul.bf16.gmra.mxu0 %v2604
        %v2663 = vpop.f32.mrf.mxu0
        %v2664 = vadd.f32 0.0, %v2663
        %v2665 = vpop.f32.mrf.mxu0
        %v2666 = vadd.f32 0.0, %v2665
        %2667 = vmatmul.bf16.gmra.mxu0 %v2606
        %v2668 = vpop.f32.mrf.mxu0
        %v2669 = vadd.f32 0.0, %v2668
        %v2670 = vpop.f32.mrf.mxu0
        %v2671 = vadd.f32 0.0, %v2670
        %2672 = vmatmul.bf16.gmra.mxu0 %v2608
        %v2673 = vpop.f32.mrf.mxu0
        %v2674 = vadd.f32 0.0, %v2673
        %v2675 = vpop.f32.mrf.mxu0
        %v2676 = vadd.f32 0.0, %v2675
        %2677 = vmatmul.bf16.gmra.mxu0 %v2610
        %v2678 = vpop.f32.mrf.mxu0
        %v2679 = vadd.f32 0.0, %v2678
        %v2680 = vpop.f32.mrf.mxu0
        %v2681 = vadd.f32 0.0, %v2680
        %2682 = vmatmul.bf16.gmra.mxu0 %v2612
        %v2683 = vpop.f32.mrf.mxu0
        %v2684 = vadd.f32 0.0, %v2683
        %v2685 = vpop.f32.mrf.mxu0
        %v2686 = vadd.f32 0.0, %v2685
        %2687 = vmatmul.bf16.gmra.mxu0 %v2614
        %v2688 = vpop.f32.mrf.mxu0
        %v2689 = vadd.f32 0.0, %v2688
        %v2690 = vpop.f32.mrf.mxu0
        %v2691 = vadd.f32 0.0, %v2690
        %2692 = vmatmul.bf16.gmra.mxu0 %v2616
        %v2693 = vpop.f32.mrf.mxu0
        %v2694 = vadd.f32 0.0, %v2693
        %v2695 = vpop.f32.mrf.mxu0
        %v2696 = vadd.f32 0.0, %v2695
        %2697 = vmatmul.bf16.gmra.mxu0 %v2618
        %v2698 = vpop.f32.mrf.mxu0
        %v2699 = vadd.f32 0.0, %v2698
        %v2700 = vpop.f32.mrf.mxu0
        %v2701 = vadd.f32 0.0, %v2700
        %2702 = vmatmul.bf16.gmra.mxu0 %v2620
        %v2703 = vpop.f32.mrf.mxu0
        %v2704 = vadd.f32 0.0, %v2703
        %v2705 = vpop.f32.mrf.mxu0
        %v2706 = vadd.f32 0.0, %v2705
        %2707 = vmatmul.bf16.gmra.mxu0 %v2622
        %v2708 = vpop.f32.mrf.mxu0
        %v2709 = vadd.f32 0.0, %v2708
        %v2710 = vpop.f32.mrf.mxu0
        %v2711 = vadd.f32 0.0, %v2710
        %2712 = vdwg.mxu0
        %v2725 = vunpack.c.l.b16 %v2401
        %v2726 = vunpack.c.l.b16 %v2402
        %v2727 = vunpack.c.l.b16 %v2403
        %v2728 = vunpack.c.l.b16 %v2404
        %v2729 = vunpack.c.l.b16 %v2405
        %v2730 = vunpack.c.l.b16 %v2406
        %v2731 = vunpack.c.l.b16 %v2407
        %v2732 = vunpack.c.l.b16 %v2408
        %v2733 = vunpack.c.l.b16 %v2409
        %v2734 = vunpack.c.l.b16 %v2410
        %v2735 = vunpack.c.l.b16 %v2411
        %v2736 = vunpack.c.l.b16 %v2412
        %v2737 = vpack.c.b16 %v2726, %v2725
        %v2738 = vpack.c.b16 %v2728, %v2727
        %v2739 = vpack.c.b16 %v2730, %v2729
        %v2740 = vpack.c.b16 %v2732, %v2731
        %v2741 = vpack.c.b16 %v2734, %v2733
        %v2742 = vpack.c.b16 %v2736, %v2735
        %v2749 = vsel %vm2591, %v2370, 0
        %v2751 = vsel %vm2591, %v2372, 0
        %v2753 = vsel %vm2591, %v2374, 0
        %v2755 = vsel %vm2591, %v2376, 0
        %v2757 = vsel %vm2591, %v2378, 0
        %v2759 = vsel %vm2591, %v2380, 0
        %v2761 = vsel %vm2591, %v2382, 0
        %v2763 = vsel %vm2591, %v2384, 0
        %v2765 = vsel %vm2591, %v2386, 0
        %v2767 = vsel %vm2591, %v2388, 0
        %v2769 = vsel %vm2591, %v2390, 0
        %v2771 = vsel %vm2591, %v2392, 0
        %v2773 = vsel %vm2591, %v2394, 0
        %v2775 = vsel %vm2591, %v2396, 0
        %v2777 = vsel %vm2591, %v2398, 0
        %v2779 = vsel %vm2591, %v2400, 0
        %2781 = vmatpush.bf16.msra.mxu0 0
        %2782 = vmatpush.bf16.msra.mxu0 0
        %2783 = vmatpush.bf16.msra.mxu0 %v2742
        %2784 = vmatpush.bf16.msra.mxu0 %v2741
        %2785 = vmatpush.bf16.msra.mxu0 %v2740
        %2786 = vmatpush.bf16.msra.mxu0 %v2739
        %2787 = vmatpush.bf16.msra.mxu0 %v2738
        %2788 = vmatpush.bf16.msra.mxu0 %v2737
        %2789 = vmatmul.bf16.gmra.mxu0 %v2749
        %v2790 = vpop.f32.mrf.mxu0
        %v2791 = vadd.f32 %v2634, %v2790
        %v2792 = vpop.f32.mrf.mxu0
        %v2793 = vadd.f32 %v2636, %v2792
        %2794 = vmatmul.bf16.gmra.mxu0 %v2751
        %v2795 = vpop.f32.mrf.mxu0
        %v2796 = vadd.f32 %v2639, %v2795
        %v2797 = vpop.f32.mrf.mxu0
        %v2798 = vadd.f32 %v2641, %v2797
        %2799 = vmatmul.bf16.gmra.mxu0 %v2753
        %v2800 = vpop.f32.mrf.mxu0
        %v2801 = vadd.f32 %v2644, %v2800
        %v2802 = vpop.f32.mrf.mxu0
        %v2803 = vadd.f32 %v2646, %v2802
        %2804 = vmatmul.bf16.gmra.mxu0 %v2755
        %v2805 = vpop.f32.mrf.mxu0
        %v2806 = vadd.f32 %v2649, %v2805
        %v2807 = vpop.f32.mrf.mxu0
        %v2808 = vadd.f32 %v2651, %v2807
        %2809 = vmatmul.bf16.gmra.mxu0 %v2757
        %v2810 = vpop.f32.mrf.mxu0
        %v2811 = vadd.f32 %v2654, %v2810
        %v2812 = vpop.f32.mrf.mxu0
        %v2813 = vadd.f32 %v2656, %v2812
        %2814 = vmatmul.bf16.gmra.mxu0 %v2759
        %v2815 = vpop.f32.mrf.mxu0
        %v2816 = vadd.f32 %v2659, %v2815
        %v2817 = vpop.f32.mrf.mxu0
        %v2818 = vadd.f32 %v2661, %v2817
        %2819 = vmatmul.bf16.gmra.mxu0 %v2761
        %v2820 = vpop.f32.mrf.mxu0
        %v2821 = vadd.f32 %v2664, %v2820
        %v2822 = vpop.f32.mrf.mxu0
        %v2823 = vadd.f32 %v2666, %v2822
        %2824 = vmatmul.bf16.gmra.mxu0 %v2763
        %v2825 = vpop.f32.mrf.mxu0
        %v2826 = vadd.f32 %v2669, %v2825
        %v2827 = vpop.f32.mrf.mxu0
        %v2828 = vadd.f32 %v2671, %v2827
        %2829 = vmatmul.bf16.gmra.mxu0 %v2765
        %v2830 = vpop.f32.mrf.mxu0
        %v2831 = vadd.f32 %v2674, %v2830
        %v2832 = vpop.f32.mrf.mxu0
        %v2833 = vadd.f32 %v2676, %v2832
        %2834 = vmatmul.bf16.gmra.mxu0 %v2767
        %v2835 = vpop.f32.mrf.mxu0
        %v2836 = vadd.f32 %v2679, %v2835
        %v2837 = vpop.f32.mrf.mxu0
        %v2838 = vadd.f32 %v2681, %v2837
        %2839 = vmatmul.bf16.gmra.mxu0 %v2769
        %v2840 = vpop.f32.mrf.mxu0
        %v2841 = vadd.f32 %v2684, %v2840
        %v2842 = vpop.f32.mrf.mxu0
        %v2843 = vadd.f32 %v2686, %v2842
        %2844 = vmatmul.bf16.gmra.mxu0 %v2771
        %v2845 = vpop.f32.mrf.mxu0
        %v2846 = vadd.f32 %v2689, %v2845
        %v2847 = vpop.f32.mrf.mxu0
        %v2848 = vadd.f32 %v2691, %v2847
        %2849 = vmatmul.bf16.gmra.mxu0 %v2773
        %v2850 = vpop.f32.mrf.mxu0
        %v2851 = vadd.f32 %v2694, %v2850
        %v2852 = vpop.f32.mrf.mxu0
        %v2853 = vadd.f32 %v2696, %v2852
        %2854 = vmatmul.bf16.gmra.mxu0 %v2775
        %v2855 = vpop.f32.mrf.mxu0
        %v2856 = vadd.f32 %v2699, %v2855
        %v2857 = vpop.f32.mrf.mxu0
        %v2858 = vadd.f32 %v2701, %v2857
        %2859 = vmatmul.bf16.gmra.mxu0 %v2777
        %v2860 = vpop.f32.mrf.mxu0
        %v2861 = vadd.f32 %v2704, %v2860
        %v2862 = vpop.f32.mrf.mxu0
        %v2863 = vadd.f32 %v2706, %v2862
        %2864 = vmatmul.bf16.gmra.mxu0 %v2779
        %v2865 = vpop.f32.mrf.mxu0
        %v2866 = vadd.f32 %v2709, %v2865
        %v2867 = vpop.f32.mrf.mxu0
        %v2868 = vadd.f32 %v2711, %v2867
        %2869 = vdwg.mxu0
        %v2902 = vunpack.c.l.b16 %v2130
        %v2903 = vunpack.c.l.b16 %v2131
        %v2904 = vunpack.c.l.b16 %v2132
        %v2905 = vunpack.c.l.b16 %v2133
        %v2906 = vunpack.c.l.b16 %v2134
        %v2907 = vunpack.c.l.b16 %v2135
        %v2908 = vunpack.c.l.b16 %v2136
        %v2909 = vunpack.c.l.b16 %v2137
        %v2910 = vunpack.c.l.b16 %v2138
        %v2911 = vunpack.c.l.b16 %v2139
        %v2912 = vunpack.c.l.b16 %v2140
        %v2913 = vunpack.c.l.b16 %v2141
        %v2914 = vunpack.c.l.b16 %v2142
        %v2915 = vunpack.c.l.b16 %v2143
        %v2916 = vunpack.c.l.b16 %v2144
        %v2917 = vunpack.c.l.b16 %v2145
        %v2918 = vunpack.c.l.b16 %v2146
        %v2919 = vunpack.c.l.b16 %v2147
        %v2920 = vunpack.c.l.b16 %v2148
        %v2921 = vunpack.c.l.b16 %v2149
        %v2922 = vunpack.c.l.b16 %v2150
        %v2923 = vunpack.c.l.b16 %v2151
        %v2924 = vunpack.c.l.b16 %v2152
        %v2925 = vunpack.c.l.b16 %v2153
        %v2926 = vunpack.c.l.b16 %v2154
        %v2927 = vunpack.c.l.b16 %v2155
        %v2928 = vunpack.c.l.b16 %v2156
        %v2929 = vunpack.c.l.b16 %v2157
        %v2930 = vunpack.c.l.b16 %v2158
        %v2931 = vunpack.c.l.b16 %v2159
        %v2932 = vunpack.c.l.b16 %v2160
        %v2933 = vunpack.c.l.b16 %v2161
        %v2934 = vpack.c.b16 %v2903, %v2902
        %v2935 = vpack.c.b16 %v2905, %v2904
        %v2936 = vpack.c.b16 %v2907, %v2906
        %v2937 = vpack.c.b16 %v2909, %v2908
        %v2938 = vpack.c.b16 %v2911, %v2910
        %v2939 = vpack.c.b16 %v2913, %v2912
        %v2940 = vpack.c.b16 %v2915, %v2914
        %v2941 = vpack.c.b16 %v2917, %v2916
        %v2942 = vpack.c.b16 %v2919, %v2918
        %v2943 = vpack.c.b16 %v2921, %v2920
        %v2944 = vpack.c.b16 %v2923, %v2922
        %v2945 = vpack.c.b16 %v2925, %v2924
        %v2946 = vpack.c.b16 %v2927, %v2926
        %v2947 = vpack.c.b16 %v2929, %v2928
        %v2948 = vpack.c.b16 %v2931, %v2930
        %v2949 = vpack.c.b16 %v2933, %v2932
        %v2952 = vunpack.c.l.b16 %v2162
        %v2953 = vunpack.c.l.b16 %v2163
        %v2954 = vpack.c.b16 %v2953, %v2952
        %2955 = vrot.lane.b32.xlu0 %v2935, 32
        %v2956 = vpop.permute.xlu0 %2955
        %2957 = vrot.lane.b32.xlu0 %v2936, 32
        %v2958 = vpop.permute.xlu0 %2957
        %2959 = vrot.lane.b32.xlu0 %v2937, 32
        %v2960 = vpop.permute.xlu0 %2959
        %2961 = vrot.lane.b32.xlu0 %v2938, 32
        %v2962 = vpop.permute.xlu0 %2961
        %2963 = vrot.lane.b32.xlu0 %v2939, 32
        %v2964 = vpop.permute.xlu0 %2963
        %2965 = vrot.lane.b32.xlu0 %v2940, 32
        %v2966 = vpop.permute.xlu0 %2965
        %2967 = vrot.lane.b32.xlu0 %v2941, 32
        %v2968 = vpop.permute.xlu0 %2967
        %2969 = vrot.lane.b32.xlu0 %v2942, 32
        %v2970 = vpop.permute.xlu0 %2969
        %2971 = vrot.lane.b32.xlu0 %v2943, 32
        %v2972 = vpop.permute.xlu0 %2971
        %2973 = vrot.lane.b32.xlu0 %v2944, 32
        %v2974 = vpop.permute.xlu0 %2973
        %2975 = vrot.lane.b32.xlu0 %v2945, 32
        %v2976 = vpop.permute.xlu0 %2975
        %2977 = vrot.lane.b32.xlu0 %v2946, 32
        %v2978 = vpop.permute.xlu0 %2977
        %2979 = vrot.lane.b32.xlu0 %v2947, 32
        %v2980 = vpop.permute.xlu0 %2979
        %2981 = vrot.lane.b32.xlu0 %v2948, 32
        %v2982 = vpop.permute.xlu0 %2981
        %2983 = vrot.lane.b32.xlu0 %v2949, 32
        %v2984 = vpop.permute.xlu0 %2983
        %2985 = vrot.lane.b32.xlu0 %v2954, 32
        %v2986 = vpop.permute.xlu0 %2985
        %v2989 = vunpack.c.l.b16 %v2164
        %v2990 = vunpack.c.l.b16 %v2165
        %v2991 = vpack.c.b16 %v2990, %v2989
        %2992 = vrot.lane.b32.xlu0 %v2936, 64
        %v2993 = vpop.permute.xlu0 %2992
        %2994 = vrot.lane.b32.xlu0 %v2937, 64
        %v2995 = vpop.permute.xlu0 %2994
        %2996 = vrot.lane.b32.xlu0 %v2938, 64
        %v2997 = vpop.permute.xlu0 %2996
        %2998 = vrot.lane.b32.xlu0 %v2939, 64
        %v2999 = vpop.permute.xlu0 %2998
        %3000 = vrot.lane.b32.xlu0 %v2940, 64
        %v3001 = vpop.permute.xlu0 %3000
        %3002 = vrot.lane.b32.xlu0 %v2941, 64
        %v3003 = vpop.permute.xlu0 %3002
        %3004 = vrot.lane.b32.xlu0 %v2942, 64
        %v3005 = vpop.permute.xlu0 %3004
        %3006 = vrot.lane.b32.xlu0 %v2943, 64
        %v3007 = vpop.permute.xlu0 %3006
        %3008 = vrot.lane.b32.xlu0 %v2944, 64
        %v3009 = vpop.permute.xlu0 %3008
        %3010 = vrot.lane.b32.xlu0 %v2945, 64
        %v3011 = vpop.permute.xlu0 %3010
        %3012 = vrot.lane.b32.xlu0 %v2946, 64
        %v3013 = vpop.permute.xlu0 %3012
        %3014 = vrot.lane.b32.xlu0 %v2947, 64
        %v3015 = vpop.permute.xlu0 %3014
        %3016 = vrot.lane.b32.xlu0 %v2948, 64
        %v3017 = vpop.permute.xlu0 %3016
        %3018 = vrot.lane.b32.xlu0 %v2949, 64
        %v3019 = vpop.permute.xlu0 %3018
        %3020 = vrot.lane.b32.xlu0 %v2954, 64
        %v3021 = vpop.permute.xlu0 %3020
        %3022 = vrot.lane.b32.xlu0 %v2991, 64
        %v3023 = vpop.permute.xlu0 %3022
        %v3026 = vsel %vm494, %v2934, %v2956
        %v3029 = vsel %vm494, %v2935, %v2958
        %v3032 = vsel %vm494, %v2936, %v2960
        %v3035 = vsel %vm494, %v2937, %v2962
        %v3038 = vsel %vm494, %v2938, %v2964
        %v3041 = vsel %vm494, %v2939, %v2966
        %v3044 = vsel %vm494, %v2940, %v2968
        %v3047 = vsel %vm494, %v2941, %v2970
        %v3050 = vsel %vm494, %v2942, %v2972
        %v3053 = vsel %vm494, %v2943, %v2974
        %v3056 = vsel %vm494, %v2944, %v2976
        %v3059 = vsel %vm494, %v2945, %v2978
        %v3062 = vsel %vm494, %v2946, %v2980
        %v3065 = vsel %vm494, %v2947, %v2982
        %v3068 = vsel %vm494, %v2948, %v2984
        %v3071 = vsel %vm494, %v2949, %v2986
        %v3073 = vsel %vm2368, %v3026, %v2993
        %v3075 = vsel %vm2368, %v3029, %v2995
        %v3077 = vsel %vm2368, %v3032, %v2997
        %v3079 = vsel %vm2368, %v3035, %v2999
        %v3081 = vsel %vm2368, %v3038, %v3001
        %v3083 = vsel %vm2368, %v3041, %v3003
        %v3085 = vsel %vm2368, %v3044, %v3005
        %v3087 = vsel %vm2368, %v3047, %v3007
        %v3089 = vsel %vm2368, %v3050, %v3009
        %v3091 = vsel %vm2368, %v3053, %v3011
        %v3093 = vsel %vm2368, %v3056, %v3013
        %v3095 = vsel %vm2368, %v3059, %v3015
        %v3097 = vsel %vm2368, %v3062, %v3017
        %v3099 = vsel %vm2368, %v3065, %v3019
        %v3101 = vsel %vm2368, %v3068, %v3021
        %v3103 = vsel %vm2368, %v3071, %v3023
        %s3104 = scalar_lea.vmem %s7, 96
        %v3105 = vld [vmem:[%s3104] sm:$0xf]
        %v3106 = vld [vmem:[%s3104 + $0x4] sm:$0xf]
        %v3107 = vld [vmem:[%s3104 + $0x8] sm:$0xf]
        %v3108 = vld [vmem:[%s3104 + $0xc] sm:$0xf]
        %v3109 = vld [vmem:[%s3104 + $0x10] sm:$0xf]
        %v3110 = vld [vmem:[%s3104 + $0x14] sm:$0xf]
        %v3111 = vld [vmem:[%s3104 + $0x18] sm:$0xf]
        %v3112 = vld [vmem:[%s3104 + $0x1c] sm:$0xf]
        %v3113 = vld [vmem:[%s3104 + $0x20] sm:$0xf]
        %v3114 = vld [vmem:[%s3104 + $0x24] sm:$0xf]
        %v3115 = vld [vmem:[%s3104 + $0x28] sm:$0xf]
        %v3116 = vld [vmem:[%s3104 + $0x2c] sm:$0xf]
        %v3129 = vunpack.c.l.b16 %v3105
        %v3130 = vunpack.c.l.b16 %v3106
        %v3131 = vunpack.c.l.b16 %v3107
        %v3132 = vunpack.c.l.b16 %v3108
        %v3133 = vunpack.c.l.b16 %v3109
        %v3134 = vunpack.c.l.b16 %v3110
        %v3135 = vunpack.c.l.b16 %v3111
        %v3136 = vunpack.c.l.b16 %v3112
        %v3137 = vunpack.c.l.b16 %v3113
        %v3138 = vunpack.c.l.b16 %v3114
        %v3139 = vunpack.c.l.b16 %v3115
        %v3140 = vunpack.c.l.b16 %v3116
        %v3141 = vpack.c.b16 %v3130, %v3129
        %v3142 = vpack.c.b16 %v3132, %v3131
        %v3143 = vpack.c.b16 %v3134, %v3133
        %v3144 = vpack.c.b16 %v3136, %v3135
        %v3145 = vpack.c.b16 %v3138, %v3137
        %v3146 = vpack.c.b16 %v3140, %v3139
        %v3153 = vsel %vm2591, %v3073, 0
        %v3155 = vsel %vm2591, %v3075, 0
        %v3157 = vsel %vm2591, %v3077, 0
        %v3159 = vsel %vm2591, %v3079, 0
        %v3161 = vsel %vm2591, %v3081, 0
        %v3163 = vsel %vm2591, %v3083, 0
        %v3165 = vsel %vm2591, %v3085, 0
        %v3167 = vsel %vm2591, %v3087, 0
        %v3169 = vsel %vm2591, %v3089, 0
        %v3171 = vsel %vm2591, %v3091, 0
        %v3173 = vsel %vm2591, %v3093, 0
        %v3175 = vsel %vm2591, %v3095, 0
        %v3177 = vsel %vm2591, %v3097, 0
        %v3179 = vsel %vm2591, %v3099, 0
        %v3181 = vsel %vm2591, %v3101, 0
        %v3183 = vsel %vm2591, %v3103, 0
        %3185 = vmatpush.bf16.msra.mxu0 0
        %3186 = vmatpush.bf16.msra.mxu0 0
        %3187 = vmatpush.bf16.msra.mxu0 %v3146
        %3188 = vmatpush.bf16.msra.mxu0 %v3145
        %3189 = vmatpush.bf16.msra.mxu0 %v3144
        %3190 = vmatpush.bf16.msra.mxu0 %v3143
        %3191 = vmatpush.bf16.msra.mxu0 %v3142
        %3192 = vmatpush.bf16.msra.mxu0 %v3141
        %3193 = vmatmul.bf16.gmra.mxu0 %v3153
        %v3194 = vpop.f32.mrf.mxu0
        %v3195 = vadd.f32 0.0, %v3194
        %v3196 = vpop.f32.mrf.mxu0
        %v3197 = vadd.f32 0.0, %v3196
        %3198 = vmatmul.bf16.gmra.mxu0 %v3155
        %v3199 = vpop.f32.mrf.mxu0
        %v3200 = vadd.f32 0.0, %v3199
        %v3201 = vpop.f32.mrf.mxu0
        %v3202 = vadd.f32 0.0, %v3201
        %3203 = vmatmul.bf16.gmra.mxu0 %v3157
        %v3204 = vpop.f32.mrf.mxu0
        %v3205 = vadd.f32 0.0, %v3204
        %v3206 = vpop.f32.mrf.mxu0
        %v3207 = vadd.f32 0.0, %v3206
        %3208 = vmatmul.bf16.gmra.mxu0 %v3159
        %v3209 = vpop.f32.mrf.mxu0
        %v3210 = vadd.f32 0.0, %v3209
        %v3211 = vpop.f32.mrf.mxu0
        %v3212 = vadd.f32 0.0, %v3211
        %3213 = vmatmul.bf16.gmra.mxu0 %v3161
        %v3214 = vpop.f32.mrf.mxu0
        %v3215 = vadd.f32 0.0, %v3214
        %v3216 = vpop.f32.mrf.mxu0
        %v3217 = vadd.f32 0.0, %v3216
        %3218 = vmatmul.bf16.gmra.mxu0 %v3163
        %v3219 = vpop.f32.mrf.mxu0
        %v3220 = vadd.f32 0.0, %v3219
        %v3221 = vpop.f32.mrf.mxu0
        %v3222 = vadd.f32 0.0, %v3221
        %3223 = vmatmul.bf16.gmra.mxu0 %v3165
        %v3224 = vpop.f32.mrf.mxu0
        %v3225 = vadd.f32 0.0, %v3224
        %v3226 = vpop.f32.mrf.mxu0
        %v3227 = vadd.f32 0.0, %v3226
        %3228 = vmatmul.bf16.gmra.mxu0 %v3167
        %v3229 = vpop.f32.mrf.mxu0
        %v3230 = vadd.f32 0.0, %v3229
        %v3231 = vpop.f32.mrf.mxu0
        %v3232 = vadd.f32 0.0, %v3231
        %3233 = vmatmul.bf16.gmra.mxu0 %v3169
        %v3234 = vpop.f32.mrf.mxu0
        %v3235 = vadd.f32 0.0, %v3234
        %v3236 = vpop.f32.mrf.mxu0
        %v3237 = vadd.f32 0.0, %v3236
        %3238 = vmatmul.bf16.gmra.mxu0 %v3171
        %v3239 = vpop.f32.mrf.mxu0
        %v3240 = vadd.f32 0.0, %v3239
        %v3241 = vpop.f32.mrf.mxu0
        %v3242 = vadd.f32 0.0, %v3241
        %3243 = vmatmul.bf16.gmra.mxu0 %v3173
        %v3244 = vpop.f32.mrf.mxu0
        %v3245 = vadd.f32 0.0, %v3244
        %v3246 = vpop.f32.mrf.mxu0
        %v3247 = vadd.f32 0.0, %v3246
        %3248 = vmatmul.bf16.gmra.mxu0 %v3175
        %v3249 = vpop.f32.mrf.mxu0
        %v3250 = vadd.f32 0.0, %v3249
        %v3251 = vpop.f32.mrf.mxu0
        %v3252 = vadd.f32 0.0, %v3251
        %3253 = vmatmul.bf16.gmra.mxu0 %v3177
        %v3254 = vpop.f32.mrf.mxu0
        %v3255 = vadd.f32 0.0, %v3254
        %v3256 = vpop.f32.mrf.mxu0
        %v3257 = vadd.f32 0.0, %v3256
        %3258 = vmatmul.bf16.gmra.mxu0 %v3179
        %v3259 = vpop.f32.mrf.mxu0
        %v3260 = vadd.f32 0.0, %v3259
        %v3261 = vpop.f32.mrf.mxu0
        %v3262 = vadd.f32 0.0, %v3261
        %3263 = vmatmul.bf16.gmra.mxu0 %v3181
        %v3264 = vpop.f32.mrf.mxu0
        %v3265 = vadd.f32 0.0, %v3264
        %v3266 = vpop.f32.mrf.mxu0
        %v3267 = vadd.f32 0.0, %v3266
        %3268 = vmatmul.bf16.gmra.mxu0 %v3183
        %v3269 = vpop.f32.mrf.mxu0
        %v3270 = vadd.f32 0.0, %v3269
        %v3271 = vpop.f32.mrf.mxu0
        %v3272 = vadd.f32 0.0, %v3271
        %3273 = vdwg.mxu0
        %v3274 = vadd.f32 %v2791, %v3195
        %v3275 = vadd.f32 %v2793, %v3197
        %v3276 = vadd.f32 %v2796, %v3200
        %v3277 = vadd.f32 %v2798, %v3202
        %v3278 = vadd.f32 %v2801, %v3205
        %v3279 = vadd.f32 %v2803, %v3207
        %v3280 = vadd.f32 %v2806, %v3210
        %v3281 = vadd.f32 %v2808, %v3212
        %v3282 = vadd.f32 %v2811, %v3215
        %v3283 = vadd.f32 %v2813, %v3217
        %v3284 = vadd.f32 %v2816, %v3220
        %v3285 = vadd.f32 %v2818, %v3222
        %v3286 = vadd.f32 %v2821, %v3225
        %v3287 = vadd.f32 %v2823, %v3227
        %v3288 = vadd.f32 %v2826, %v3230
        %v3289 = vadd.f32 %v2828, %v3232
        %v3290 = vadd.f32 %v2831, %v3235
        %v3291 = vadd.f32 %v2833, %v3237
        %v3292 = vadd.f32 %v2836, %v3240
        %v3293 = vadd.f32 %v2838, %v3242
        %v3294 = vadd.f32 %v2841, %v3245
        %v3295 = vadd.f32 %v2843, %v3247
        %v3296 = vadd.f32 %v2846, %v3250
        %v3297 = vadd.f32 %v2848, %v3252
        %v3298 = vadd.f32 %v2851, %v3255
        %v3299 = vadd.f32 %v2853, %v3257
        %v3300 = vadd.f32 %v2856, %v3260
        %v3301 = vadd.f32 %v2858, %v3262
        %v3302 = vadd.f32 %v2861, %v3265
        %v3303 = vadd.f32 %v2863, %v3267
        %v3304 = vadd.f32 %v2866, %v3270
        %v3305 = vadd.f32 %v2868, %v3272
        %v3306 = vld [vmem:[%s8] sm:$0x1]
        %v3308 = vperm.slane %v3306, 0
        %v3310 = vadd.f32 %v3274, %v3308
        %v3311 = vadd.f32 %v3275, %v3308
        %v3312 = vadd.f32 %v3276, %v3308
        %v3313 = vadd.f32 %v3277, %v3308
        %v3314 = vadd.f32 %v3278, %v3308
        %v3315 = vadd.f32 %v3279, %v3308
        %v3316 = vadd.f32 %v3280, %v3308
        %v3317 = vadd.f32 %v3281, %v3308
        %v3318 = vadd.f32 %v3282, %v3308
        %v3319 = vadd.f32 %v3283, %v3308
        %v3320 = vadd.f32 %v3284, %v3308
        %v3321 = vadd.f32 %v3285, %v3308
        %v3322 = vadd.f32 %v3286, %v3308
        %v3323 = vadd.f32 %v3287, %v3308
        %v3324 = vadd.f32 %v3288, %v3308
        %v3325 = vadd.f32 %v3289, %v3308
        %v3326 = vadd.f32 %v3290, %v3308
        %v3327 = vadd.f32 %v3291, %v3308
        %v3328 = vadd.f32 %v3292, %v3308
        %v3329 = vadd.f32 %v3293, %v3308
        %v3330 = vadd.f32 %v3294, %v3308
        %v3331 = vadd.f32 %v3295, %v3308
        %v3332 = vadd.f32 %v3296, %v3308
        %v3333 = vadd.f32 %v3297, %v3308
        %v3334 = vadd.f32 %v3298, %v3308
        %v3335 = vadd.f32 %v3299, %v3308
        %v3336 = vadd.f32 %v3300, %v3308
        %v3337 = vadd.f32 %v3301, %v3308
        %v3338 = vadd.f32 %v3302, %v3308
        %v3339 = vadd.f32 %v3303, %v3308
        %v3340 = vadd.f32 %v3304, %v3308
        %v3341 = vadd.f32 %v3305, %v3308
        %v3342 = vpack.c.bf16 %v3311, %v3310
        %v3343 = vpack.c.bf16 %v3313, %v3312
        %v3344 = vpack.c.bf16 %v3315, %v3314
        %v3345 = vpack.c.bf16 %v3317, %v3316
        %v3346 = vpack.c.bf16 %v3319, %v3318
        %v3347 = vpack.c.bf16 %v3321, %v3320
        %v3348 = vpack.c.bf16 %v3323, %v3322
        %v3349 = vpack.c.bf16 %v3325, %v3324
        %v3350 = vpack.c.bf16 %v3327, %v3326
        %v3351 = vpack.c.bf16 %v3329, %v3328
        %v3352 = vpack.c.bf16 %v3331, %v3330
        %v3353 = vpack.c.bf16 %v3333, %v3332
        %v3354 = vpack.c.bf16 %v3335, %v3334
        %v3355 = vpack.c.bf16 %v3337, %v3336
        %v3356 = vpack.c.bf16 %v3339, %v3338
        %v3357 = vpack.c.bf16 %v3341, %v3340
        %v3358 = vld [vmem:[%s9] sm:$0xf]
        %v3359 = vld [vmem:[%s9 + $0x4] sm:$0xf]
        %v3360 = vld [vmem:[%s9 + $0x8] sm:$0xf]
        %v3361 = vld [vmem:[%s9 + $0xc] sm:$0xf]
        %v3362 = vld [vmem:[%s9 + $0x10] sm:$0xf]
        %v3363 = vld [vmem:[%s9 + $0x14] sm:$0xf]
        %v3364 = vld [vmem:[%s9 + $0x18] sm:$0xf]
        %v3365 = vld [vmem:[%s9 + $0x1c] sm:$0xf]
        %v3366 = vld [vmem:[%s10] sm:$0x1]
        %v3368 = vperm.slane %v3366, 0
        %v3378 = vunpack.c.l.b16 %v3358
        %v3379 = vunpack.c.l.b16 %v3359
        %v3380 = vunpack.c.l.b16 %v3360
        %v3381 = vunpack.c.l.b16 %v3361
        %v3382 = vunpack.c.l.b16 %v3362
        %v3383 = vunpack.c.l.b16 %v3363
        %v3384 = vunpack.c.l.b16 %v3364
        %v3385 = vunpack.c.l.b16 %v3365
        %v3386 = vpack.c.b16 %v3379, %v3378
        %v3387 = vpack.c.b16 %v3381, %v3380
        %v3388 = vpack.c.b16 %v3383, %v3382
        %v3389 = vpack.c.b16 %v3385, %v3384
        %v3395 = vsel %vm2368, %v3342, 0
        %v3398 = vsel %vm2368, %v3343, 0
        %v3401 = vsel %vm2368, %v3344, 0
        %v3404 = vsel %vm2368, %v3345, 0
        %v3407 = vsel %vm2368, %v3346, 0
        %v3410 = vsel %vm2368, %v3347, 0
        %v3413 = vsel %vm2368, %v3348, 0
        %v3416 = vsel %vm2368, %v3349, 0
        %v3419 = vsel %vm2368, %v3350, 0
        %v3422 = vsel %vm2368, %v3351, 0
        %v3425 = vsel %vm2368, %v3352, 0
        %v3428 = vsel %vm2368, %v3353, 0
        %v3431 = vsel %vm2368, %v3354, 0
        %v3434 = vsel %vm2368, %v3355, 0
        %v3437 = vsel %vm2368, %v3356, 0
        %v3440 = vsel %vm2368, %v3357, 0
        %3442 = vmatpush.bf16.msra.mxu0 0
        %3443 = vmatpush.bf16.msra.mxu0 0
        %3444 = vmatpush.bf16.msra.mxu0 0
        %3445 = vmatpush.bf16.msra.mxu0 0
        %3446 = vmatpush.bf16.msra.mxu0 %v3389
        %3447 = vmatpush.bf16.msra.mxu0 %v3388
        %3448 = vmatpush.bf16.msra.mxu0 %v3387
        %3449 = vmatpush.bf16.msra.mxu0 %v3386
        %3450 = vmatmul.bf16.gmra.mxu0 %v3395
        %v3451 = vpop.f32.mrf.mxu0
        %v3452 = vadd.f32 %v3368, %v3451
        %v3453 = vpop.f32.mrf.mxu0
        %v3454 = vadd.f32 %v3368, %v3453
        %3455 = vmatmul.bf16.gmra.mxu0 %v3398
        %v3456 = vpop.f32.mrf.mxu0
        %v3457 = vadd.f32 %v3368, %v3456
        %v3458 = vpop.f32.mrf.mxu0
        %v3459 = vadd.f32 %v3368, %v3458
        %3460 = vmatmul.bf16.gmra.mxu0 %v3401
        %v3461 = vpop.f32.mrf.mxu0
        %v3462 = vadd.f32 %v3368, %v3461
        %v3463 = vpop.f32.mrf.mxu0
        %v3464 = vadd.f32 %v3368, %v3463
        %3465 = vmatmul.bf16.gmra.mxu0 %v3404
        %v3466 = vpop.f32.mrf.mxu0
        %v3467 = vadd.f32 %v3368, %v3466
        %v3468 = vpop.f32.mrf.mxu0
        %v3469 = vadd.f32 %v3368, %v3468
        %3470 = vmatmul.bf16.gmra.mxu0 %v3407
        %v3471 = vpop.f32.mrf.mxu0
        %v3472 = vadd.f32 %v3368, %v3471
        %v3473 = vpop.f32.mrf.mxu0
        %v3474 = vadd.f32 %v3368, %v3473
        %3475 = vmatmul.bf16.gmra.mxu0 %v3410
        %v3476 = vpop.f32.mrf.mxu0
        %v3477 = vadd.f32 %v3368, %v3476
        %v3478 = vpop.f32.mrf.mxu0
        %v3479 = vadd.f32 %v3368, %v3478
        %3480 = vmatmul.bf16.gmra.mxu0 %v3413
        %v3481 = vpop.f32.mrf.mxu0
        %v3482 = vadd.f32 %v3368, %v3481
        %v3483 = vpop.f32.mrf.mxu0
        %v3484 = vadd.f32 %v3368, %v3483
        %3485 = vmatmul.bf16.gmra.mxu0 %v3416
        %v3486 = vpop.f32.mrf.mxu0
        %v3487 = vadd.f32 %v3368, %v3486
        %v3488 = vpop.f32.mrf.mxu0
        %v3489 = vadd.f32 %v3368, %v3488
        %3490 = vmatmul.bf16.gmra.mxu0 %v3419
        %v3491 = vpop.f32.mrf.mxu0
        %v3492 = vadd.f32 %v3368, %v3491
        %v3493 = vpop.f32.mrf.mxu0
        %v3494 = vadd.f32 %v3368, %v3493
        %3495 = vmatmul.bf16.gmra.mxu0 %v3422
        %v3496 = vpop.f32.mrf.mxu0
        %v3497 = vadd.f32 %v3368, %v3496
        %v3498 = vpop.f32.mrf.mxu0
        %v3499 = vadd.f32 %v3368, %v3498
        %3500 = vmatmul.bf16.gmra.mxu0 %v3425
        %v3501 = vpop.f32.mrf.mxu0
        %v3502 = vadd.f32 %v3368, %v3501
        %v3503 = vpop.f32.mrf.mxu0
        %v3504 = vadd.f32 %v3368, %v3503
        %3505 = vmatmul.bf16.gmra.mxu0 %v3428
        %v3506 = vpop.f32.mrf.mxu0
        %v3507 = vadd.f32 %v3368, %v3506
        %v3508 = vpop.f32.mrf.mxu0
        %v3509 = vadd.f32 %v3368, %v3508
        %3510 = vmatmul.bf16.gmra.mxu0 %v3431
        %v3511 = vpop.f32.mrf.mxu0
        %v3512 = vadd.f32 %v3368, %v3511
        %v3513 = vpop.f32.mrf.mxu0
        %v3514 = vadd.f32 %v3368, %v3513
        %3515 = vmatmul.bf16.gmra.mxu0 %v3434
        %v3516 = vpop.f32.mrf.mxu0
        %v3517 = vadd.f32 %v3368, %v3516
        %v3518 = vpop.f32.mrf.mxu0
        %v3519 = vadd.f32 %v3368, %v3518
        %3520 = vmatmul.bf16.gmra.mxu0 %v3437
        %v3521 = vpop.f32.mrf.mxu0
        %v3522 = vadd.f32 %v3368, %v3521
        %v3523 = vpop.f32.mrf.mxu0
        %v3524 = vadd.f32 %v3368, %v3523
        %3525 = vmatmul.bf16.gmra.mxu0 %v3440
        %v3526 = vpop.f32.mrf.mxu0
        %v3527 = vadd.f32 %v3368, %v3526
        %v3528 = vpop.f32.mrf.mxu0
        %v3529 = vadd.f32 %v3368, %v3528
        %3530 = vdwg.mxu0
        %3531 = vst.msk [vmem:[%s460] sm:$0xff] %vm494, %v3452
        %3532 = vst.msk [vmem:[%s460 + $0x8] sm:$0xff] %vm494, %v3454
        %3533 = vst.msk [vmem:[%s460 + $0x10] sm:$0xff] %vm494, %v3457
        %3534 = vst.msk [vmem:[%s460 + $0x18] sm:$0xff] %vm494, %v3459
        %3535 = vst.msk [vmem:[%s460 + $0x20] sm:$0xff] %vm494, %v3462
        %3536 = vst.msk [vmem:[%s460 + $0x28] sm:$0xff] %vm494, %v3464
        %3537 = vst.msk [vmem:[%s460 + $0x30] sm:$0xff] %vm494, %v3467
        %3538 = vst.msk [vmem:[%s460 + $0x38] sm:$0xff] %vm494, %v3469
        %3539 = vst.msk [vmem:[%s460 + $0x40] sm:$0xff] %vm494, %v3472
        %3540 = vst.msk [vmem:[%s460 + $0x48] sm:$0xff] %vm494, %v3474
        %3541 = vst.msk [vmem:[%s460 + $0x50] sm:$0xff] %vm494, %v3477
        %3542 = vst.msk [vmem:[%s460 + $0x58] sm:$0xff] %vm494, %v3479
        %3543 = vst.msk [vmem:[%s460 + $0x60] sm:$0xff] %vm494, %v3482
        %3544 = vst.msk [vmem:[%s460 + $0x68] sm:$0xff] %vm494, %v3484
        %3545 = vst.msk [vmem:[%s460 + $0x70] sm:$0xff] %vm494, %v3487
        %3546 = vst.msk [vmem:[%s460 + $0x78] sm:$0xff] %vm494, %v3489
        %3547 = vst.msk [vmem:[%s460 + $0x80] sm:$0xff] %vm494, %v3492
        %3548 = vst.msk [vmem:[%s460 + $0x88] sm:$0xff] %vm494, %v3494
        %3549 = vst.msk [vmem:[%s460 + $0x90] sm:$0xff] %vm494, %v3497
        %3550 = vst.msk [vmem:[%s460 + $0x98] sm:$0xff] %vm494, %v3499
        %3551 = vst.msk [vmem:[%s460 + $0xa0] sm:$0xff] %vm494, %v3502
        %3552 = vst.msk [vmem:[%s460 + $0xa8] sm:$0xff] %vm494, %v3504
        %3553 = vst.msk [vmem:[%s460 + $0xb0] sm:$0xff] %vm494, %v3507
        %3554 = vst.msk [vmem:[%s460 + $0xb8] sm:$0xff] %vm494, %v3509
        %3555 = vst.msk [vmem:[%s460 + $0xc0] sm:$0xff] %vm494, %v3512
        %3556 = vst.msk [vmem:[%s460 + $0xc8] sm:$0xff] %vm494, %v3514
        %3557 = vst.msk [vmem:[%s460 + $0xd0] sm:$0xff] %vm494, %v3517
        %3558 = vst.msk [vmem:[%s460 + $0xd8] sm:$0xff] %vm494, %v3519
        %3559 = vst.msk [vmem:[%s460 + $0xe0] sm:$0xff] %vm494, %v3522
        %3560 = vst.msk [vmem:[%s460 + $0xe8] sm:$0xff] %vm494, %v3524
        %3561 = vst.msk [vmem:[%s460 + $0xf0] sm:$0xff] %vm494, %v3527
        %3562 = vst.msk [vmem:[%s460 + $0xf8] sm:$0xff] %vm494, %v3529
        %s3563 = sand.u32 %s316, 1
        %s3564 = scalar_lea.sflag [#allocation4], %s3563
        %s3565 = sand.u32 %s316, 1
        %s3566 = smul.addr %s3565, 256
        %s3567 = scalar_lea.vmem [#allocation5], %s3566
        // Predicated region
        $region77: #{tpu_custom_call.1} parent=71 // pred_check
          %p3568 = pneg %p326
        $region78: #{tpu_custom_call.1} parent=71 // pred_check_branch
          %3570 = sbr.rel (%p3568) target = $region80
        $region79: #{tpu_custom_call.1} parent=71 // pred_region
          %3572 = vsyncadd %s3564, 0
          %s3573 = smul.addr %s30, 32
          %s3574 = smul.addr %s3573, 8
          %s3575 = scalar_lea.hbm %s13, %s3574
          %s3576 = sshll.u32 %s3567, 4
          %s3577 = int_to_ptr.vmem [resolvable:$true] %s3576
          %s3578 = sshll.u32 %s3575, 4
          %s3579 = int_to_ptr.hbm [resolvable:$true] %s3578
          %3584 = dma.vmem_to_hbm [thread:$0]  %s3577, 4096, %s3579, %s3564, 128, 128, 8
        $region80: #{tpu_custom_call.1} parent=71 // pred_fallthru
          _
      $region72: #{tpu_custom_call.1} parent=5 // pred_fallthru
        _
      %p3585 = scmp.le.s32.totalorder 2, %s25
      // Predicated region
      $region81: #{tpu_custom_call.1} parent=5 // pred_check
        %p3586 = pneg %p3585
      $region82: #{tpu_custom_call.1} parent=5 // pred_check_branch
        %3588 = sbr.rel (%p3586) target = $region84
      $region83: #{tpu_custom_call.1} parent=5 // pred_region
        %s3589 = ssub.s32 %s25, 2
        // Predicated region
        $region85: #{tpu_custom_call.1} parent=83 // pred_check
          %p3590 = pneg %p332
        $region86: #{tpu_custom_call.1} parent=83 // pred_check_branch
          %3592 = sbr.rel (%p3590) target = $region88
        $region87: #{tpu_custom_call.1} parent=83 // pred_region
          %s3593 = sand.u32 %s317, 1
          %s3594 = scalar_lea.sflag [#allocation4], %s3593
          %s3595 = sand.u32 %s317, 1
          %s3596 = smul.addr %s3595, 256
          %s3597 = scalar_lea.vmem [#allocation5], %s3596
          %3599 = dma.done %s3594, 4096
        $region88: #{tpu_custom_call.1} parent=83 // pred_fallthru
          _
      $region84: #{tpu_custom_call.1} parent=5 // pred_fallthru
        _
    $region6: #{tpu_custom_call.1} parent=1 // loop_footer
      %s29 = sadd.s32 1, %s25
    $region7: #{tpu_custom_call.1} parent=1 // loop_footer_branch
      %24 = sbr.rel target = $region3
    $region8: #{tpu_custom_call.1} parent=1 // loop_exit
      _
    %3600 = vsyncpa [#allocation3], 1
    %s3601 = scalar_lea.sflag [#allocation3], 1
    %3602 = vsyncpa %s3601, 1
    %3603 = vsyncpa [#allocation4], 1
    %s3604 = scalar_lea.sflag [#allocation4], 1
    %3605 = vsyncpa %s3604, 1

</llo_original>
